<compile_context>
chip_gen: v6e
topology: v6e:2x2x1
jax: 0.10.0
libtpu: 0.0.40
codegen_flags: <defaults>
</compile_context>

<pallas_src>
import functools

import jax
import jax.numpy as jnp
from jax.experimental import pallas as pl
from jax.experimental.pallas import tpu as pltpu


# ----------------------------------------------------------------------------
# Fused Pallas kernel
# ----------------------------------------------------------------------------
def _shifted_conv3x3(load, w_ref, n_rows, width):
    """Valid 3x3 conv as 9 shifted matmuls over a (row = h*W + w, C) layout.

    load(start, n) -> (n, Cin) bf16 slab of input rows.
    w_ref[kh*3 + kw] is the folded (Cin, Cout) bf16 weight slab.
    Returns the f32 accumulator of shape (n_rows, Cout).
    """
    acc = None
    for kh in range(3):
        for kw in range(3):
            src = load(kh * width + kw, n_rows)
            part = jnp.dot(src, w_ref[kh * 3 + kw],
                           preferred_element_type=jnp.float32)
            acc = part if acc is None else acc + part
    return acc


def cnn2d_encoder_kernel(x_ref, w1_ref, b1_ref, w2_ref, b2_ref,
                         w3_ref, b3_ref, w4_ref, b4_ref,
                         out_ref, a1_ref, a2_ref, *, height, width):
    W = width
    m1 = (height - 2) * W        # stored rows after block1 (valid width shrinks)
    m2 = (height - 4) * W        # stored rows after block2
    m3 = (height - 6) * W        # stored rows after block3 / block4

    # ---- block1: Conv3x3 + folded BN + ReLU ----------------------------------
    acc = _shifted_conv3x3(lambda s, n: x_ref[0, pl.ds(s, n), :], w1_ref, m1, W)
    a1 = jnp.maximum(acc + b1_ref[...], 0.0)
    a1_ref[pl.ds(0, m1), :] = a1.astype(a1_ref.dtype)
    a1_ref[pl.ds(m1, 2), :] = jnp.zeros((2, a1_ref.shape[1]), a1_ref.dtype)

    # ---- block2: Conv3x3 + folded BN + ReLU ----------------------------------
    acc = _shifted_conv3x3(lambda s, n: a1_ref[pl.ds(s, n), :], w2_ref, m2, W)
    a2 = jnp.maximum(acc + b2_ref[...], 0.0)
    a2_ref[pl.ds(0, m2), :] = a2.astype(a2_ref.dtype)
    a2_ref[pl.ds(m2, 2), :] = jnp.zeros((2, a2_ref.shape[1]), a2_ref.dtype)

    # ---- block3: Conv3x3 + folded BN + ReLU ----------------------------------
    acc = _shifted_conv3x3(lambda s, n: a2_ref[pl.ds(s, n), :], w3_ref, m3, W)
    a3 = jnp.maximum(acc + b3_ref[...], 0.0)                     # (m3, C) f32

    # ---- block4: Conv1x1 + folded BN + ReLU ----------------------------------
    acc4 = jnp.dot(a3.astype(jnp.bfloat16), w4_ref[...],
                   preferred_element_type=jnp.float32)
    o4 = jnp.maximum(acc4 + b4_ref[...], 0.0)                    # (m3, C) f32

    # ---- fused AvgPool2d(3): mean over the valid 3x3 window ------------------
    # Valid rows are r in {0..2, W..W+2, 2W..2W+2}; padded / out-of-window rows
    # are finite garbage that is masked out here and never reaches the output.
    r = jax.lax.broadcasted_iota(jnp.int32, (m3, 1), 0)
    in_win = ((r < 3)
              | ((r >= W) & (r < W + 3))
              | ((r >= 2 * W) & (r < 2 * W + 3)))
    mask = jnp.where(in_win, 1.0, 0.0).astype(jnp.float32)
    pooled = jnp.sum(o4 * mask, axis=0, keepdims=True) * (1.0 / 9.0)  # (1, C)
    out_ref[0] = pooled.astype(out_ref.dtype)


# ----------------------------------------------------------------------------
# Weight folding (done once, outside the hot path)
# ----------------------------------------------------------------------------
def fold_block(p, eps=1e-5):
    """Fold eval-mode BatchNorm into conv weight/bias; cast weight to bf16."""
    w, b = p["w"], p["b"]                          # w: (K, K, Cin, Cout)
    scale = p["gamma"] / jnp.sqrt(p["var"] + eps)
    k, _, cin, cout = w.shape
    w_f = (w * scale[None, None, None, :]).reshape(k * k, cin, cout)
    b_f = ((b - p["mean"]) * scale + p["beta"]).reshape(1, cout)
    if k == 1:
        w_f = w_f.reshape(cin, cout)
    return w_f.astype(jnp.bfloat16), b_f.astype(jnp.float32)


def fold_params(params):
    return tuple(fold_block(params[n])
                 for n in ("block1", "block2", "block3", "block4"))


# ----------------------------------------------------------------------------
# Forward wrapper (layout plumbing + single pallas_call)
# ----------------------------------------------------------------------------
def cnn2d_encoder_forward(x_nchw, folded):
    (w1, b1), (w2, b2), (w3, b3), (w4, b4) = folded
    B, Cin, H, Wd = x_nchw.shape
    assert H - 6 == 3 and Wd - 6 == 3, "sized so AvgPool2d(3) yields 1x1"
    C1, C2, C4 = w1.shape[-1], w2.shape[-1], w4.shape[-1]

    # NCHW -> per-batch 2-D slab (row = h*W + w, channel), +2 zero pad rows so
    # every shifted 3x3 window slice stays in bounds; cast to bf16 for the MXU.
    x = jnp.transpose(x_nchw, (0, 2, 3, 1)).astype(jnp.float32)
    x2d = x.reshape(B, H * Wd, Cin)
    x2d = jnp.pad(x2d, ((0, 0), (0, 2), (0, 0))).astype(jnp.bfloat16)

    m1, m2 = (H - 2) * Wd, (H - 4) * Wd
    kernel = functools.partial(cnn2d_encoder_kernel, height=H, width=Wd)

    out = pl.pallas_call(
        kernel,
        out_shape=jax.ShapeDtypeStruct((B, 1, C4), jnp.float32),
        grid_spec=pltpu.PrefetchScalarGridSpec(
            num_scalar_prefetch=0,
            grid=(B,),
            in_specs=[
                pl.BlockSpec((1, H * Wd + 2, Cin), lambda b: (b, 0, 0)),
                pl.BlockSpec(w1.shape, lambda b: (0, 0, 0)),
                pl.BlockSpec(b1.shape, lambda b: (0, 0)),
                pl.BlockSpec(w2.shape, lambda b: (0, 0, 0)),
                pl.BlockSpec(b2.shape, lambda b: (0, 0)),
                pl.BlockSpec(w3.shape, lambda b: (0, 0, 0)),
                pl.BlockSpec(b3.shape, lambda b: (0, 0)),
                pl.BlockSpec(w4.shape, lambda b: (0, 0)),
                pl.BlockSpec(b4.shape, lambda b: (0, 0)),
            ],
            out_specs=pl.BlockSpec((1, 1, C4), lambda b: (b, 0, 0)),
            scratch_shapes=[
                pltpu.VMEM((m1 + 2, C1), jnp.bfloat16),   # block1 activations
                pltpu.VMEM((m2 + 2, C2), jnp.bfloat16),   # block2 activations
            ],
        ),
        compiler_params=pltpu.CompilerParams(
            dimension_semantics=("parallel",),
        ),
    )(x2d, w1, b1, w2, b2, w3, b3, w4, b4)

    # torch.squeeze on (B, C, 1, 1) -> (B, C)   (B > 1 in the example)
    return out.reshape(B, C4)


# ----------------------------------------------------------------------------
# Deterministic parameter construction (matches nn.Conv2d / nn.BatchNorm2d)
# ----------------------------------------------------------------------------
def make_block_params(key, cin, cout, k):
    kw_, kb, kg, kbeta, km, kv = jax.random.split(key, 6)
    fan_in = cin * k * k
    return {
        # stored as (K, K, Cin, Cout); PyTorch stores (Cout, Cin, K, K)
        "w": jax.random.normal(kw_, (k, k, cin, cout), jnp.float32)
        / jnp.sqrt(fan_in),
        "b": 0.01 * jax.random.normal(kb, (cout,), jnp.float32),
        "gamma": 1.0 + 0.1 * jax.random.normal(kg, (cout,), jnp.float32),
        "beta": 0.1 * jax.random.normal(kbeta, (cout,), jnp.float32),
        "mean": 0.05 * jax.random.normal(km, (cout,), jnp.float32),
        "var": 1.0 + 0.1 * jax.random.uniform(kv, (cout,), jnp.float32),
    }


def make_params(key, in_channels, n_filters=128):
    k1, k2, k3, k4 = jax.random.split(key, 4)
    return {
        "block1": make_block_params(k1, in_channels, n_filters, 3),
        "block2": make_block_params(k2, n_filters, n_filters * 2, 3),
        "block3": make_block_params(k3, n_filters * 2, n_filters * 2, 3),
        "block4": make_block_params(k4, n_filters * 2, n_filters * 2, 1),
    }


if __name__ == "__main__":
    key = jax.random.PRNGKey(0)
    kx, kp = jax.random.split(key)

    # 9 -(3x3)-> 7 -(3x3)-> 5 -(3x3)-> 3 -(1x1)-> 3 -(AvgPool2d(3))-> 1x1
    B, Cin, H, W = 2, 4, 9, 9
    x = jax.random.normal(kx, (B, Cin, H, W), jnp.float32)
    params = make_params(kp, Cin, n_filters=128)

    folded = fold_params(params)   # BN fold + bf16 cast hoisted out of the call
    fwd = jax.jit(functools.partial(cnn2d_encoder_forward, folded=folded))
    out = jax.block_until_ready(fwd(x))

    assert out.shape == (B, 256), out.shape
    assert bool(jnp.all(jnp.isfinite(out)))
    print("KERNEL_OK")
</pallas_src>

<mosaic_0001>
module attributes {stable_mosaic.version = 11 : i64} {
  func.func @cnn2d_encoder_kernel(%arg0: i32, %arg1: memref<1x83x4xbf16, #tpu.memory_space<vmem>>, %arg2: memref<9x4x128xbf16, #tpu.memory_space<vmem>>, %arg3: memref<1x128xf32, #tpu.memory_space<vmem>>, %arg4: memref<9x128x256xbf16, #tpu.memory_space<vmem>>, %arg5: memref<1x256xf32, #tpu.memory_space<vmem>>, %arg6: memref<9x256x256xbf16, #tpu.memory_space<vmem>>, %arg7: memref<1x256xf32, #tpu.memory_space<vmem>>, %arg8: memref<256x256xbf16, #tpu.memory_space<vmem>>, %arg9: memref<1x256xf32, #tpu.memory_space<vmem>>, %arg10: memref<1x1x256xf32, #tpu.memory_space<vmem>>, %arg11: memref<65x128xbf16, #tpu.memory_space<vmem>>, %arg12: memref<47x256xbf16, #tpu.memory_space<vmem>>) attributes {dimension_semantics = [#tpu.dimension_semantics<parallel>], iteration_bounds = array<i64: 2>, scalar_prefetch = 0 : i64, scratch_operands = 2 : i64, tpu.core_type = #tpu.core_type<tc>, window_params = [{transform_indices = @transform_0, window_bounds = array<i64: 1, 83, 4>}, {pipeline_mode = #tpu.pipeline_mode<synchronous>, transform_indices = @transform_1, window_bounds = array<i64: 9, 4, 128>}, {pipeline_mode = #tpu.pipeline_mode<synchronous>, transform_indices = @transform_2, window_bounds = array<i64: 1, 128>}, {pipeline_mode = #tpu.pipeline_mode<synchronous>, transform_indices = @transform_3, window_bounds = array<i64: 9, 128, 256>}, {pipeline_mode = #tpu.pipeline_mode<synchronous>, transform_indices = @transform_4, window_bounds = array<i64: 1, 256>}, {pipeline_mode = #tpu.pipeline_mode<synchronous>, transform_indices = @transform_5, window_bounds = array<i64: 9, 256, 256>}, {pipeline_mode = #tpu.pipeline_mode<synchronous>, transform_indices = @transform_6, window_bounds = array<i64: 1, 256>}, {pipeline_mode = #tpu.pipeline_mode<synchronous>, transform_indices = @transform_7, window_bounds = array<i64: 256, 256>}, {pipeline_mode = #tpu.pipeline_mode<synchronous>, transform_indices = @transform_8, window_bounds = array<i64: 1, 256>}, {transform_indices = @transform_9, window_bounds = array<i64: 1, 1, 256>}]} {
    %c0 = arith.constant 0 : index
    %c0_0 = arith.constant 0 : index
    %c0_1 = arith.constant 0 : index
    %0 = vector.load %arg1[%c0, %c0_0, %c0_1] : memref<1x83x4xbf16, #tpu.memory_space<vmem>>, vector<1x63x4xbf16>
    %1 = vector.shape_cast %0 : vector<1x63x4xbf16> to vector<63x4xbf16>
    %c0_2 = arith.constant 0 : index
    %c0_3 = arith.constant 0 : index
    %c0_4 = arith.constant 0 : index
    %2 = vector.load %arg2[%c0_2, %c0_3, %c0_4] : memref<9x4x128xbf16, #tpu.memory_space<vmem>>, vector<1x4x128xbf16>
    %3 = vector.shape_cast %2 : vector<1x4x128xbf16> to vector<4x128xbf16>
    %cst = arith.constant dense<0.000000e+00> : vector<63x128xf32>
    %4 = tpu.matmul %1, %3, %cst {dimension_numbers = #tpu.dot_dimension_numbers<[1], [0], [0], [1], [0, 0, 1, 1], [], []>} : vector<63x4xbf16>, vector<4x128xbf16>, vector<63x128xf32> -> vector<63x128xf32>
    %c0_5 = arith.constant 0 : index
    %c1 = arith.constant 1 : index
    %c0_6 = arith.constant 0 : index
    %5 = vector.load %arg1[%c0_5, %c1, %c0_6] : memref<1x83x4xbf16, #tpu.memory_space<vmem>>, vector<1x63x4xbf16>
    %6 = vector.shape_cast %5 : vector<1x63x4xbf16> to vector<63x4xbf16>
    %c1_7 = arith.constant 1 : index
    %c0_8 = arith.constant 0 : index
    %c0_9 = arith.constant 0 : index
    %7 = vector.load %arg2[%c1_7, %c0_8, %c0_9] : memref<9x4x128xbf16, #tpu.memory_space<vmem>>, vector<1x4x128xbf16>
    %8 = vector.shape_cast %7 : vector<1x4x128xbf16> to vector<4x128xbf16>
    %cst_10 = arith.constant dense<0.000000e+00> : vector<63x128xf32>
    %9 = tpu.matmul %6, %8, %cst_10 {dimension_numbers = #tpu.dot_dimension_numbers<[1], [0], [0], [1], [0, 0, 1, 1], [], []>} : vector<63x4xbf16>, vector<4x128xbf16>, vector<63x128xf32> -> vector<63x128xf32>
    %10 = arith.addf %4, %9 : vector<63x128xf32>
    %c0_11 = arith.constant 0 : index
    %c2 = arith.constant 2 : index
    %c0_12 = arith.constant 0 : index
    %11 = vector.load %arg1[%c0_11, %c2, %c0_12] : memref<1x83x4xbf16, #tpu.memory_space<vmem>>, vector<1x63x4xbf16>
    %12 = vector.shape_cast %11 : vector<1x63x4xbf16> to vector<63x4xbf16>
    %c2_13 = arith.constant 2 : index
    %c0_14 = arith.constant 0 : index
    %c0_15 = arith.constant 0 : index
    %13 = vector.load %arg2[%c2_13, %c0_14, %c0_15] : memref<9x4x128xbf16, #tpu.memory_space<vmem>>, vector<1x4x128xbf16>
    %14 = vector.shape_cast %13 : vector<1x4x128xbf16> to vector<4x128xbf16>
    %cst_16 = arith.constant dense<0.000000e+00> : vector<63x128xf32>
    %15 = tpu.matmul %12, %14, %cst_16 {dimension_numbers = #tpu.dot_dimension_numbers<[1], [0], [0], [1], [0, 0, 1, 1], [], []>} : vector<63x4xbf16>, vector<4x128xbf16>, vector<63x128xf32> -> vector<63x128xf32>
    %16 = arith.addf %10, %15 : vector<63x128xf32>
    %c0_17 = arith.constant 0 : index
    %c9 = arith.constant 9 : index
    %c0_18 = arith.constant 0 : index
    %17 = vector.load %arg1[%c0_17, %c9, %c0_18] : memref<1x83x4xbf16, #tpu.memory_space<vmem>>, vector<1x63x4xbf16>
    %18 = vector.shape_cast %17 : vector<1x63x4xbf16> to vector<63x4xbf16>
    %c3 = arith.constant 3 : index
    %c0_19 = arith.constant 0 : index
    %c0_20 = arith.constant 0 : index
    %19 = vector.load %arg2[%c3, %c0_19, %c0_20] : memref<9x4x128xbf16, #tpu.memory_space<vmem>>, vector<1x4x128xbf16>
    %20 = vector.shape_cast %19 : vector<1x4x128xbf16> to vector<4x128xbf16>
    %cst_21 = arith.constant dense<0.000000e+00> : vector<63x128xf32>
    %21 = tpu.matmul %18, %20, %cst_21 {dimension_numbers = #tpu.dot_dimension_numbers<[1], [0], [0], [1], [0, 0, 1, 1], [], []>} : vector<63x4xbf16>, vector<4x128xbf16>, vector<63x128xf32> -> vector<63x128xf32>
    %22 = arith.addf %16, %21 : vector<63x128xf32>
    %c0_22 = arith.constant 0 : index
    %c10 = arith.constant 10 : index
    %c0_23 = arith.constant 0 : index
    %23 = vector.load %arg1[%c0_22, %c10, %c0_23] : memref<1x83x4xbf16, #tpu.memory_space<vmem>>, vector<1x63x4xbf16>
    %24 = vector.shape_cast %23 : vector<1x63x4xbf16> to vector<63x4xbf16>
    %c4 = arith.constant 4 : index
    %c0_24 = arith.constant 0 : index
    %c0_25 = arith.constant 0 : index
    %25 = vector.load %arg2[%c4, %c0_24, %c0_25] : memref<9x4x128xbf16, #tpu.memory_space<vmem>>, vector<1x4x128xbf16>
    %26 = vector.shape_cast %25 : vector<1x4x128xbf16> to vector<4x128xbf16>
    %cst_26 = arith.constant dense<0.000000e+00> : vector<63x128xf32>
    %27 = tpu.matmul %24, %26, %cst_26 {dimension_numbers = #tpu.dot_dimension_numbers<[1], [0], [0], [1], [0, 0, 1, 1], [], []>} : vector<63x4xbf16>, vector<4x128xbf16>, vector<63x128xf32> -> vector<63x128xf32>
    %28 = arith.addf %22, %27 : vector<63x128xf32>
    %c0_27 = arith.constant 0 : index
    %c11 = arith.constant 11 : index
    %c0_28 = arith.constant 0 : index
    %29 = vector.load %arg1[%c0_27, %c11, %c0_28] : memref<1x83x4xbf16, #tpu.memory_space<vmem>>, vector<1x63x4xbf16>
    %30 = vector.shape_cast %29 : vector<1x63x4xbf16> to vector<63x4xbf16>
    %c5 = arith.constant 5 : index
    %c0_29 = arith.constant 0 : index
    %c0_30 = arith.constant 0 : index
    %31 = vector.load %arg2[%c5, %c0_29, %c0_30] : memref<9x4x128xbf16, #tpu.memory_space<vmem>>, vector<1x4x128xbf16>
    %32 = vector.shape_cast %31 : vector<1x4x128xbf16> to vector<4x128xbf16>
    %cst_31 = arith.constant dense<0.000000e+00> : vector<63x128xf32>
    %33 = tpu.matmul %30, %32, %cst_31 {dimension_numbers = #tpu.dot_dimension_numbers<[1], [0], [0], [1], [0, 0, 1, 1], [], []>} : vector<63x4xbf16>, vector<4x128xbf16>, vector<63x128xf32> -> vector<63x128xf32>
    %34 = arith.addf %28, %33 : vector<63x128xf32>
    %c0_32 = arith.constant 0 : index
    %c18 = arith.constant 18 : index
    %c0_33 = arith.constant 0 : index
    %35 = vector.load %arg1[%c0_32, %c18, %c0_33] : memref<1x83x4xbf16, #tpu.memory_space<vmem>>, vector<1x63x4xbf16>
    %36 = vector.shape_cast %35 : vector<1x63x4xbf16> to vector<63x4xbf16>
    %c6 = arith.constant 6 : index
    %c0_34 = arith.constant 0 : index
    %c0_35 = arith.constant 0 : index
    %37 = vector.load %arg2[%c6, %c0_34, %c0_35] : memref<9x4x128xbf16, #tpu.memory_space<vmem>>, vector<1x4x128xbf16>
    %38 = vector.shape_cast %37 : vector<1x4x128xbf16> to vector<4x128xbf16>
    %cst_36 = arith.constant dense<0.000000e+00> : vector<63x128xf32>
    %39 = tpu.matmul %36, %38, %cst_36 {dimension_numbers = #tpu.dot_dimension_numbers<[1], [0], [0], [1], [0, 0, 1, 1], [], []>} : vector<63x4xbf16>, vector<4x128xbf16>, vector<63x128xf32> -> vector<63x128xf32>
    %40 = arith.addf %34, %39 : vector<63x128xf32>
    %c0_37 = arith.constant 0 : index
    %c19 = arith.constant 19 : index
    %c0_38 = arith.constant 0 : index
    %41 = vector.load %arg1[%c0_37, %c19, %c0_38] : memref<1x83x4xbf16, #tpu.memory_space<vmem>>, vector<1x63x4xbf16>
    %42 = vector.shape_cast %41 : vector<1x63x4xbf16> to vector<63x4xbf16>
    %c7 = arith.constant 7 : index
    %c0_39 = arith.constant 0 : index
    %c0_40 = arith.constant 0 : index
    %43 = vector.load %arg2[%c7, %c0_39, %c0_40] : memref<9x4x128xbf16, #tpu.memory_space<vmem>>, vector<1x4x128xbf16>
    %44 = vector.shape_cast %43 : vector<1x4x128xbf16> to vector<4x128xbf16>
    %cst_41 = arith.constant dense<0.000000e+00> : vector<63x128xf32>
    %45 = tpu.matmul %42, %44, %cst_41 {dimension_numbers = #tpu.dot_dimension_numbers<[1], [0], [0], [1], [0, 0, 1, 1], [], []>} : vector<63x4xbf16>, vector<4x128xbf16>, vector<63x128xf32> -> vector<63x128xf32>
    %46 = arith.addf %40, %45 : vector<63x128xf32>
    %c0_42 = arith.constant 0 : index
    %c20 = arith.constant 20 : index
    %c0_43 = arith.constant 0 : index
    %47 = vector.load %arg1[%c0_42, %c20, %c0_43] : memref<1x83x4xbf16, #tpu.memory_space<vmem>>, vector<1x63x4xbf16>
    %48 = vector.shape_cast %47 : vector<1x63x4xbf16> to vector<63x4xbf16>
    %c8 = arith.constant 8 : index
    %c0_44 = arith.constant 0 : index
    %c0_45 = arith.constant 0 : index
    %49 = vector.load %arg2[%c8, %c0_44, %c0_45] : memref<9x4x128xbf16, #tpu.memory_space<vmem>>, vector<1x4x128xbf16>
    %50 = vector.shape_cast %49 : vector<1x4x128xbf16> to vector<4x128xbf16>
    %cst_46 = arith.constant dense<0.000000e+00> : vector<63x128xf32>
    %51 = tpu.matmul %48, %50, %cst_46 {dimension_numbers = #tpu.dot_dimension_numbers<[1], [0], [0], [1], [0, 0, 1, 1], [], []>} : vector<63x4xbf16>, vector<4x128xbf16>, vector<63x128xf32> -> vector<63x128xf32>
    %52 = arith.addf %46, %51 : vector<63x128xf32>
    %c0_47 = arith.constant 0 : index
    %c0_48 = arith.constant 0 : index
    %53 = vector.load %arg3[%c0_47, %c0_48] : memref<1x128xf32, #tpu.memory_space<vmem>>, vector<1x128xf32>
    %54 = vector.broadcast %53 : vector<1x128xf32> to vector<63x128xf32>
    %55 = arith.addf %52, %54 : vector<63x128xf32>
    %cst_49 = arith.constant 0.000000e+00 : f32
    %56 = vector.broadcast %cst_49 : f32 to vector<63x128xf32>
    %57 = arith.maximumf %55, %56 : vector<63x128xf32>
    %58 = arith.truncf %57 : vector<63x128xf32> to vector<63x128xbf16>
    %c0_50 = arith.constant 0 : index
    %c0_51 = arith.constant 0 : index
    %59 = vector.load %arg11[%c0_50, %c0_51] : memref<65x128xbf16, #tpu.memory_space<vmem>>, vector<63x128xbf16>
    tpu.vector_store %arg11[%c0_50, %c0_51], %58 {strides = array<i32>} : memref<65x128xbf16, #tpu.memory_space<vmem>>, vector<63x128xbf16>,
    %cst_52 = arith.constant 0.000000e+00 : bf16
    %60 = vector.broadcast %cst_52 : bf16 to vector<2x128xbf16>
    %c63 = arith.constant 63 : index
    %c0_53 = arith.constant 0 : index
    %61 = vector.load %arg11[%c63, %c0_53] : memref<65x128xbf16, #tpu.memory_space<vmem>>, vector<2x128xbf16>
    tpu.vector_store %arg11[%c63, %c0_53], %60 {strides = array<i32>} : memref<65x128xbf16, #tpu.memory_space<vmem>>, vector<2x128xbf16>,
    %c0_54 = arith.constant 0 : index
    %c0_55 = arith.constant 0 : index
    %62 = vector.load %arg11[%c0_54, %c0_55] : memref<65x128xbf16, #tpu.memory_space<vmem>>, vector<45x128xbf16>
    %c0_56 = arith.constant 0 : index
    %c0_57 = arith.constant 0 : index
    %c0_58 = arith.constant 0 : index
    %63 = vector.load %arg4[%c0_56, %c0_57, %c0_58] : memref<9x128x256xbf16, #tpu.memory_space<vmem>>, vector<1x128x256xbf16>
    %64 = vector.shape_cast %63 : vector<1x128x256xbf16> to vector<128x256xbf16>
    %cst_59 = arith.constant dense<0.000000e+00> : vector<45x256xf32>
    %65 = tpu.matmul %62, %64, %cst_59 {dimension_numbers = #tpu.dot_dimension_numbers<[1], [0], [0], [1], [0, 0, 1, 1], [], []>} : vector<45x128xbf16>, vector<128x256xbf16>, vector<45x256xf32> -> vector<45x256xf32>
    %c1_60 = arith.constant 1 : index
    %c0_61 = arith.constant 0 : index
    %66 = vector.load %arg11[%c1_60, %c0_61] : memref<65x128xbf16, #tpu.memory_space<vmem>>, vector<45x128xbf16>
    %c1_62 = arith.constant 1 : index
    %c0_63 = arith.constant 0 : index
    %c0_64 = arith.constant 0 : index
    %67 = vector.load %arg4[%c1_62, %c0_63, %c0_64] : memref<9x128x256xbf16, #tpu.memory_space<vmem>>, vector<1x128x256xbf16>
    %68 = vector.shape_cast %67 : vector<1x128x256xbf16> to vector<128x256xbf16>
    %cst_65 = arith.constant dense<0.000000e+00> : vector<45x256xf32>
    %69 = tpu.matmul %66, %68, %cst_65 {dimension_numbers = #tpu.dot_dimension_numbers<[1], [0], [0], [1], [0, 0, 1, 1], [], []>} : vector<45x128xbf16>, vector<128x256xbf16>, vector<45x256xf32> -> vector<45x256xf32>
    %70 = arith.addf %65, %69 : vector<45x256xf32>
    %c2_66 = arith.constant 2 : index
    %c0_67 = arith.constant 0 : index
    %71 = vector.load %arg11[%c2_66, %c0_67] : memref<65x128xbf16, #tpu.memory_space<vmem>>, vector<45x128xbf16>
    %c2_68 = arith.constant 2 : index
    %c0_69 = arith.constant 0 : index
    %c0_70 = arith.constant 0 : index
    %72 = vector.load %arg4[%c2_68, %c0_69, %c0_70] : memref<9x128x256xbf16, #tpu.memory_space<vmem>>, vector<1x128x256xbf16>
    %73 = vector.shape_cast %72 : vector<1x128x256xbf16> to vector<128x256xbf16>
    %cst_71 = arith.constant dense<0.000000e+00> : vector<45x256xf32>
    %74 = tpu.matmul %71, %73, %cst_71 {dimension_numbers = #tpu.dot_dimension_numbers<[1], [0], [0], [1], [0, 0, 1, 1], [], []>} : vector<45x128xbf16>, vector<128x256xbf16>, vector<45x256xf32> -> vector<45x256xf32>
    %75 = arith.addf %70, %74 : vector<45x256xf32>
    %c9_72 = arith.constant 9 : index
    %c0_73 = arith.constant 0 : index
    %76 = vector.load %arg11[%c9_72, %c0_73] : memref<65x128xbf16, #tpu.memory_space<vmem>>, vector<45x128xbf16>
    %c3_74 = arith.constant 3 : index
    %c0_75 = arith.constant 0 : index
    %c0_76 = arith.constant 0 : index
    %77 = vector.load %arg4[%c3_74, %c0_75, %c0_76] : memref<9x128x256xbf16, #tpu.memory_space<vmem>>, vector<1x128x256xbf16>
    %78 = vector.shape_cast %77 : vector<1x128x256xbf16> to vector<128x256xbf16>
    %cst_77 = arith.constant dense<0.000000e+00> : vector<45x256xf32>
    %79 = tpu.matmul %76, %78, %cst_77 {dimension_numbers = #tpu.dot_dimension_numbers<[1], [0], [0], [1], [0, 0, 1, 1], [], []>} : vector<45x128xbf16>, vector<128x256xbf16>, vector<45x256xf32> -> vector<45x256xf32>
    %80 = arith.addf %75, %79 : vector<45x256xf32>
    %c10_78 = arith.constant 10 : index
    %c0_79 = arith.constant 0 : index
    %81 = vector.load %arg11[%c10_78, %c0_79] : memref<65x128xbf16, #tpu.memory_space<vmem>>, vector<45x128xbf16>
    %c4_80 = arith.constant 4 : index
    %c0_81 = arith.constant 0 : index
    %c0_82 = arith.constant 0 : index
    %82 = vector.load %arg4[%c4_80, %c0_81, %c0_82] : memref<9x128x256xbf16, #tpu.memory_space<vmem>>, vector<1x128x256xbf16>
    %83 = vector.shape_cast %82 : vector<1x128x256xbf16> to vector<128x256xbf16>
    %cst_83 = arith.constant dense<0.000000e+00> : vector<45x256xf32>
    %84 = tpu.matmul %81, %83, %cst_83 {dimension_numbers = #tpu.dot_dimension_numbers<[1], [0], [0], [1], [0, 0, 1, 1], [], []>} : vector<45x128xbf16>, vector<128x256xbf16>, vector<45x256xf32> -> vector<45x256xf32>
    %85 = arith.addf %80, %84 : vector<45x256xf32>
    %c11_84 = arith.constant 11 : index
    %c0_85 = arith.constant 0 : index
    %86 = vector.load %arg11[%c11_84, %c0_85] : memref<65x128xbf16, #tpu.memory_space<vmem>>, vector<45x128xbf16>
    %c5_86 = arith.constant 5 : index
    %c0_87 = arith.constant 0 : index
    %c0_88 = arith.constant 0 : index
    %87 = vector.load %arg4[%c5_86, %c0_87, %c0_88] : memref<9x128x256xbf16, #tpu.memory_space<vmem>>, vector<1x128x256xbf16>
    %88 = vector.shape_cast %87 : vector<1x128x256xbf16> to vector<128x256xbf16>
    %cst_89 = arith.constant dense<0.000000e+00> : vector<45x256xf32>
    %89 = tpu.matmul %86, %88, %cst_89 {dimension_numbers = #tpu.dot_dimension_numbers<[1], [0], [0], [1], [0, 0, 1, 1], [], []>} : vector<45x128xbf16>, vector<128x256xbf16>, vector<45x256xf32> -> vector<45x256xf32>
    %90 = arith.addf %85, %89 : vector<45x256xf32>
    %c18_90 = arith.constant 18 : index
    %c0_91 = arith.constant 0 : index
    %91 = vector.load %arg11[%c18_90, %c0_91] : memref<65x128xbf16, #tpu.memory_space<vmem>>, vector<45x128xbf16>
    %c6_92 = arith.constant 6 : index
    %c0_93 = arith.constant 0 : index
    %c0_94 = arith.constant 0 : index
    %92 = vector.load %arg4[%c6_92, %c0_93, %c0_94] : memref<9x128x256xbf16, #tpu.memory_space<vmem>>, vector<1x128x256xbf16>
    %93 = vector.shape_cast %92 : vector<1x128x256xbf16> to vector<128x256xbf16>
    %cst_95 = arith.constant dense<0.000000e+00> : vector<45x256xf32>
    %94 = tpu.matmul %91, %93, %cst_95 {dimension_numbers = #tpu.dot_dimension_numbers<[1], [0], [0], [1], [0, 0, 1, 1], [], []>} : vector<45x128xbf16>, vector<128x256xbf16>, vector<45x256xf32> -> vector<45x256xf32>
    %95 = arith.addf %90, %94 : vector<45x256xf32>
    %c19_96 = arith.constant 19 : index
    %c0_97 = arith.constant 0 : index
    %96 = vector.load %arg11[%c19_96, %c0_97] : memref<65x128xbf16, #tpu.memory_space<vmem>>, vector<45x128xbf16>
    %c7_98 = arith.constant 7 : index
    %c0_99 = arith.constant 0 : index
    %c0_100 = arith.constant 0 : index
    %97 = vector.load %arg4[%c7_98, %c0_99, %c0_100] : memref<9x128x256xbf16, #tpu.memory_space<vmem>>, vector<1x128x256xbf16>
    %98 = vector.shape_cast %97 : vector<1x128x256xbf16> to vector<128x256xbf16>
    %cst_101 = arith.constant dense<0.000000e+00> : vector<45x256xf32>
    %99 = tpu.matmul %96, %98, %cst_101 {dimension_numbers = #tpu.dot_dimension_numbers<[1], [0], [0], [1], [0, 0, 1, 1], [], []>} : vector<45x128xbf16>, vector<128x256xbf16>, vector<45x256xf32> -> vector<45x256xf32>
    %100 = arith.addf %95, %99 : vector<45x256xf32>
    %c20_102 = arith.constant 20 : index
    %c0_103 = arith.constant 0 : index
    %101 = vector.load %arg11[%c20_102, %c0_103] : memref<65x128xbf16, #tpu.memory_space<vmem>>, vector<45x128xbf16>
    %c8_104 = arith.constant 8 : index
    %c0_105 = arith.constant 0 : index
    %c0_106 = arith.constant 0 : index
    %102 = vector.load %arg4[%c8_104, %c0_105, %c0_106] : memref<9x128x256xbf16, #tpu.memory_space<vmem>>, vector<1x128x256xbf16>
    %103 = vector.shape_cast %102 : vector<1x128x256xbf16> to vector<128x256xbf16>
    %cst_107 = arith.constant dense<0.000000e+00> : vector<45x256xf32>
    %104 = tpu.matmul %101, %103, %cst_107 {dimension_numbers = #tpu.dot_dimension_numbers<[1], [0], [0], [1], [0, 0, 1, 1], [], []>} : vector<45x128xbf16>, vector<128x256xbf16>, vector<45x256xf32> -> vector<45x256xf32>
    %105 = arith.addf %100, %104 : vector<45x256xf32>
    %c0_108 = arith.constant 0 : index
    %c0_109 = arith.constant 0 : index
    %106 = vector.load %arg5[%c0_108, %c0_109] : memref<1x256xf32, #tpu.memory_space<vmem>>, vector<1x256xf32>
    %107 = vector.broadcast %106 : vector<1x256xf32> to vector<45x256xf32>
    %108 = arith.addf %105, %107 : vector<45x256xf32>
    %cst_110 = arith.constant 0.000000e+00 : f32
    %109 = vector.broadcast %cst_110 : f32 to vector<45x256xf32>
    %110 = arith.maximumf %108, %109 : vector<45x256xf32>
    %111 = arith.truncf %110 : vector<45x256xf32> to vector<45x256xbf16>
    %c0_111 = arith.constant 0 : index
    %c0_112 = arith.constant 0 : index
    %112 = vector.load %arg12[%c0_111, %c0_112] : memref<47x256xbf16, #tpu.memory_space<vmem>>, vector<45x256xbf16>
    tpu.vector_store %arg12[%c0_111, %c0_112], %111 {strides = array<i32>} : memref<47x256xbf16, #tpu.memory_space<vmem>>, vector<45x256xbf16>,
    %cst_113 = arith.constant 0.000000e+00 : bf16
    %113 = vector.broadcast %cst_113 : bf16 to vector<2x256xbf16>
    %c45 = arith.constant 45 : index
    %c0_114 = arith.constant 0 : index
    %114 = vector.load %arg12[%c45, %c0_114] : memref<47x256xbf16, #tpu.memory_space<vmem>>, vector<2x256xbf16>
    tpu.vector_store %arg12[%c45, %c0_114], %113 {strides = array<i32>} : memref<47x256xbf16, #tpu.memory_space<vmem>>, vector<2x256xbf16>,
    %c0_115 = arith.constant 0 : index
    %c0_116 = arith.constant 0 : index
    %115 = vector.load %arg12[%c0_115, %c0_116] : memref<47x256xbf16, #tpu.memory_space<vmem>>, vector<27x256xbf16>
    %c0_117 = arith.constant 0 : index
    %c0_118 = arith.constant 0 : index
    %c0_119 = arith.constant 0 : index
    %116 = vector.load %arg6[%c0_117, %c0_118, %c0_119] : memref<9x256x256xbf16, #tpu.memory_space<vmem>>, vector<1x256x256xbf16>
    %117 = vector.shape_cast %116 : vector<1x256x256xbf16> to vector<256x256xbf16>
    %cst_120 = arith.constant dense<0.000000e+00> : vector<27x256xf32>
    %118 = tpu.matmul %115, %117, %cst_120 {dimension_numbers = #tpu.dot_dimension_numbers<[1], [0], [0], [1], [0, 0, 1, 1], [], []>} : vector<27x256xbf16>, vector<256x256xbf16>, vector<27x256xf32> -> vector<27x256xf32>
    %c1_121 = arith.constant 1 : index
    %c0_122 = arith.constant 0 : index
    %119 = vector.load %arg12[%c1_121, %c0_122] : memref<47x256xbf16, #tpu.memory_space<vmem>>, vector<27x256xbf16>
    %c1_123 = arith.constant 1 : index
    %c0_124 = arith.constant 0 : index
    %c0_125 = arith.constant 0 : index
    %120 = vector.load %arg6[%c1_123, %c0_124, %c0_125] : memref<9x256x256xbf16, #tpu.memory_space<vmem>>, vector<1x256x256xbf16>
    %121 = vector.shape_cast %120 : vector<1x256x256xbf16> to vector<256x256xbf16>
    %cst_126 = arith.constant dense<0.000000e+00> : vector<27x256xf32>
    %122 = tpu.matmul %119, %121, %cst_126 {dimension_numbers = #tpu.dot_dimension_numbers<[1], [0], [0], [1], [0, 0, 1, 1], [], []>} : vector<27x256xbf16>, vector<256x256xbf16>, vector<27x256xf32> -> vector<27x256xf32>
    %123 = arith.addf %118, %122 : vector<27x256xf32>
    %c2_127 = arith.constant 2 : index
    %c0_128 = arith.constant 0 : index
    %124 = vector.load %arg12[%c2_127, %c0_128] : memref<47x256xbf16, #tpu.memory_space<vmem>>, vector<27x256xbf16>
    %c2_129 = arith.constant 2 : index
    %c0_130 = arith.constant 0 : index
    %c0_131 = arith.constant 0 : index
    %125 = vector.load %arg6[%c2_129, %c0_130, %c0_131] : memref<9x256x256xbf16, #tpu.memory_space<vmem>>, vector<1x256x256xbf16>
    %126 = vector.shape_cast %125 : vector<1x256x256xbf16> to vector<256x256xbf16>
    %cst_132 = arith.constant dense<0.000000e+00> : vector<27x256xf32>
    %127 = tpu.matmul %124, %126, %cst_132 {dimension_numbers = #tpu.dot_dimension_numbers<[1], [0], [0], [1], [0, 0, 1, 1], [], []>} : vector<27x256xbf16>, vector<256x256xbf16>, vector<27x256xf32> -> vector<27x256xf32>
    %128 = arith.addf %123, %127 : vector<27x256xf32>
    %c9_133 = arith.constant 9 : index
    %c0_134 = arith.constant 0 : index
    %129 = vector.load %arg12[%c9_133, %c0_134] : memref<47x256xbf16, #tpu.memory_space<vmem>>, vector<27x256xbf16>
    %c3_135 = arith.constant 3 : index
    %c0_136 = arith.constant 0 : index
    %c0_137 = arith.constant 0 : index
    %130 = vector.load %arg6[%c3_135, %c0_136, %c0_137] : memref<9x256x256xbf16, #tpu.memory_space<vmem>>, vector<1x256x256xbf16>
    %131 = vector.shape_cast %130 : vector<1x256x256xbf16> to vector<256x256xbf16>
    %cst_138 = arith.constant dense<0.000000e+00> : vector<27x256xf32>
    %132 = tpu.matmul %129, %131, %cst_138 {dimension_numbers = #tpu.dot_dimension_numbers<[1], [0], [0], [1], [0, 0, 1, 1], [], []>} : vector<27x256xbf16>, vector<256x256xbf16>, vector<27x256xf32> -> vector<27x256xf32>
    %133 = arith.addf %128, %132 : vector<27x256xf32>
    %c10_139 = arith.constant 10 : index
    %c0_140 = arith.constant 0 : index
    %134 = vector.load %arg12[%c10_139, %c0_140] : memref<47x256xbf16, #tpu.memory_space<vmem>>, vector<27x256xbf16>
    %c4_141 = arith.constant 4 : index
    %c0_142 = arith.constant 0 : index
    %c0_143 = arith.constant 0 : index
    %135 = vector.load %arg6[%c4_141, %c0_142, %c0_143] : memref<9x256x256xbf16, #tpu.memory_space<vmem>>, vector<1x256x256xbf16>
    %136 = vector.shape_cast %135 : vector<1x256x256xbf16> to vector<256x256xbf16>
    %cst_144 = arith.constant dense<0.000000e+00> : vector<27x256xf32>
    %137 = tpu.matmul %134, %136, %cst_144 {dimension_numbers = #tpu.dot_dimension_numbers<[1], [0], [0], [1], [0, 0, 1, 1], [], []>} : vector<27x256xbf16>, vector<256x256xbf16>, vector<27x256xf32> -> vector<27x256xf32>
    %138 = arith.addf %133, %137 : vector<27x256xf32>
    %c11_145 = arith.constant 11 : index
    %c0_146 = arith.constant 0 : index
    %139 = vector.load %arg12[%c11_145, %c0_146] : memref<47x256xbf16, #tpu.memory_space<vmem>>, vector<27x256xbf16>
    %c5_147 = arith.constant 5 : index
    %c0_148 = arith.constant 0 : index
    %c0_149 = arith.constant 0 : index
    %140 = vector.load %arg6[%c5_147, %c0_148, %c0_149] : memref<9x256x256xbf16, #tpu.memory_space<vmem>>, vector<1x256x256xbf16>
    %141 = vector.shape_cast %140 : vector<1x256x256xbf16> to vector<256x256xbf16>
    %cst_150 = arith.constant dense<0.000000e+00> : vector<27x256xf32>
    %142 = tpu.matmul %139, %141, %cst_150 {dimension_numbers = #tpu.dot_dimension_numbers<[1], [0], [0], [1], [0, 0, 1, 1], [], []>} : vector<27x256xbf16>, vector<256x256xbf16>, vector<27x256xf32> -> vector<27x256xf32>
    %143 = arith.addf %138, %142 : vector<27x256xf32>
    %c18_151 = arith.constant 18 : index
    %c0_152 = arith.constant 0 : index
    %144 = vector.load %arg12[%c18_151, %c0_152] : memref<47x256xbf16, #tpu.memory_space<vmem>>, vector<27x256xbf16>
    %c6_153 = arith.constant 6 : index
    %c0_154 = arith.constant 0 : index
    %c0_155 = arith.constant 0 : index
    %145 = vector.load %arg6[%c6_153, %c0_154, %c0_155] : memref<9x256x256xbf16, #tpu.memory_space<vmem>>, vector<1x256x256xbf16>
    %146 = vector.shape_cast %145 : vector<1x256x256xbf16> to vector<256x256xbf16>
    %cst_156 = arith.constant dense<0.000000e+00> : vector<27x256xf32>
    %147 = tpu.matmul %144, %146, %cst_156 {dimension_numbers = #tpu.dot_dimension_numbers<[1], [0], [0], [1], [0, 0, 1, 1], [], []>} : vector<27x256xbf16>, vector<256x256xbf16>, vector<27x256xf32> -> vector<27x256xf32>
    %148 = arith.addf %143, %147 : vector<27x256xf32>
    %c19_157 = arith.constant 19 : index
    %c0_158 = arith.constant 0 : index
    %149 = vector.load %arg12[%c19_157, %c0_158] : memref<47x256xbf16, #tpu.memory_space<vmem>>, vector<27x256xbf16>
    %c7_159 = arith.constant 7 : index
    %c0_160 = arith.constant 0 : index
    %c0_161 = arith.constant 0 : index
    %150 = vector.load %arg6[%c7_159, %c0_160, %c0_161] : memref<9x256x256xbf16, #tpu.memory_space<vmem>>, vector<1x256x256xbf16>
    %151 = vector.shape_cast %150 : vector<1x256x256xbf16> to vector<256x256xbf16>
    %cst_162 = arith.constant dense<0.000000e+00> : vector<27x256xf32>
    %152 = tpu.matmul %149, %151, %cst_162 {dimension_numbers = #tpu.dot_dimension_numbers<[1], [0], [0], [1], [0, 0, 1, 1], [], []>} : vector<27x256xbf16>, vector<256x256xbf16>, vector<27x256xf32> -> vector<27x256xf32>
    %153 = arith.addf %148, %152 : vector<27x256xf32>
    %c20_163 = arith.constant 20 : index
    %c0_164 = arith.constant 0 : index
    %154 = vector.load %arg12[%c20_163, %c0_164] : memref<47x256xbf16, #tpu.memory_space<vmem>>, vector<27x256xbf16>
    %c8_165 = arith.constant 8 : index
    %c0_166 = arith.constant 0 : index
    %c0_167 = arith.constant 0 : index
    %155 = vector.load %arg6[%c8_165, %c0_166, %c0_167] : memref<9x256x256xbf16, #tpu.memory_space<vmem>>, vector<1x256x256xbf16>
    %156 = vector.shape_cast %155 : vector<1x256x256xbf16> to vector<256x256xbf16>
    %cst_168 = arith.constant dense<0.000000e+00> : vector<27x256xf32>
    %157 = tpu.matmul %154, %156, %cst_168 {dimension_numbers = #tpu.dot_dimension_numbers<[1], [0], [0], [1], [0, 0, 1, 1], [], []>} : vector<27x256xbf16>, vector<256x256xbf16>, vector<27x256xf32> -> vector<27x256xf32>
    %158 = arith.addf %153, %157 : vector<27x256xf32>
    %c0_169 = arith.constant 0 : index
    %c0_170 = arith.constant 0 : index
    %159 = vector.load %arg7[%c0_169, %c0_170] : memref<1x256xf32, #tpu.memory_space<vmem>>, vector<1x256xf32>
    %160 = vector.broadcast %159 : vector<1x256xf32> to vector<27x256xf32>
    %161 = arith.addf %158, %160 : vector<27x256xf32>
    %cst_171 = arith.constant 0.000000e+00 : f32
    %162 = vector.broadcast %cst_171 : f32 to vector<27x256xf32>
    %163 = arith.maximumf %161, %162 : vector<27x256xf32>
    %164 = arith.truncf %163 : vector<27x256xf32> to vector<27x256xbf16>
    %c0_172 = arith.constant 0 : index
    %c0_173 = arith.constant 0 : index
    %165 = vector.load %arg8[%c0_172, %c0_173] : memref<256x256xbf16, #tpu.memory_space<vmem>>, vector<256x256xbf16>
    %cst_174 = arith.constant dense<0.000000e+00> : vector<27x256xf32>
    %166 = tpu.matmul %164, %165, %cst_174 {dimension_numbers = #tpu.dot_dimension_numbers<[1], [0], [0], [1], [0, 0, 1, 1], [], []>} : vector<27x256xbf16>, vector<256x256xbf16>, vector<27x256xf32> -> vector<27x256xf32>
    %c0_175 = arith.constant 0 : index
    %c0_176 = arith.constant 0 : index
    %167 = vector.load %arg9[%c0_175, %c0_176] : memref<1x256xf32, #tpu.memory_space<vmem>>, vector<1x256xf32>
    %168 = vector.broadcast %167 : vector<1x256xf32> to vector<27x256xf32>
    %169 = arith.addf %166, %168 : vector<27x256xf32>
    %cst_177 = arith.constant 0.000000e+00 : f32
    %170 = vector.broadcast %cst_177 : f32 to vector<27x256xf32>
    %171 = arith.maximumf %169, %170 : vector<27x256xf32>
    %172 = tpu.iota {dimensions = array<i32: 0>} : vector<27x1xi32>
    %c3_i32 = arith.constant 3 : i32
    %173 = vector.broadcast %c3_i32 : i32 to vector<27x1xi32>
    %174 = arith.cmpi slt, %172, %173 : vector<27x1xi32>
    %c9_i32 = arith.constant 9 : i32
    %175 = vector.broadcast %c9_i32 : i32 to vector<27x1xi32>
    %176 = arith.cmpi sge, %172, %175 : vector<27x1xi32>
    %c12_i32 = arith.constant 12 : i32
    %177 = vector.broadcast %c12_i32 : i32 to vector<27x1xi32>
    %178 = arith.cmpi slt, %172, %177 : vector<27x1xi32>
    %179 = arith.andi %176, %178 : vector<27x1xi1>
    %180 = arith.ori %174, %179 : vector<27x1xi1>
    %c18_i32 = arith.constant 18 : i32
    %181 = vector.broadcast %c18_i32 : i32 to vector<27x1xi32>
    %182 = arith.cmpi sge, %172, %181 : vector<27x1xi32>
    %c21_i32 = arith.constant 21 : i32
    %183 = vector.broadcast %c21_i32 : i32 to vector<27x1xi32>
    %184 = arith.cmpi slt, %172, %183 : vector<27x1xi32>
    %185 = arith.andi %182, %184 : vector<27x1xi1>
    %186 = arith.ori %180, %185 : vector<27x1xi1>
    %cst_178 = arith.constant 1.000000e+00 : f32
    %cst_179 = arith.constant 0.000000e+00 : f32
    %187 = vector.broadcast %cst_178 : f32 to vector<27x1xf32>
    %188 = vector.broadcast %cst_179 : f32 to vector<27x1xf32>
    %189 = arith.select %186, %187, %188 : vector<27x1xi1>, vector<27x1xf32>
    %190 = vector.broadcast %189 : vector<27x1xf32> to vector<27x256xf32>
    %191 = arith.mulf %171, %190 : vector<27x256xf32>
    %cst_180 = arith.constant dense<0.000000e+00> : vector<256xf32>
    %192 = vector.multi_reduction <add>, %191, %cst_180 [0] : vector<27x256xf32> to vector<256xf32>
    %193 = vector.shape_cast %192 : vector<256xf32> to vector<1x256xf32>
    %cst_181 = arith.constant 0.111111112 : f32
    %194 = vector.broadcast %cst_181 : f32 to vector<1x256xf32>
    %195 = arith.mulf %193, %194 : vector<1x256xf32>
    %c0_182 = arith.constant 0 : index
    %c0_183 = arith.constant 0 : index
    %c0_184 = arith.constant 0 : index
    %196 = vector.load %arg10[%c0_182, %c0_183, %c0_184] : memref<1x1x256xf32, #tpu.memory_space<vmem>>, vector<1x1x256xf32>
    %197 = vector.shape_cast %196 : vector<1x1x256xf32> to vector<1x256xf32>
    %198 = vector.shape_cast %195 : vector<1x256xf32> to vector<1x1x256xf32>
    tpu.vector_store %arg10[%c0_182, %c0_183, %c0_184], %198 {strides = array<i32>} : memref<1x1x256xf32, #tpu.memory_space<vmem>>, vector<1x1x256xf32>,
    return
  }
  func.func @transform_0(%arg0: i32) -> (i32, i32, i32) {
    %c0_i32 = arith.constant 0 : i32
    %c0_i32_0 = arith.constant 0 : i32
    %c0_i32_1 = arith.constant 0 : i32
    return %arg0, %c0_i32, %c0_i32_0 : i32, i32, i32
  }
  func.func @transform_1(%arg0: i32) -> (i32, i32, i32) {
    %c0_i32 = arith.constant 0 : i32
    %c0_i32_0 = arith.constant 0 : i32
    %c0_i32_1 = arith.constant 0 : i32
    %c0_i32_2 = arith.constant 0 : i32
    return %c0_i32, %c0_i32_0, %c0_i32_1 : i32, i32, i32
  }
  func.func @transform_2(%arg0: i32) -> (i32, i32) {
    %c0_i32 = arith.constant 0 : i32
    %c0_i32_0 = arith.constant 0 : i32
    %c0_i32_1 = arith.constant 0 : i32
    return %c0_i32, %c0_i32_0 : i32, i32
  }
  func.func @transform_3(%arg0: i32) -> (i32, i32, i32) {
    %c0_i32 = arith.constant 0 : i32
    %c0_i32_0 = arith.constant 0 : i32
    %c0_i32_1 = arith.constant 0 : i32
    %c0_i32_2 = arith.constant 0 : i32
    return %c0_i32, %c0_i32_0, %c0_i32_1 : i32, i32, i32
  }
  func.func @transform_4(%arg0: i32) -> (i32, i32) {
    %c0_i32 = arith.constant 0 : i32
    %c0_i32_0 = arith.constant 0 : i32
    %c0_i32_1 = arith.constant 0 : i32
    return %c0_i32, %c0_i32_0 : i32, i32
  }
  func.func @transform_5(%arg0: i32) -> (i32, i32, i32) {
    %c0_i32 = arith.constant 0 : i32
    %c0_i32_0 = arith.constant 0 : i32
    %c0_i32_1 = arith.constant 0 : i32
    %c0_i32_2 = arith.constant 0 : i32
    return %c0_i32, %c0_i32_0, %c0_i32_1 : i32, i32, i32
  }
  func.func @transform_6(%arg0: i32) -> (i32, i32) {
    %c0_i32 = arith.constant 0 : i32
    %c0_i32_0 = arith.constant 0 : i32
    %c0_i32_1 = arith.constant 0 : i32
    return %c0_i32, %c0_i32_0 : i32, i32
  }
  func.func @transform_7(%arg0: i32) -> (i32, i32) {
    %c0_i32 = arith.constant 0 : i32
    %c0_i32_0 = arith.constant 0 : i32
    %c0_i32_1 = arith.constant 0 : i32
    return %c0_i32, %c0_i32_0 : i32, i32
  }
  func.func @transform_8(%arg0: i32) -> (i32, i32) {
    %c0_i32 = arith.constant 0 : i32
    %c0_i32_0 = arith.constant 0 : i32
    %c0_i32_1 = arith.constant 0 : i32
    return %c0_i32, %c0_i32_0 : i32, i32
  }
  func.func @transform_9(%arg0: i32) -> (i32, i32, i32) {
    %c0_i32 = arith.constant 0 : i32
    %c0_i32_0 = arith.constant 0 : i32
    %c0_i32_1 = arith.constant 0 : i32
    return %arg0, %c0_i32, %c0_i32_0 : i32, i32, i32
  }
}

</mosaic_0001>

<llo_original>
// kernel: cnn2d_encoder_forward.1
$region0: #{cnn2d_encoder_forward.1}
  #allocation0 [shape = 'u32[]', space=smem, size = 0x4, offset = 0x4, fixed_abs, tag = 'smem constant byte address 0x4 - core index']
  #allocation1 [shape = 'u32[144,128]{1,0:T(1,128)}', space=vmem, size = 0x12000, scoped, tag = 'internal scratch']
  #allocation2 [shape = 'bf16[65,128]{1,0:T(8,128)(2,1)}', space=vmem, size = 0x4800, scoped, tag = 'scratch operand']
  #allocation3 [shape = 'bf16[47,256]{1,0:T(8,128)(2,1)}', space=vmem, size = 0x6000, scoped, tag = 'scratch operand']
  %s0 = inlined_call_operand.vmem [shape: bf16[2,83,4], index: 0, kind: input, shape index: {}]
  %s1 = inlined_call_operand.hbm [shape: bf16[9,4,128], index: 1, kind: input, shape index: {}]
  %s2 = inlined_call_operand.hbm [shape: f32[1,128], index: 2, kind: input, shape index: {}]
  %s3 = inlined_call_operand.hbm [shape: bf16[9,128,256], index: 3, kind: input, shape index: {}]
  %s4 = inlined_call_operand.hbm [shape: f32[1,256], index: 4, kind: input, shape index: {}]
  %s5 = inlined_call_operand.hbm [shape: bf16[9,256,256], index: 5, kind: input, shape index: {}]
  %s6 = inlined_call_operand.hbm [shape: f32[1,256], index: 6, kind: input, shape index: {}]
  %s7 = inlined_call_operand.hbm [shape: bf16[256,256], index: 7, kind: input, shape index: {}]
  %s8 = inlined_call_operand.hbm [shape: f32[1,256], index: 8, kind: input, shape index: {}]
  %s9 = inlined_call_operand.vmem [shape: f32[2,1,256], index: 9, kind: output, shape index: {}]
  %s10 = sld [smem:[#allocation0]]
  $region101: #{cnn2d_encoder_forward.1} parent=0
    _
  %s12 = ssub.s32 1, %s10
  %s13 = scalar_select 0, %s12, %s10
  $region1: #{cnn2d_encoder_forward.1} parent=0
    #allocation4 [shape = 'u8[9216]{0}', space=vmem, size = 0x2400, scoped, tag = 'input window, operand 1, single buffered']
    #allocation5 [shape = 's32[2]{0}', space=sflag, size = 0x8, scoped, tag = 'scoped memory for cnn2d_encoder_forward.1']
    #allocation6 [shape = 'u8[512]{0}', space=vmem, size = 0x400, scoped, tag = 'input window, operand 2, single buffered']
    #allocation7 [shape = 's32[1]{0}', space=sflag, size = 0x4, scoped, tag = 'scoped memory for cnn2d_encoder_forward.1']
    #allocation8 [shape = 'u8[589824]{0}', space=vmem, size = 0x90000, scoped, tag = 'input window, operand 3, single buffered']
    #allocation9 [shape = 'u8[1024]{0}', space=vmem, size = 0x400, scoped, tag = 'input window, operand 4, single buffered']
    #allocation10 [shape = 's32[1]{0}', space=sflag, size = 0x4, scoped, tag = 'scoped memory for cnn2d_encoder_forward.1']
    #allocation11 [shape = 'u8[1179648]{0}', space=vmem, size = 0x120000, scoped, tag = 'input window, operand 5, single buffered']
    #allocation12 [shape = 'u8[1024]{0}', space=vmem, size = 0x400, scoped, tag = 'input window, operand 6, single buffered']
    #allocation13 [shape = 's32[1]{0}', space=sflag, size = 0x4, scoped, tag = 'scoped memory for cnn2d_encoder_forward.1']
    #allocation14 [shape = 'u8[131072]{0}', space=vmem, size = 0x20000, scoped, tag = 'input window, operand 7, single buffered']
    #allocation15 [shape = 'u8[1024]{0}', space=vmem, size = 0x400, scoped, tag = 'input window, operand 8, single buffered']
    #allocation16 [shape = 's32[1]{0}', space=sflag, size = 0x4, scoped, tag = 'scoped memory for cnn2d_encoder_forward.1']
    %14 = vsyncpa [#allocation5], 0
    %15 = vsyncpa [#allocation7], 0
    %16 = vsyncpa [#allocation10], 0
    %17 = vsyncpa [#allocation13], 0
    %18 = vsyncpa [#allocation16], 0
    loop: start=0, step=1, limit=4
    $region2: #{cnn2d_encoder_forward.1} parent=1 // loop_pre_header
      _
    $region3: #{cnn2d_encoder_forward.1} parent=1 // loop_header
      %s20 = sphi 0, %s24
      %p21 = scmp.ge.s32.totalorder %s20, 4
      %s30 = sphi 0, %s32
      %s33 = sphi 0, %s30
      %s34 = sphi 0, %s33
      %s50 = sphi 0, %s34
      %s54 = sphi 0, %s54
      %s56 = sphi 0, %s54
      %s57 = sphi 0, %s56
      %s71 = sphi 0, %s57
      %s75 = sphi 0, %s75
      %s77 = sphi 0, %s75
      %s78 = sphi 0, %s77
      %s92 = sphi 0, %s78
      %s96 = sphi 0, %s96
      %s98 = sphi 0, %s96
      %s99 = sphi 0, %s98
      %s113 = sphi 0, %s99
      %s117 = sphi 0, %s117
      %s119 = sphi 0, %s117
      %s120 = sphi 0, %s119
      %s134 = sphi 0, %s120
      %s138 = sphi 0, %s138
      %s140 = sphi 0, %s138
      %s141 = sphi 0, %s140
      %s155 = sphi 0, %s141
      %s159 = sphi 0, %s159
      %s161 = sphi 0, %s159
      %s162 = sphi 0, %s161
      %s176 = sphi 0, %s162
      %s180 = sphi 0, %s180
      %s182 = sphi 0, %s180
      %s183 = sphi 0, %s182
      %s197 = sphi 0, %s183
      %s201 = sphi 0, %s201
      %s203 = sphi 0, %s201
      %s204 = sphi 0, %s203
      %s218 = sphi 0, %s204
      %s224 = sphi 0, %s226
      %s227 = sphi 0, %s224
      %s228 = sphi 0, %s227
      %s244 = sphi 0, %s228
    $region4: #{cnn2d_encoder_forward.1} parent=1 // loop_header_branch
      %23 = sbr.rel (%p21) target = $region8
    $region5: #{cnn2d_encoder_forward.1} parent=1 // loop_body
      %s25 = ssub.s32 %s20, 1
      %s26 = ssub.s32 %s20, 2
      %s27 = sadd.s32 %s20, 1
      %s28 = ssub.s32 %s20, %s27
      %p29 = scmp.eq.s32.totalorder %s28, 0
      %s31 = sadd.s32 %s30, 1
      %s32 = scalar_select %p29, %s30, %s31
      %p35 = pneg %p29
      %p36 = scmp.eq.s32.totalorder %s20, 1
      %p37 = por %p35, %p36
      %p38 = scmp.ne.s32.totalorder %s30, %s33
      %p39 = scmp.eq.s32.totalorder %s20, 0
      %p40 = por %p38, %p39
      %p41 = scmp.ne.s32.totalorder %s30, %s33
      %p42 = scmp.eq.s32.totalorder %s25, 1
      %p43 = por %p41, %p42
      %p44 = scmp.ne.s32.totalorder %s33, %s34
      %p45 = scmp.eq.s32.totalorder %s25, 0
      %p46 = por %p44, %p45
      %p47 = scmp.ne.s32.totalorder %s33, %s34
      %p48 = scmp.eq.s32.totalorder %s26, 1
      %p49 = por %p47, %p48
      %p51 = scmp.ne.s32.totalorder %s34, %s50
      %p52 = scmp.eq.s32.totalorder %s26, 0
      %p53 = por %p51, %p52
      %s55 = sadd.s32 %s54, 1
      %p58 = scmp.eq.s32.totalorder %s20, 1
      %p59 = scmp.ne.s32.totalorder %s54, %s56
      %p60 = scmp.eq.s32.totalorder %s20, 0
      %p61 = por %p59, %p60
      %p62 = scmp.ne.s32.totalorder %s54, %s56
      %p63 = scmp.eq.s32.totalorder %s25, 1
      %p64 = por %p62, %p63
      %p65 = scmp.ne.s32.totalorder %s56, %s57
      %p66 = scmp.eq.s32.totalorder %s25, 0
      %p67 = por %p65, %p66
      %p68 = scmp.ne.s32.totalorder %s56, %s57
      %p69 = scmp.eq.s32.totalorder %s26, 1
      %p70 = por %p68, %p69
      %p72 = scmp.ne.s32.totalorder %s57, %s71
      %p73 = scmp.eq.s32.totalorder %s26, 0
      %p74 = por %p72, %p73
      %s76 = sadd.s32 %s75, 1
      %p79 = scmp.eq.s32.totalorder %s20, 1
      %p80 = scmp.ne.s32.totalorder %s75, %s77
      %p81 = scmp.eq.s32.totalorder %s20, 0
      %p82 = por %p80, %p81
      %p83 = scmp.ne.s32.totalorder %s75, %s77
      %p84 = scmp.eq.s32.totalorder %s25, 1
      %p85 = por %p83, %p84
      %p86 = scmp.ne.s32.totalorder %s77, %s78
      %p87 = scmp.eq.s32.totalorder %s25, 0
      %p88 = por %p86, %p87
      %p89 = scmp.ne.s32.totalorder %s77, %s78
      %p90 = scmp.eq.s32.totalorder %s26, 1
      %p91 = por %p89, %p90
      %p93 = scmp.ne.s32.totalorder %s78, %s92
      %p94 = scmp.eq.s32.totalorder %s26, 0
      %p95 = por %p93, %p94
      %s97 = sadd.s32 %s96, 1
      %p100 = scmp.eq.s32.totalorder %s20, 1
      %p101 = scmp.ne.s32.totalorder %s96, %s98
      %p102 = scmp.eq.s32.totalorder %s20, 0
      %p103 = por %p101, %p102
      %p104 = scmp.ne.s32.totalorder %s96, %s98
      %p105 = scmp.eq.s32.totalorder %s25, 1
      %p106 = por %p104, %p105
      %p107 = scmp.ne.s32.totalorder %s98, %s99
      %p108 = scmp.eq.s32.totalorder %s25, 0
      %p109 = por %p107, %p108
      %p110 = scmp.ne.s32.totalorder %s98, %s99
      %p111 = scmp.eq.s32.totalorder %s26, 1
      %p112 = por %p110, %p111
      %p114 = scmp.ne.s32.totalorder %s99, %s113
      %p115 = scmp.eq.s32.totalorder %s26, 0
      %p116 = por %p114, %p115
      %s118 = sadd.s32 %s117, 1
      %p121 = scmp.eq.s32.totalorder %s20, 1
      %p122 = scmp.ne.s32.totalorder %s117, %s119
      %p123 = scmp.eq.s32.totalorder %s20, 0
      %p124 = por %p122, %p123
      %p125 = scmp.ne.s32.totalorder %s117, %s119
      %p126 = scmp.eq.s32.totalorder %s25, 1
      %p127 = por %p125, %p126
      %p128 = scmp.ne.s32.totalorder %s119, %s120
      %p129 = scmp.eq.s32.totalorder %s25, 0
      %p130 = por %p128, %p129
      %p131 = scmp.ne.s32.totalorder %s119, %s120
      %p132 = scmp.eq.s32.totalorder %s26, 1
      %p133 = por %p131, %p132
      %p135 = scmp.ne.s32.totalorder %s120, %s134
      %p136 = scmp.eq.s32.totalorder %s26, 0
      %p137 = por %p135, %p136
      %s139 = sadd.s32 %s138, 1
      %p142 = scmp.eq.s32.totalorder %s20, 1
      %p143 = scmp.ne.s32.totalorder %s138, %s140
      %p144 = scmp.eq.s32.totalorder %s20, 0
      %p145 = por %p143, %p144
      %p146 = scmp.ne.s32.totalorder %s138, %s140
      %p147 = scmp.eq.s32.totalorder %s25, 1
      %p148 = por %p146, %p147
      %p149 = scmp.ne.s32.totalorder %s140, %s141
      %p150 = scmp.eq.s32.totalorder %s25, 0
      %p151 = por %p149, %p150
      %p152 = scmp.ne.s32.totalorder %s140, %s141
      %p153 = scmp.eq.s32.totalorder %s26, 1
      %p154 = por %p152, %p153
      %p156 = scmp.ne.s32.totalorder %s141, %s155
      %p157 = scmp.eq.s32.totalorder %s26, 0
      %p158 = por %p156, %p157
      %s160 = sadd.s32 %s159, 1
      %p163 = scmp.eq.s32.totalorder %s20, 1
      %p164 = scmp.ne.s32.totalorder %s159, %s161
      %p165 = scmp.eq.s32.totalorder %s20, 0
      %p166 = por %p164, %p165
      %p167 = scmp.ne.s32.totalorder %s159, %s161
      %p168 = scmp.eq.s32.totalorder %s25, 1
      %p169 = por %p167, %p168
      %p170 = scmp.ne.s32.totalorder %s161, %s162
      %p171 = scmp.eq.s32.totalorder %s25, 0
      %p172 = por %p170, %p171
      %p173 = scmp.ne.s32.totalorder %s161, %s162
      %p174 = scmp.eq.s32.totalorder %s26, 1
      %p175 = por %p173, %p174
      %p177 = scmp.ne.s32.totalorder %s162, %s176
      %p178 = scmp.eq.s32.totalorder %s26, 0
      %p179 = por %p177, %p178
      %s181 = sadd.s32 %s180, 1
      %p184 = scmp.eq.s32.totalorder %s20, 1
      %p185 = scmp.ne.s32.totalorder %s180, %s182
      %p186 = scmp.eq.s32.totalorder %s20, 0
      %p187 = por %p185, %p186
      %p188 = scmp.ne.s32.totalorder %s180, %s182
      %p189 = scmp.eq.s32.totalorder %s25, 1
      %p190 = por %p188, %p189
      %p191 = scmp.ne.s32.totalorder %s182, %s183
      %p192 = scmp.eq.s32.totalorder %s25, 0
      %p193 = por %p191, %p192
      %p194 = scmp.ne.s32.totalorder %s182, %s183
      %p195 = scmp.eq.s32.totalorder %s26, 1
      %p196 = por %p194, %p195
      %p198 = scmp.ne.s32.totalorder %s183, %s197
      %p199 = scmp.eq.s32.totalorder %s26, 0
      %p200 = por %p198, %p199
      %s202 = sadd.s32 %s201, 1
      %p205 = scmp.eq.s32.totalorder %s20, 1
      %p206 = scmp.ne.s32.totalorder %s201, %s203
      %p207 = scmp.eq.s32.totalorder %s20, 0
      %p208 = por %p206, %p207
      %p209 = scmp.ne.s32.totalorder %s201, %s203
      %p210 = scmp.eq.s32.totalorder %s25, 1
      %p211 = por %p209, %p210
      %p212 = scmp.ne.s32.totalorder %s203, %s204
      %p213 = scmp.eq.s32.totalorder %s25, 0
      %p214 = por %p212, %p213
      %p215 = scmp.ne.s32.totalorder %s203, %s204
      %p216 = scmp.eq.s32.totalorder %s26, 1
      %p217 = por %p215, %p216
      %p219 = scmp.ne.s32.totalorder %s204, %s218
      %p220 = scmp.eq.s32.totalorder %s26, 0
      %p221 = por %p219, %p220
      %s222 = ssub.s32 %s20, %s27
      %p223 = scmp.eq.s32.totalorder %s222, 0
      %s225 = sadd.s32 %s224, 1
      %s226 = scalar_select %p223, %s224, %s225
      %p229 = pneg %p223
      %p230 = scmp.eq.s32.totalorder %s20, 1
      %p231 = por %p229, %p230
      %p232 = scmp.ne.s32.totalorder %s224, %s227
      %p233 = scmp.eq.s32.totalorder %s20, 0
      %p234 = por %p232, %p233
      %p235 = scmp.ne.s32.totalorder %s224, %s227
      %p236 = scmp.eq.s32.totalorder %s25, 1
      %p237 = por %p235, %p236
      %p238 = scmp.ne.s32.totalorder %s227, %s228
      %p239 = scmp.eq.s32.totalorder %s25, 0
      %p240 = por %p238, %p239
      %p241 = scmp.ne.s32.totalorder %s227, %s228
      %p242 = scmp.eq.s32.totalorder %s26, 1
      %p243 = por %p241, %p242
      %p245 = scmp.ne.s32.totalorder %s228, %s244
      %p246 = scmp.eq.s32.totalorder %s26, 0
      %p247 = por %p245, %p246
      %p248 = scmp.le.s32.totalorder 1, %s20
      %p249 = scmp.lt.s32.totalorder %s20, 3
      %p250 = pnand %p248, %p249
      %p251 = pneg %p250
      // Predicated region
      $region9: #{cnn2d_encoder_forward.1} parent=5 // pred_check
        _
      $region10: #{cnn2d_encoder_forward.1} parent=5 // pred_check_branch
        %253 = sbr.rel (%p250) target = $region12
      $region11: #{cnn2d_encoder_forward.1} parent=5 // pred_region
        %s254 = ssub.s32 %s20, 1
        // Predicated region
        $region13: #{cnn2d_encoder_forward.1} parent=11 // pred_check
          %p255 = pneg %p67
        $region14: #{cnn2d_encoder_forward.1} parent=11 // pred_check_branch
          %257 = sbr.rel (%p255) target = $region16
        $region15: #{cnn2d_encoder_forward.1} parent=11 // pred_region
          %s259 = ssub.s32 288, 288
          %260 = vsyncadd [#allocation5], %s259
          %s261 = sshll.u32 [#allocation4], 4
          %s262 = int_to_ptr.vmem [resolvable:$true] %s261
          %267 = dma.hbm_to_vmem [thread:$0]  %s1, 288, %s262, [#allocation5], 32, 32, 2
        $region16: #{cnn2d_encoder_forward.1} parent=11 // pred_fallthru
          _
        // Predicated region
        $region17: #{cnn2d_encoder_forward.1} parent=11 // pred_check
          %p268 = pneg %p88
        $region18: #{cnn2d_encoder_forward.1} parent=11 // pred_check_branch
          %270 = sbr.rel (%p268) target = $region20
        $region19: #{cnn2d_encoder_forward.1} parent=11 // pred_region
          %s272 = ssub.s32 16, 16
          %273 = vsyncadd [#allocation7], %s272
          %s275 = sshll.u32 [#allocation6], 4
          %s276 = int_to_ptr.vmem [resolvable:$true] %s275
          %278 = dma.hbm_to_vmem [thread:$0]  %s2, 16, %s276, [#allocation7]
        $region20: #{cnn2d_encoder_forward.1} parent=11 // pred_fallthru
          _
        // Predicated region
        $region21: #{cnn2d_encoder_forward.1} parent=11 // pred_check
          %p279 = pneg %p109
        $region22: #{cnn2d_encoder_forward.1} parent=11 // pred_check_branch
          %281 = sbr.rel (%p279) target = $region24
        $region23: #{cnn2d_encoder_forward.1} parent=11 // pred_region
          %s283 = ssub.s32 18432, 18432
          %284 = vsyncadd [#allocation7], %s283
          %s285 = sshll.u32 [#allocation8], 4
          %s286 = int_to_ptr.vmem [resolvable:$true] %s285
          %291 = dma.hbm_to_vmem [thread:$0]  %s3, 18432, %s286, [#allocation7], 128, 128, 8
        $region24: #{cnn2d_encoder_forward.1} parent=11 // pred_fallthru
          _
        // Predicated region
        $region25: #{cnn2d_encoder_forward.1} parent=11 // pred_check
          %p292 = pneg %p130
        $region26: #{cnn2d_encoder_forward.1} parent=11 // pred_check_branch
          %294 = sbr.rel (%p292) target = $region28
        $region27: #{cnn2d_encoder_forward.1} parent=11 // pred_region
          %s296 = ssub.s32 32, 32
          %297 = vsyncadd [#allocation10], %s296
          %s299 = sshll.u32 [#allocation9], 4
          %s300 = int_to_ptr.vmem [resolvable:$true] %s299
          %302 = dma.hbm_to_vmem [thread:$0]  %s4, 32, %s300, [#allocation10]
        $region28: #{cnn2d_encoder_forward.1} parent=11 // pred_fallthru
          _
        // Predicated region
        $region29: #{cnn2d_encoder_forward.1} parent=11 // pred_check
          %p303 = pneg %p151
        $region30: #{cnn2d_encoder_forward.1} parent=11 // pred_check_branch
          %305 = sbr.rel (%p303) target = $region32
        $region31: #{cnn2d_encoder_forward.1} parent=11 // pred_region
          %s307 = ssub.s32 36864, 36864
          %308 = vsyncadd [#allocation10], %s307
          %s309 = sshll.u32 [#allocation11], 4
          %s310 = int_to_ptr.vmem [resolvable:$true] %s309
          %315 = dma.hbm_to_vmem [thread:$0]  %s5, 36864, %s310, [#allocation10], 128, 128, 8
        $region32: #{cnn2d_encoder_forward.1} parent=11 // pred_fallthru
          _
        // Predicated region
        $region33: #{cnn2d_encoder_forward.1} parent=11 // pred_check
          %p316 = pneg %p172
        $region34: #{cnn2d_encoder_forward.1} parent=11 // pred_check_branch
          %318 = sbr.rel (%p316) target = $region36
        $region35: #{cnn2d_encoder_forward.1} parent=11 // pred_region
          %s320 = ssub.s32 32, 32
          %321 = vsyncadd [#allocation13], %s320
          %s323 = sshll.u32 [#allocation12], 4
          %s324 = int_to_ptr.vmem [resolvable:$true] %s323
          %326 = dma.hbm_to_vmem [thread:$0]  %s6, 32, %s324, [#allocation13]
        $region36: #{cnn2d_encoder_forward.1} parent=11 // pred_fallthru
          _
        // Predicated region
        $region37: #{cnn2d_encoder_forward.1} parent=11 // pred_check
          %p327 = pneg %p193
        $region38: #{cnn2d_encoder_forward.1} parent=11 // pred_check_branch
          %329 = sbr.rel (%p327) target = $region40
        $region39: #{cnn2d_encoder_forward.1} parent=11 // pred_region
          %s331 = ssub.s32 4096, 4096
          %332 = vsyncadd [#allocation13], %s331
          %s333 = sshll.u32 [#allocation14], 4
          %s334 = int_to_ptr.vmem [resolvable:$true] %s333
          %339 = dma.hbm_to_vmem [thread:$0]  %s7, 4096, %s334, [#allocation13], 128, 128, 8
        $region40: #{cnn2d_encoder_forward.1} parent=11 // pred_fallthru
          _
        // Predicated region
        $region41: #{cnn2d_encoder_forward.1} parent=11 // pred_check
          %p340 = pneg %p214
        $region42: #{cnn2d_encoder_forward.1} parent=11 // pred_check_branch
          %342 = sbr.rel (%p340) target = $region44
        $region43: #{cnn2d_encoder_forward.1} parent=11 // pred_region
          %s344 = ssub.s32 32, 32
          %345 = vsyncadd [#allocation16], %s344
          %s347 = sshll.u32 [#allocation15], 4
          %s348 = int_to_ptr.vmem [resolvable:$true] %s347
          %350 = dma.hbm_to_vmem [thread:$0]  %s8, 32, %s348, [#allocation16]
        $region44: #{cnn2d_encoder_forward.1} parent=11 // pred_fallthru
          _
      $region12: #{cnn2d_encoder_forward.1} parent=5 // pred_fallthru
        _
      %p351 = scmp.lt.s32.totalorder %s20, 2
      // Predicated region
      $region45: #{cnn2d_encoder_forward.1} parent=5 // pred_check
        %p352 = pneg %p351
      $region46: #{cnn2d_encoder_forward.1} parent=5 // pred_check_branch
        %354 = sbr.rel (%p352) target = $region48
      $region47: #{cnn2d_encoder_forward.1} parent=5 // pred_region
        // Predicated region
        $region49: #{cnn2d_encoder_forward.1} parent=47 // pred_check
          %p355 = pneg %p40
        $region50: #{cnn2d_encoder_forward.1} parent=47 // pred_check_branch
          %357 = sbr.rel (%p355) target = $region52
        $region51: #{cnn2d_encoder_forward.1} parent=47 // pred_region
          %p358 = scmp.lt.s32.totalorder %s20, 1
          %s359 = scalar_select %p358, %s20, 1
          %s360 = smul.addr %s359, 11
          %s361 = smul.addr %s360, 4
          %s362 = scalar_lea.vmem %s0, %s361
        $region52: #{cnn2d_encoder_forward.1} parent=47 // pred_fallthru
          _
      $region48: #{cnn2d_encoder_forward.1} parent=5 // pred_fallthru
        _
      %p363 = scmp.le.s32.totalorder 1, %s20
      %p364 = scmp.lt.s32.totalorder %s20, 3
      %p365 = pnand %p363, %p364
      %p366 = pneg %p365
      // Predicated region
      $region53: #{cnn2d_encoder_forward.1} parent=5 // pred_check
        _
      $region54: #{cnn2d_encoder_forward.1} parent=5 // pred_check_branch
        %368 = sbr.rel (%p365) target = $region56
      $region55: #{cnn2d_encoder_forward.1} parent=5 // pred_region
        %s369 = ssub.s32 %s20, 1
        // Predicated region
        $region57: #{cnn2d_encoder_forward.1} parent=55 // pred_check
          %p370 = pneg %p67
        $region58: #{cnn2d_encoder_forward.1} parent=55 // pred_check_branch
          %372 = sbr.rel (%p370) target = $region60
        $region59: #{cnn2d_encoder_forward.1} parent=55 // pred_region
          %373 = dma.done [#allocation5], 288
        $region60: #{cnn2d_encoder_forward.1} parent=55 // pred_fallthru
          _
        // Predicated region
        $region61: #{cnn2d_encoder_forward.1} parent=55 // pred_check
          %p374 = pneg %p88
        $region62: #{cnn2d_encoder_forward.1} parent=55 // pred_check_branch
          %376 = sbr.rel (%p374) target = $region64
        $region63: #{cnn2d_encoder_forward.1} parent=55 // pred_region
          %377 = dma.done [#allocation7], 16
        $region64: #{cnn2d_encoder_forward.1} parent=55 // pred_fallthru
          _
        // Predicated region
        $region65: #{cnn2d_encoder_forward.1} parent=55 // pred_check
          %p378 = pneg %p109
        $region66: #{cnn2d_encoder_forward.1} parent=55 // pred_check_branch
          %380 = sbr.rel (%p378) target = $region68
        $region67: #{cnn2d_encoder_forward.1} parent=55 // pred_region
          %381 = dma.done [#allocation7], 18432
        $region68: #{cnn2d_encoder_forward.1} parent=55 // pred_fallthru
          _
        // Predicated region
        $region69: #{cnn2d_encoder_forward.1} parent=55 // pred_check
          %p382 = pneg %p130
        $region70: #{cnn2d_encoder_forward.1} parent=55 // pred_check_branch
          %384 = sbr.rel (%p382) target = $region72
        $region71: #{cnn2d_encoder_forward.1} parent=55 // pred_region
          %385 = dma.done [#allocation10], 32
        $region72: #{cnn2d_encoder_forward.1} parent=55 // pred_fallthru
          _
        // Predicated region
        $region73: #{cnn2d_encoder_forward.1} parent=55 // pred_check
          %p386 = pneg %p151
        $region74: #{cnn2d_encoder_forward.1} parent=55 // pred_check_branch
          %388 = sbr.rel (%p386) target = $region76
        $region75: #{cnn2d_encoder_forward.1} parent=55 // pred_region
          %389 = dma.done [#allocation10], 36864
        $region76: #{cnn2d_encoder_forward.1} parent=55 // pred_fallthru
          _
        // Predicated region
        $region77: #{cnn2d_encoder_forward.1} parent=55 // pred_check
          %p390 = pneg %p172
        $region78: #{cnn2d_encoder_forward.1} parent=55 // pred_check_branch
          %392 = sbr.rel (%p390) target = $region80
        $region79: #{cnn2d_encoder_forward.1} parent=55 // pred_region
          %393 = dma.done [#allocation13], 32
        $region80: #{cnn2d_encoder_forward.1} parent=55 // pred_fallthru
          _
        // Predicated region
        $region81: #{cnn2d_encoder_forward.1} parent=55 // pred_check
          %p394 = pneg %p193
        $region82: #{cnn2d_encoder_forward.1} parent=55 // pred_check_branch
          %396 = sbr.rel (%p394) target = $region84
        $region83: #{cnn2d_encoder_forward.1} parent=55 // pred_region
          %397 = dma.done [#allocation13], 4096
        $region84: #{cnn2d_encoder_forward.1} parent=55 // pred_fallthru
          _
        // Predicated region
        $region85: #{cnn2d_encoder_forward.1} parent=55 // pred_check
          %p398 = pneg %p214
        $region86: #{cnn2d_encoder_forward.1} parent=55 // pred_check_branch
          %400 = sbr.rel (%p398) target = $region88
        $region87: #{cnn2d_encoder_forward.1} parent=55 // pred_region
          %401 = dma.done [#allocation16], 32
        $region88: #{cnn2d_encoder_forward.1} parent=55 // pred_fallthru
          _
        %p402 = scmp.lt.s32.totalorder %s25, 1
        %s403 = scalar_select %p402, %s25, 1
        %s404 = smul.addr %s403, 11
        %s405 = smul.addr %s404, 4
        %s406 = scalar_lea.vmem %s0, %s405
        %p407 = pneg %p46
        %p408 = pneg %p43
        %p409 = pneg %p67
        %p410 = pneg %p64
        %p411 = pneg %p88
        %p412 = pneg %p85
        %p413 = pneg %p109
        %p414 = pneg %p106
        %p415 = pneg %p130
        %p416 = pneg %p127
        %p417 = pneg %p151
        %p418 = pneg %p148
        %p419 = pneg %p172
        %p420 = pneg %p169
        %p421 = pneg %p193
        %p422 = pneg %p190
        %p423 = pneg %p214
        %p424 = pneg %p211
        %p425 = pneg %p240
        %p426 = pneg %p237
        %p427 = scmp.lt.s32.totalorder %s25, 1
        %s428 = scalar_select %p427, %s25, 1
        %s429 = smul.addr %s428, 2
        %s430 = scalar_lea.vmem %s9, %s429
        %p431 = scmp.lt.s32.totalorder %s25, 1
        %s432 = scalar_select %p431, %s25, 1
        %s433 = smul.addr %s432, 11
        %s434 = smul.addr %s433, 4
        %s435 = scalar_lea.vmem %s0, %s434
        %p436 = scmp.lt.s32.totalorder %s25, 1
        %s437 = scalar_select %p436, %s25, 1
        %s438 = smul.addr %s437, 2
        %s439 = scalar_lea.vmem %s9, %s438
        %v441 = vld [vmem:[%s435] sm:$0xf]
        %v442 = vld [vmem:[%s435 + $0x4] sm:$0xf]
        %v443 = vld [vmem:[%s435 + $0x8] sm:$0xf]
        %v444 = vld [vmem:[%s435 + $0xc] sm:$0xf]
        %v445 = vld [vmem:[%s435 + $0x10] sm:$0xf]
        %v446 = vld [vmem:[%s435 + $0x14] sm:$0xf]
        %v447 = vld [vmem:[%s435 + $0x18] sm:$0xf]
        %v448 = vld [vmem:[%s435 + $0x1c] sm:$0xf]
        %v449 = vld [vmem:[#allocation4] sm:$0x3]
        %s450 = scalar_lea.vmem [#allocation4], 2
        %v451 = vld [vmem:[%s450] sm:$0x3]
        %v460 = vunpack.c.l.b16 %v441
        %v461 = vunpack.c.l.b16 %v442
        %v462 = vunpack.c.l.b16 %v443
        %v463 = vunpack.c.l.b16 %v444
        %v464 = vunpack.c.l.b16 %v445
        %v465 = vunpack.c.l.b16 %v446
        %v466 = vunpack.c.l.b16 %v447
        %v467 = vunpack.c.l.b16 %v448
        %v468 = vpack.c.b16 %v461, %v460
        %v469 = vpack.c.b16 %v463, %v462
        %v470 = vpack.c.b16 %v465, %v464
        %v471 = vpack.c.b16 %v467, %v466
        %vm472 = vsmask.f32 7424
        %v474 = vshrl.u32 %v468, 16
        %v476 = vshll.u32 %v468, 16
        %v478 = vrot.slane %v476, 1
        %v479 = vor.u32 %v474, %v478
        %v481 = vshll.u32 %v469, 16
        %v483 = vrot.slane %v481, 1
        %v484 = vsel %vm472, %v479, %v483
        %v485 = vshrl.u32 %v469, 16
        %v487 = vor.u32 %v485, %v483
        %v489 = vshll.u32 %v470, 16
        %v491 = vrot.slane %v489, 1
        %v492 = vsel %vm472, %v487, %v491
        %v493 = vshrl.u32 %v470, 16
        %v495 = vor.u32 %v493, %v491
        %v497 = vshll.u32 %v471, 16
        %v499 = vrot.slane %v497, 1
        %v500 = vsel %vm472, %v495, %v499
        %v501 = vshrl.u32 %v471, 16
        %v503 = vor.u32 %v501, %v499
        %vm504 = vcmask 31744
        %v506 = vsel %vm504, %v484, 0
        %v509 = vsel %vm504, %v492, 0
        %v512 = vsel %vm504, %v500, 0
        %v515 = vsel %vm504, %v503, 0
        %vm517 = vcmask 1041408
        %v519 = vsel %vm517, %v451, 0
        %521 = vmatprep.subr.bf16.mxu0 0
        %522 = vmatpush1.bf16.msra.mxu0 0
        %523 = vmatprep.subr.bf16.mxu0 0
        %524 = vmatpush1.bf16.msra.mxu0 0
        %525 = vmatprep.subr.bf16.mxu0 0
        %526 = vmatpush1.bf16.msra.mxu0 0
        %527 = vmatprep.subr.bf16.mxu0 0
        %528 = vmatpush1.bf16.msra.mxu0 0
        %529 = vmatprep.subr.bf16.mxu0 0
        %530 = vmatpush1.bf16.msra.mxu0 0
        %531 = vmatprep.subr.bf16.mxu0 0
        %532 = vmatpush1.bf16.msra.mxu0 0
        %533 = vmatprep.subr.bf16.mxu0 0
        %534 = vmatpush1.bf16.msra.mxu0 0
        %535 = vmatprep.subr.bf16.mxu0 0
        %536 = vmatpush1.bf16.msra.mxu0 %v519
        %537 = vmatprep.subr.bf16.mxu0 0
        %538 = vmatpush2.bf16.msra.mxu0 0
        %539 = vmatprep.subr.bf16.mxu0 0
        %540 = vmatpush2.bf16.msra.mxu0 0
        %541 = vmatprep.subr.bf16.mxu0 0
        %542 = vmatpush2.bf16.msra.mxu0 0
        %543 = vmatprep.subr.bf16.mxu0 0
        %544 = vmatpush2.bf16.msra.mxu0 0
        %545 = vmatprep.subr.bf16.mxu0 0
        %546 = vmatpush2.bf16.msra.mxu0 0
        %547 = vmatprep.subr.bf16.mxu0 0
        %548 = vmatpush2.bf16.msra.mxu0 0
        %549 = vmatprep.subr.bf16.mxu0 0
        %550 = vmatpush2.bf16.msra.mxu0 0
        %551 = vmatprep.subr.bf16.mxu0 0
        %552 = vmatpush2.bf16.msra.mxu0 0
        %553 = vmatprep.mubr.bf16.mxu0 0
        %554 = vmatmul.mubr.bf16.gmra.mxu0 %v506
        %v555 = vpop.f32.mrf.mxu0
        %v556 = vadd.f32 0.0, %v555
        %v557 = vpop.f32.mrf.mxu0
        %v558 = vpop.f32.mrf.mxu0
        %v559 = vadd.f32 0.0, %v558
        %v560 = vpop.f32.mrf.mxu0
        %561 = vmatprep.mubr.bf16.mxu0 0
        %562 = vmatmul.mubr.bf16.gmra.mxu0 %v509
        %v563 = vpop.f32.mrf.mxu0
        %v564 = vadd.f32 0.0, %v563
        %v565 = vpop.f32.mrf.mxu0
        %v566 = vpop.f32.mrf.mxu0
        %v567 = vadd.f32 0.0, %v566
        %v568 = vpop.f32.mrf.mxu0
        %569 = vmatprep.mubr.bf16.mxu0 0
        %570 = vmatmul.mubr.bf16.gmra.mxu0 %v512
        %v571 = vpop.f32.mrf.mxu0
        %v572 = vadd.f32 0.0, %v571
        %v573 = vpop.f32.mrf.mxu0
        %v574 = vpop.f32.mrf.mxu0
        %v575 = vadd.f32 0.0, %v574
        %v576 = vpop.f32.mrf.mxu0
        %577 = vmatprep.mubr.bf16.mxu0 0
        %578 = vmatmul.mubr.bf16.gmra.mxu0 %v515
        %v579 = vpop.f32.mrf.mxu0
        %v580 = vadd.f32 0.0, %v579
        %v581 = vpop.f32.mrf.mxu0
        %v582 = vpop.f32.mrf.mxu0
        %v583 = vadd.f32 0.0, %v582
        %v584 = vpop.f32.mrf.mxu0
        %585 = vdwg.mxu0
        %v586 = vsel %vm504, %v468, 0
        %v588 = vsel %vm504, %v469, 0
        %v590 = vsel %vm504, %v470, 0
        %v592 = vsel %vm504, %v471, 0
        %v595 = vsel %vm517, %v449, 0
        %597 = vmatprep.subr.bf16.mxu0 0
        %598 = vmatpush1.bf16.msra.mxu0 0
        %599 = vmatprep.subr.bf16.mxu0 0
        %600 = vmatpush1.bf16.msra.mxu0 0
        %601 = vmatprep.subr.bf16.mxu0 0
        %602 = vmatpush1.bf16.msra.mxu0 0
        %603 = vmatprep.subr.bf16.mxu0 0
        %604 = vmatpush1.bf16.msra.mxu0 0
        %605 = vmatprep.subr.bf16.mxu0 0
        %606 = vmatpush1.bf16.msra.mxu0 0
        %607 = vmatprep.subr.bf16.mxu0 0
        %608 = vmatpush1.bf16.msra.mxu0 0
        %609 = vmatprep.subr.bf16.mxu0 0
        %610 = vmatpush1.bf16.msra.mxu0 0
        %611 = vmatprep.subr.bf16.mxu0 0
        %612 = vmatpush1.bf16.msra.mxu0 %v595
        %613 = vmatprep.subr.bf16.mxu0 0
        %614 = vmatpush2.bf16.msra.mxu0 0
        %615 = vmatprep.subr.bf16.mxu0 0
        %616 = vmatpush2.bf16.msra.mxu0 0
        %617 = vmatprep.subr.bf16.mxu0 0
        %618 = vmatpush2.bf16.msra.mxu0 0
        %619 = vmatprep.subr.bf16.mxu0 0
        %620 = vmatpush2.bf16.msra.mxu0 0
        %621 = vmatprep.subr.bf16.mxu0 0
        %622 = vmatpush2.bf16.msra.mxu0 0
        %623 = vmatprep.subr.bf16.mxu0 0
        %624 = vmatpush2.bf16.msra.mxu0 0
        %625 = vmatprep.subr.bf16.mxu0 0
        %626 = vmatpush2.bf16.msra.mxu0 0
        %627 = vmatprep.subr.bf16.mxu0 0
        %628 = vmatpush2.bf16.msra.mxu0 0
        %629 = vmatprep.mubr.bf16.mxu0 0
        %630 = vmatmul.mubr.bf16.gmra.mxu0 %v586
        %v631 = vpop.f32.mrf.mxu0
        %v632 = vadd.f32 %v556, %v631
        %v633 = vpop.f32.mrf.mxu0
        %v634 = vpop.f32.mrf.mxu0
        %v635 = vadd.f32 %v559, %v634
        %v636 = vpop.f32.mrf.mxu0
        %637 = vmatprep.mubr.bf16.mxu0 0
        %638 = vmatmul.mubr.bf16.gmra.mxu0 %v588
        %v639 = vpop.f32.mrf.mxu0
        %v640 = vadd.f32 %v564, %v639
        %v641 = vpop.f32.mrf.mxu0
        %v642 = vpop.f32.mrf.mxu0
        %v643 = vadd.f32 %v567, %v642
        %v644 = vpop.f32.mrf.mxu0
        %645 = vmatprep.mubr.bf16.mxu0 0
        %646 = vmatmul.mubr.bf16.gmra.mxu0 %v590
        %v647 = vpop.f32.mrf.mxu0
        %v648 = vadd.f32 %v572, %v647
        %v649 = vpop.f32.mrf.mxu0
        %v650 = vpop.f32.mrf.mxu0
        %v651 = vadd.f32 %v575, %v650
        %v652 = vpop.f32.mrf.mxu0
        %653 = vmatprep.mubr.bf16.mxu0 0
        %654 = vmatmul.mubr.bf16.gmra.mxu0 %v592
        %v655 = vpop.f32.mrf.mxu0
        %v656 = vadd.f32 %v580, %v655
        %v657 = vpop.f32.mrf.mxu0
        %v658 = vpop.f32.mrf.mxu0
        %v659 = vadd.f32 %v583, %v658
        %v660 = vpop.f32.mrf.mxu0
        %661 = vdwg.mxu0
        %v662 = vld [vmem:[%s435] sm:$0xe]
        %v663 = vld [vmem:[%s435 + $0x4] sm:$0xf]
        %v664 = vld [vmem:[%s435 + $0x8] sm:$0xf]
        %v665 = vld [vmem:[%s435 + $0xc] sm:$0xf]
        %v666 = vld [vmem:[%s435 + $0x10] sm:$0xf]
        %v667 = vld [vmem:[%s435 + $0x14] sm:$0xf]
        %v668 = vld [vmem:[%s435 + $0x18] sm:$0xf]
        %v669 = vld [vmem:[%s435 + $0x1c] sm:$0xf]
        %v670 = vld [vmem:[%s435 + $0x20] sm:$0x1]
        %s671 = scalar_lea.vmem [#allocation4], 4
        %v672 = vld [vmem:[%s671] sm:$0x3]
        %v682 = vunpack.c.l.b16 %v662
        %v683 = vunpack.c.l.b16 %v663
        %v684 = vunpack.c.l.b16 %v664
        %v685 = vunpack.c.l.b16 %v665
        %v686 = vunpack.c.l.b16 %v666
        %v687 = vunpack.c.l.b16 %v667
        %v688 = vunpack.c.l.b16 %v668
        %v689 = vunpack.c.l.b16 %v669
        %v690 = vunpack.c.l.b16 %v670
        %v691 = vpack.c.b16 %v683, %v682
        %v692 = vpack.c.b16 %v685, %v684
        %v693 = vpack.c.b16 %v687, %v686
        %v694 = vpack.c.b16 %v689, %v688
        %v695 = vpack.c.b16 %v690, %v690
        %vm696 = vcmask 1046528
        %v697 = vrot.slane %v691, 1
        %v698 = vrot.slane %v692, 1
        %v699 = vsel %vm696, %v697, %v698
        %v700 = vrot.slane %v693, 1
        %v701 = vsel %vm696, %v698, %v700
        %v702 = vrot.slane %v694, 1
        %v703 = vsel %vm696, %v700, %v702
        %v704 = vrot.slane %v695, 1
        %v705 = vsel %vm696, %v702, %v704
        %v707 = vsel %vm504, %v699, 0
        %v710 = vsel %vm504, %v701, 0
        %v713 = vsel %vm504, %v703, 0
        %v716 = vsel %vm504, %v705, 0
        %v719 = vsel %vm517, %v672, 0
        %721 = vmatprep.subr.bf16.mxu0 0
        %722 = vmatpush1.bf16.msra.mxu0 0
        %723 = vmatprep.subr.bf16.mxu0 0
        %724 = vmatpush1.bf16.msra.mxu0 0
        %725 = vmatprep.subr.bf16.mxu0 0
        %726 = vmatpush1.bf16.msra.mxu0 0
        %727 = vmatprep.subr.bf16.mxu0 0
        %728 = vmatpush1.bf16.msra.mxu0 0
        %729 = vmatprep.subr.bf16.mxu0 0
        %730 = vmatpush1.bf16.msra.mxu0 0
        %731 = vmatprep.subr.bf16.mxu0 0
        %732 = vmatpush1.bf16.msra.mxu0 0
        %733 = vmatprep.subr.bf16.mxu0 0
        %734 = vmatpush1.bf16.msra.mxu0 0
        %735 = vmatprep.subr.bf16.mxu0 0
        %736 = vmatpush1.bf16.msra.mxu0 %v719
        %737 = vmatprep.subr.bf16.mxu0 0
        %738 = vmatpush2.bf16.msra.mxu0 0
        %739 = vmatprep.subr.bf16.mxu0 0
        %740 = vmatpush2.bf16.msra.mxu0 0
        %741 = vmatprep.subr.bf16.mxu0 0
        %742 = vmatpush2.bf16.msra.mxu0 0
        %743 = vmatprep.subr.bf16.mxu0 0
        %744 = vmatpush2.bf16.msra.mxu0 0
        %745 = vmatprep.subr.bf16.mxu0 0
        %746 = vmatpush2.bf16.msra.mxu0 0
        %747 = vmatprep.subr.bf16.mxu0 0
        %748 = vmatpush2.bf16.msra.mxu0 0
        %749 = vmatprep.subr.bf16.mxu0 0
        %750 = vmatpush2.bf16.msra.mxu0 0
        %751 = vmatprep.subr.bf16.mxu0 0
        %752 = vmatpush2.bf16.msra.mxu0 0
        %753 = vmatprep.mubr.bf16.mxu0 0
        %754 = vmatmul.mubr.bf16.gmra.mxu0 %v707
        %v755 = vpop.f32.mrf.mxu0
        %v756 = vadd.f32 0.0, %v755
        %v757 = vpop.f32.mrf.mxu0
        %v758 = vpop.f32.mrf.mxu0
        %v759 = vadd.f32 0.0, %v758
        %v760 = vpop.f32.mrf.mxu0
        %761 = vmatprep.mubr.bf16.mxu0 0
        %762 = vmatmul.mubr.bf16.gmra.mxu0 %v710
        %v763 = vpop.f32.mrf.mxu0
        %v764 = vadd.f32 0.0, %v763
        %v765 = vpop.f32.mrf.mxu0
        %v766 = vpop.f32.mrf.mxu0
        %v767 = vadd.f32 0.0, %v766
        %v768 = vpop.f32.mrf.mxu0
        %769 = vmatprep.mubr.bf16.mxu0 0
        %770 = vmatmul.mubr.bf16.gmra.mxu0 %v713
        %v771 = vpop.f32.mrf.mxu0
        %v772 = vadd.f32 0.0, %v771
        %v773 = vpop.f32.mrf.mxu0
        %v774 = vpop.f32.mrf.mxu0
        %v775 = vadd.f32 0.0, %v774
        %v776 = vpop.f32.mrf.mxu0
        %777 = vmatprep.mubr.bf16.mxu0 0
        %778 = vmatmul.mubr.bf16.gmra.mxu0 %v716
        %v779 = vpop.f32.mrf.mxu0
        %v780 = vadd.f32 0.0, %v779
        %v781 = vpop.f32.mrf.mxu0
        %v782 = vpop.f32.mrf.mxu0
        %v783 = vadd.f32 0.0, %v782
        %v784 = vpop.f32.mrf.mxu0
        %785 = vdwg.mxu0
        %v786 = vadd.f32 %v632, %v756
        %v787 = vadd.f32 %v635, %v759
        %v788 = vadd.f32 %v640, %v764
        %v789 = vadd.f32 %v643, %v767
        %v790 = vadd.f32 %v648, %v772
        %v791 = vadd.f32 %v651, %v775
        %v792 = vadd.f32 %v656, %v780
        %v793 = vadd.f32 %v659, %v783
        %v794 = vld [vmem:[%s435 + $0x20] sm:$0xf]
        %s795 = scalar_lea.vmem [#allocation4], 6
        %v796 = vld [vmem:[%s795] sm:$0x3]
        %v798 = vunpack.c.l.b16 %v794
        %v799 = vpack.c.b16 %v684, %v683
        %v800 = vpack.c.b16 %v686, %v685
        %v801 = vpack.c.b16 %v688, %v687
        %v802 = vpack.c.b16 %v798, %v689
        %v804 = vshrl.u32 %v799, 16
        %v806 = vshll.u32 %v799, 16
        %v808 = vrot.slane %v806, 1
        %v809 = vor.u32 %v804, %v808
        %v811 = vshll.u32 %v800, 16
        %v813 = vrot.slane %v811, 1
        %v814 = vsel %vm472, %v809, %v813
        %v815 = vshrl.u32 %v800, 16
        %v817 = vor.u32 %v815, %v813
        %v819 = vshll.u32 %v801, 16
        %v821 = vrot.slane %v819, 1
        %v822 = vsel %vm472, %v817, %v821
        %v823 = vshrl.u32 %v801, 16
        %v825 = vor.u32 %v823, %v821
        %v827 = vshll.u32 %v802, 16
        %v829 = vrot.slane %v827, 1
        %v830 = vsel %vm472, %v825, %v829
        %v831 = vshrl.u32 %v802, 16
        %v833 = vor.u32 %v831, %v829
        %v835 = vsel %vm504, %v814, 0
        %v838 = vsel %vm504, %v822, 0
        %v841 = vsel %vm504, %v830, 0
        %v844 = vsel %vm504, %v833, 0
        %v847 = vsel %vm517, %v796, 0
        %849 = vmatprep.subr.bf16.mxu0 0
        %850 = vmatpush1.bf16.msra.mxu0 0
        %851 = vmatprep.subr.bf16.mxu0 0
        %852 = vmatpush1.bf16.msra.mxu0 0
        %853 = vmatprep.subr.bf16.mxu0 0
        %854 = vmatpush1.bf16.msra.mxu0 0
        %855 = vmatprep.subr.bf16.mxu0 0
        %856 = vmatpush1.bf16.msra.mxu0 0
        %857 = vmatprep.subr.bf16.mxu0 0
        %858 = vmatpush1.bf16.msra.mxu0 0
        %859 = vmatprep.subr.bf16.mxu0 0
        %860 = vmatpush1.bf16.msra.mxu0 0
        %861 = vmatprep.subr.bf16.mxu0 0
        %862 = vmatpush1.bf16.msra.mxu0 0
        %863 = vmatprep.subr.bf16.mxu0 0
        %864 = vmatpush1.bf16.msra.mxu0 %v847
        %865 = vmatprep.subr.bf16.mxu0 0
        %866 = vmatpush2.bf16.msra.mxu0 0
        %867 = vmatprep.subr.bf16.mxu0 0
        %868 = vmatpush2.bf16.msra.mxu0 0
        %869 = vmatprep.subr.bf16.mxu0 0
        %870 = vmatpush2.bf16.msra.mxu0 0
        %871 = vmatprep.subr.bf16.mxu0 0
        %872 = vmatpush2.bf16.msra.mxu0 0
        %873 = vmatprep.subr.bf16.mxu0 0
        %874 = vmatpush2.bf16.msra.mxu0 0
        %875 = vmatprep.subr.bf16.mxu0 0
        %876 = vmatpush2.bf16.msra.mxu0 0
        %877 = vmatprep.subr.bf16.mxu0 0
        %878 = vmatpush2.bf16.msra.mxu0 0
        %879 = vmatprep.subr.bf16.mxu0 0
        %880 = vmatpush2.bf16.msra.mxu0 0
        %881 = vmatprep.mubr.bf16.mxu0 0
        %882 = vmatmul.mubr.bf16.gmra.mxu0 %v835
        %v883 = vpop.f32.mrf.mxu0
        %v884 = vadd.f32 0.0, %v883
        %v885 = vpop.f32.mrf.mxu0
        %v886 = vpop.f32.mrf.mxu0
        %v887 = vadd.f32 0.0, %v886
        %v888 = vpop.f32.mrf.mxu0
        %889 = vmatprep.mubr.bf16.mxu0 0
        %890 = vmatmul.mubr.bf16.gmra.mxu0 %v838
        %v891 = vpop.f32.mrf.mxu0
        %v892 = vadd.f32 0.0, %v891
        %v893 = vpop.f32.mrf.mxu0
        %v894 = vpop.f32.mrf.mxu0
        %v895 = vadd.f32 0.0, %v894
        %v896 = vpop.f32.mrf.mxu0
        %897 = vmatprep.mubr.bf16.mxu0 0
        %898 = vmatmul.mubr.bf16.gmra.mxu0 %v841
        %v899 = vpop.f32.mrf.mxu0
        %v900 = vadd.f32 0.0, %v899
        %v901 = vpop.f32.mrf.mxu0
        %v902 = vpop.f32.mrf.mxu0
        %v903 = vadd.f32 0.0, %v902
        %v904 = vpop.f32.mrf.mxu0
        %905 = vmatprep.mubr.bf16.mxu0 0
        %906 = vmatmul.mubr.bf16.gmra.mxu0 %v844
        %v907 = vpop.f32.mrf.mxu0
        %v908 = vadd.f32 0.0, %v907
        %v909 = vpop.f32.mrf.mxu0
        %v910 = vpop.f32.mrf.mxu0
        %v911 = vadd.f32 0.0, %v910
        %v912 = vpop.f32.mrf.mxu0
        %913 = vdwg.mxu0
        %v914 = vadd.f32 %v786, %v884
        %v915 = vadd.f32 %v787, %v887
        %v916 = vadd.f32 %v788, %v892
        %v917 = vadd.f32 %v789, %v895
        %v918 = vadd.f32 %v790, %v900
        %v919 = vadd.f32 %v791, %v903
        %v920 = vadd.f32 %v792, %v908
        %v921 = vadd.f32 %v793, %v911
        %v922 = vld [vmem:[%s435 + $0x4] sm:$0xe]
        %v923 = vld [vmem:[%s435 + $0x8] sm:$0xf]
        %v924 = vld [vmem:[%s435 + $0xc] sm:$0xf]
        %v925 = vld [vmem:[%s435 + $0x10] sm:$0xf]
        %v926 = vld [vmem:[%s435 + $0x14] sm:$0xf]
        %v927 = vld [vmem:[%s435 + $0x18] sm:$0xf]
        %v928 = vld [vmem:[%s435 + $0x1c] sm:$0xf]
        %v929 = vld [vmem:[%s435 + $0x20] sm:$0xf]
        %v930 = vld [vmem:[%s435 + $0x24] sm:$0x1]
        %s931 = scalar_lea.vmem [#allocation4], 8
        %v932 = vld [vmem:[%s931] sm:$0x3]
        %v942 = vunpack.c.l.b16 %v922
        %v943 = vunpack.c.l.b16 %v923
        %v944 = vunpack.c.l.b16 %v924
        %v945 = vunpack.c.l.b16 %v925
        %v946 = vunpack.c.l.b16 %v926
        %v947 = vunpack.c.l.b16 %v927
        %v948 = vunpack.c.l.b16 %v928
        %v949 = vunpack.c.l.b16 %v929
        %v950 = vunpack.c.l.b16 %v930
        %v951 = vpack.c.b16 %v943, %v942
        %v952 = vpack.c.b16 %v945, %v944
        %v953 = vpack.c.b16 %v947, %v946
        %v954 = vpack.c.b16 %v949, %v948
        %v955 = vpack.c.b16 %v950, %v950
        %v956 = vrot.slane %v951, 1
        %v957 = vrot.slane %v952, 1
        %v958 = vsel %vm696, %v956, %v957
        %v959 = vrot.slane %v953, 1
        %v960 = vsel %vm696, %v957, %v959
        %v961 = vrot.slane %v954, 1
        %v962 = vsel %vm696, %v959, %v961
        %v963 = vrot.slane %v955, 1
        %v964 = vsel %vm696, %v961, %v963
        %v966 = vsel %vm504, %v958, 0
        %v969 = vsel %vm504, %v960, 0
        %v972 = vsel %vm504, %v962, 0
        %v975 = vsel %vm504, %v964, 0
        %v978 = vsel %vm517, %v932, 0
        %980 = vmatprep.subr.bf16.mxu0 0
        %981 = vmatpush1.bf16.msra.mxu0 0
        %982 = vmatprep.subr.bf16.mxu0 0
        %983 = vmatpush1.bf16.msra.mxu0 0
        %984 = vmatprep.subr.bf16.mxu0 0
        %985 = vmatpush1.bf16.msra.mxu0 0
        %986 = vmatprep.subr.bf16.mxu0 0
        %987 = vmatpush1.bf16.msra.mxu0 0
        %988 = vmatprep.subr.bf16.mxu0 0
        %989 = vmatpush1.bf16.msra.mxu0 0
        %990 = vmatprep.subr.bf16.mxu0 0
        %991 = vmatpush1.bf16.msra.mxu0 0
        %992 = vmatprep.subr.bf16.mxu0 0
        %993 = vmatpush1.bf16.msra.mxu0 0
        %994 = vmatprep.subr.bf16.mxu0 0
        %995 = vmatpush1.bf16.msra.mxu0 %v978
        %996 = vmatprep.subr.bf16.mxu0 0
        %997 = vmatpush2.bf16.msra.mxu0 0
        %998 = vmatprep.subr.bf16.mxu0 0
        %999 = vmatpush2.bf16.msra.mxu0 0
        %1000 = vmatprep.subr.bf16.mxu0 0
        %1001 = vmatpush2.bf16.msra.mxu0 0
        %1002 = vmatprep.subr.bf16.mxu0 0
        %1003 = vmatpush2.bf16.msra.mxu0 0
        %1004 = vmatprep.subr.bf16.mxu0 0
        %1005 = vmatpush2.bf16.msra.mxu0 0
        %1006 = vmatprep.subr.bf16.mxu0 0
        %1007 = vmatpush2.bf16.msra.mxu0 0
        %1008 = vmatprep.subr.bf16.mxu0 0
        %1009 = vmatpush2.bf16.msra.mxu0 0
        %1010 = vmatprep.subr.bf16.mxu0 0
        %1011 = vmatpush2.bf16.msra.mxu0 0
        %1012 = vmatprep.mubr.bf16.mxu0 0
        %1013 = vmatmul.mubr.bf16.gmra.mxu0 %v966
        %v1014 = vpop.f32.mrf.mxu0
        %v1015 = vadd.f32 0.0, %v1014
        %v1016 = vpop.f32.mrf.mxu0
        %v1017 = vpop.f32.mrf.mxu0
        %v1018 = vadd.f32 0.0, %v1017
        %v1019 = vpop.f32.mrf.mxu0
        %1020 = vmatprep.mubr.bf16.mxu0 0
        %1021 = vmatmul.mubr.bf16.gmra.mxu0 %v969
        %v1022 = vpop.f32.mrf.mxu0
        %v1023 = vadd.f32 0.0, %v1022
        %v1024 = vpop.f32.mrf.mxu0
        %v1025 = vpop.f32.mrf.mxu0
        %v1026 = vadd.f32 0.0, %v1025
        %v1027 = vpop.f32.mrf.mxu0
        %1028 = vmatprep.mubr.bf16.mxu0 0
        %1029 = vmatmul.mubr.bf16.gmra.mxu0 %v972
        %v1030 = vpop.f32.mrf.mxu0
        %v1031 = vadd.f32 0.0, %v1030
        %v1032 = vpop.f32.mrf.mxu0
        %v1033 = vpop.f32.mrf.mxu0
        %v1034 = vadd.f32 0.0, %v1033
        %v1035 = vpop.f32.mrf.mxu0
        %1036 = vmatprep.mubr.bf16.mxu0 0
        %1037 = vmatmul.mubr.bf16.gmra.mxu0 %v975
        %v1038 = vpop.f32.mrf.mxu0
        %v1039 = vadd.f32 0.0, %v1038
        %v1040 = vpop.f32.mrf.mxu0
        %v1041 = vpop.f32.mrf.mxu0
        %v1042 = vadd.f32 0.0, %v1041
        %v1043 = vpop.f32.mrf.mxu0
        %1044 = vdwg.mxu0
        %v1045 = vadd.f32 %v914, %v1015
        %v1046 = vadd.f32 %v915, %v1018
        %v1047 = vadd.f32 %v916, %v1023
        %v1048 = vadd.f32 %v917, %v1026
        %v1049 = vadd.f32 %v918, %v1031
        %v1050 = vadd.f32 %v919, %v1034
        %v1051 = vadd.f32 %v920, %v1039
        %v1052 = vadd.f32 %v921, %v1042
        %s1053 = scalar_lea.vmem [#allocation4], 10
        %v1054 = vld [vmem:[%s1053] sm:$0x3]
        %vm1055 = vsmask.f32 6400
        %v1057 = vshrl.u32 %v951, 16
        %v1059 = vrot.slane %v1057, 1
        %v1060 = vshll.u32 %v951, 16
        %v1062 = vrot.slane %v1060, 2
        %v1063 = vor.u32 %v1059, %v1062
        %v1065 = vshrl.u32 %v952, 16
        %v1067 = vrot.slane %v1065, 1
        %v1068 = vshll.u32 %v952, 16
        %v1070 = vrot.slane %v1068, 2
        %v1071 = vor.u32 %v1067, %v1070
        %v1072 = vsel %vm1055, %v1063, %v1071
        %v1074 = vshrl.u32 %v953, 16
        %v1076 = vrot.slane %v1074, 1
        %v1077 = vshll.u32 %v953, 16
        %v1079 = vrot.slane %v1077, 2
        %v1080 = vor.u32 %v1076, %v1079
        %v1081 = vsel %vm1055, %v1071, %v1080
        %v1083 = vshrl.u32 %v954, 16
        %v1085 = vrot.slane %v1083, 1
        %v1086 = vshll.u32 %v954, 16
        %v1088 = vrot.slane %v1086, 2
        %v1089 = vor.u32 %v1085, %v1088
        %v1090 = vsel %vm1055, %v1080, %v1089
        %v1092 = vshrl.u32 %v955, 16
        %v1094 = vrot.slane %v1092, 1
        %v1095 = vshll.u32 %v955, 16
        %v1097 = vrot.slane %v1095, 2
        %v1098 = vor.u32 %v1094, %v1097
        %v1099 = vsel %vm1055, %v1089, %v1098
        %v1101 = vsel %vm504, %v1072, 0
        %v1104 = vsel %vm504, %v1081, 0
        %v1107 = vsel %vm504, %v1090, 0
        %v1110 = vsel %vm504, %v1099, 0
        %v1113 = vsel %vm517, %v1054, 0
        %1115 = vmatprep.subr.bf16.mxu0 0
        %1116 = vmatpush1.bf16.msra.mxu0 0
        %1117 = vmatprep.subr.bf16.mxu0 0
        %1118 = vmatpush1.bf16.msra.mxu0 0
        %1119 = vmatprep.subr.bf16.mxu0 0
        %1120 = vmatpush1.bf16.msra.mxu0 0
        %1121 = vmatprep.subr.bf16.mxu0 0
        %1122 = vmatpush1.bf16.msra.mxu0 0
        %1123 = vmatprep.subr.bf16.mxu0 0
        %1124 = vmatpush1.bf16.msra.mxu0 0
        %1125 = vmatprep.subr.bf16.mxu0 0
        %1126 = vmatpush1.bf16.msra.mxu0 0
        %1127 = vmatprep.subr.bf16.mxu0 0
        %1128 = vmatpush1.bf16.msra.mxu0 0
        %1129 = vmatprep.subr.bf16.mxu0 0
        %1130 = vmatpush1.bf16.msra.mxu0 %v1113
        %1131 = vmatprep.subr.bf16.mxu0 0
        %1132 = vmatpush2.bf16.msra.mxu0 0
        %1133 = vmatprep.subr.bf16.mxu0 0
        %1134 = vmatpush2.bf16.msra.mxu0 0
        %1135 = vmatprep.subr.bf16.mxu0 0
        %1136 = vmatpush2.bf16.msra.mxu0 0
        %1137 = vmatprep.subr.bf16.mxu0 0
        %1138 = vmatpush2.bf16.msra.mxu0 0
        %1139 = vmatprep.subr.bf16.mxu0 0
        %1140 = vmatpush2.bf16.msra.mxu0 0
        %1141 = vmatprep.subr.bf16.mxu0 0
        %1142 = vmatpush2.bf16.msra.mxu0 0
        %1143 = vmatprep.subr.bf16.mxu0 0
        %1144 = vmatpush2.bf16.msra.mxu0 0
        %1145 = vmatprep.subr.bf16.mxu0 0
        %1146 = vmatpush2.bf16.msra.mxu0 0
        %1147 = vmatprep.mubr.bf16.mxu0 0
        %1148 = vmatmul.mubr.bf16.gmra.mxu0 %v1101
        %v1149 = vpop.f32.mrf.mxu0
        %v1150 = vadd.f32 0.0, %v1149
        %v1151 = vpop.f32.mrf.mxu0
        %v1152 = vpop.f32.mrf.mxu0
        %v1153 = vadd.f32 0.0, %v1152
        %v1154 = vpop.f32.mrf.mxu0
        %1155 = vmatprep.mubr.bf16.mxu0 0
        %1156 = vmatmul.mubr.bf16.gmra.mxu0 %v1104
        %v1157 = vpop.f32.mrf.mxu0
        %v1158 = vadd.f32 0.0, %v1157
        %v1159 = vpop.f32.mrf.mxu0
        %v1160 = vpop.f32.mrf.mxu0
        %v1161 = vadd.f32 0.0, %v1160
        %v1162 = vpop.f32.mrf.mxu0
        %1163 = vmatprep.mubr.bf16.mxu0 0
        %1164 = vmatmul.mubr.bf16.gmra.mxu0 %v1107
        %v1165 = vpop.f32.mrf.mxu0
        %v1166 = vadd.f32 0.0, %v1165
        %v1167 = vpop.f32.mrf.mxu0
        %v1168 = vpop.f32.mrf.mxu0
        %v1169 = vadd.f32 0.0, %v1168
        %v1170 = vpop.f32.mrf.mxu0
        %1171 = vmatprep.mubr.bf16.mxu0 0
        %1172 = vmatmul.mubr.bf16.gmra.mxu0 %v1110
        %v1173 = vpop.f32.mrf.mxu0
        %v1174 = vadd.f32 0.0, %v1173
        %v1175 = vpop.f32.mrf.mxu0
        %v1176 = vpop.f32.mrf.mxu0
        %v1177 = vadd.f32 0.0, %v1176
        %v1178 = vpop.f32.mrf.mxu0
        %1179 = vdwg.mxu0
        %v1180 = vadd.f32 %v1045, %v1150
        %v1181 = vadd.f32 %v1046, %v1153
        %v1182 = vadd.f32 %v1047, %v1158
        %v1183 = vadd.f32 %v1048, %v1161
        %v1184 = vadd.f32 %v1049, %v1166
        %v1185 = vadd.f32 %v1050, %v1169
        %v1186 = vadd.f32 %v1051, %v1174
        %v1187 = vadd.f32 %v1052, %v1177
        %v1188 = vld [vmem:[%s435 + $0x8] sm:$0xe]
        %v1189 = vld [vmem:[%s435 + $0xc] sm:$0xf]
        %v1190 = vld [vmem:[%s435 + $0x10] sm:$0xf]
        %v1191 = vld [vmem:[%s435 + $0x14] sm:$0xf]
        %v1192 = vld [vmem:[%s435 + $0x18] sm:$0xf]
        %v1193 = vld [vmem:[%s435 + $0x1c] sm:$0xf]
        %v1194 = vld [vmem:[%s435 + $0x20] sm:$0xf]
        %v1195 = vld [vmem:[%s435 + $0x24] sm:$0xf]
        %v1196 = vld [vmem:[%s435 + $0x28] sm:$0x1]
        %s1197 = scalar_lea.vmem [#allocation4], 12
        %v1198 = vld [vmem:[%s1197] sm:$0x3]
        %v1208 = vunpack.c.l.b16 %v1188
        %v1209 = vunpack.c.l.b16 %v1189
        %v1210 = vunpack.c.l.b16 %v1190
        %v1211 = vunpack.c.l.b16 %v1191
        %v1212 = vunpack.c.l.b16 %v1192
        %v1213 = vunpack.c.l.b16 %v1193
        %v1214 = vunpack.c.l.b16 %v1194
        %v1215 = vunpack.c.l.b16 %v1195
        %v1216 = vunpack.c.l.b16 %v1196
        %v1217 = vpack.c.b16 %v1209, %v1208
        %v1218 = vpack.c.b16 %v1211, %v1210
        %v1219 = vpack.c.b16 %v1213, %v1212
        %v1220 = vpack.c.b16 %v1215, %v1214
        %v1221 = vpack.c.b16 %v1216, %v1216
        %v1222 = vrot.slane %v1217, 1
        %v1223 = vrot.slane %v1218, 1
        %v1224 = vsel %vm696, %v1222, %v1223
        %v1225 = vrot.slane %v1219, 1
        %v1226 = vsel %vm696, %v1223, %v1225
        %v1227 = vrot.slane %v1220, 1
        %v1228 = vsel %vm696, %v1225, %v1227
        %v1229 = vrot.slane %v1221, 1
        %v1230 = vsel %vm696, %v1227, %v1229
        %v1232 = vsel %vm504, %v1224, 0
        %v1235 = vsel %vm504, %v1226, 0
        %v1238 = vsel %vm504, %v1228, 0
        %v1241 = vsel %vm504, %v1230, 0
        %v1244 = vsel %vm517, %v1198, 0
        %1246 = vmatprep.subr.bf16.mxu0 0
        %1247 = vmatpush1.bf16.msra.mxu0 0
        %1248 = vmatprep.subr.bf16.mxu0 0
        %1249 = vmatpush1.bf16.msra.mxu0 0
        %1250 = vmatprep.subr.bf16.mxu0 0
        %1251 = vmatpush1.bf16.msra.mxu0 0
        %1252 = vmatprep.subr.bf16.mxu0 0
        %1253 = vmatpush1.bf16.msra.mxu0 0
        %1254 = vmatprep.subr.bf16.mxu0 0
        %1255 = vmatpush1.bf16.msra.mxu0 0
        %1256 = vmatprep.subr.bf16.mxu0 0
        %1257 = vmatpush1.bf16.msra.mxu0 0
        %1258 = vmatprep.subr.bf16.mxu0 0
        %1259 = vmatpush1.bf16.msra.mxu0 0
        %1260 = vmatprep.subr.bf16.mxu0 0
        %1261 = vmatpush1.bf16.msra.mxu0 %v1244
        %1262 = vmatprep.subr.bf16.mxu0 0
        %1263 = vmatpush2.bf16.msra.mxu0 0
        %1264 = vmatprep.subr.bf16.mxu0 0
        %1265 = vmatpush2.bf16.msra.mxu0 0
        %1266 = vmatprep.subr.bf16.mxu0 0
        %1267 = vmatpush2.bf16.msra.mxu0 0
        %1268 = vmatprep.subr.bf16.mxu0 0
        %1269 = vmatpush2.bf16.msra.mxu0 0
        %1270 = vmatprep.subr.bf16.mxu0 0
        %1271 = vmatpush2.bf16.msra.mxu0 0
        %1272 = vmatprep.subr.bf16.mxu0 0
        %1273 = vmatpush2.bf16.msra.mxu0 0
        %1274 = vmatprep.subr.bf16.mxu0 0
        %1275 = vmatpush2.bf16.msra.mxu0 0
        %1276 = vmatprep.subr.bf16.mxu0 0
        %1277 = vmatpush2.bf16.msra.mxu0 0
        %1278 = vmatprep.mubr.bf16.mxu0 0
        %1279 = vmatmul.mubr.bf16.gmra.mxu0 %v1232
        %v1280 = vpop.f32.mrf.mxu0
        %v1281 = vadd.f32 0.0, %v1280
        %v1282 = vpop.f32.mrf.mxu0
        %v1283 = vpop.f32.mrf.mxu0
        %v1284 = vadd.f32 0.0, %v1283
        %v1285 = vpop.f32.mrf.mxu0
        %1286 = vmatprep.mubr.bf16.mxu0 0
        %1287 = vmatmul.mubr.bf16.gmra.mxu0 %v1235
        %v1288 = vpop.f32.mrf.mxu0
        %v1289 = vadd.f32 0.0, %v1288
        %v1290 = vpop.f32.mrf.mxu0
        %v1291 = vpop.f32.mrf.mxu0
        %v1292 = vadd.f32 0.0, %v1291
        %v1293 = vpop.f32.mrf.mxu0
        %1294 = vmatprep.mubr.bf16.mxu0 0
        %1295 = vmatmul.mubr.bf16.gmra.mxu0 %v1238
        %v1296 = vpop.f32.mrf.mxu0
        %v1297 = vadd.f32 0.0, %v1296
        %v1298 = vpop.f32.mrf.mxu0
        %v1299 = vpop.f32.mrf.mxu0
        %v1300 = vadd.f32 0.0, %v1299
        %v1301 = vpop.f32.mrf.mxu0
        %1302 = vmatprep.mubr.bf16.mxu0 0
        %1303 = vmatmul.mubr.bf16.gmra.mxu0 %v1241
        %v1304 = vpop.f32.mrf.mxu0
        %v1305 = vadd.f32 0.0, %v1304
        %v1306 = vpop.f32.mrf.mxu0
        %v1307 = vpop.f32.mrf.mxu0
        %v1308 = vadd.f32 0.0, %v1307
        %v1309 = vpop.f32.mrf.mxu0
        %1310 = vdwg.mxu0
        %v1311 = vadd.f32 %v1180, %v1281
        %v1312 = vadd.f32 %v1181, %v1284
        %v1313 = vadd.f32 %v1182, %v1289
        %v1314 = vadd.f32 %v1183, %v1292
        %v1315 = vadd.f32 %v1184, %v1297
        %v1316 = vadd.f32 %v1185, %v1300
        %v1317 = vadd.f32 %v1186, %v1305
        %v1318 = vadd.f32 %v1187, %v1308
        %s1319 = scalar_lea.vmem [#allocation4], 14
        %v1320 = vld [vmem:[%s1319] sm:$0x3]
        %v1322 = vshrl.u32 %v1217, 16
        %v1324 = vrot.slane %v1322, 1
        %v1325 = vshll.u32 %v1217, 16
        %v1327 = vrot.slane %v1325, 2
        %v1328 = vor.u32 %v1324, %v1327
        %v1330 = vshrl.u32 %v1218, 16
        %v1332 = vrot.slane %v1330, 1
        %v1333 = vshll.u32 %v1218, 16
        %v1335 = vrot.slane %v1333, 2
        %v1336 = vor.u32 %v1332, %v1335
        %v1337 = vsel %vm1055, %v1328, %v1336
        %v1339 = vshrl.u32 %v1219, 16
        %v1341 = vrot.slane %v1339, 1
        %v1342 = vshll.u32 %v1219, 16
        %v1344 = vrot.slane %v1342, 2
        %v1345 = vor.u32 %v1341, %v1344
        %v1346 = vsel %vm1055, %v1336, %v1345
        %v1348 = vshrl.u32 %v1220, 16
        %v1350 = vrot.slane %v1348, 1
        %v1351 = vshll.u32 %v1220, 16
        %v1353 = vrot.slane %v1351, 2
        %v1354 = vor.u32 %v1350, %v1353
        %v1355 = vsel %vm1055, %v1345, %v1354
        %v1357 = vshrl.u32 %v1221, 16
        %v1359 = vrot.slane %v1357, 1
        %v1360 = vshll.u32 %v1221, 16
        %v1362 = vrot.slane %v1360, 2
        %v1363 = vor.u32 %v1359, %v1362
        %v1364 = vsel %vm1055, %v1354, %v1363
        %v1366 = vsel %vm504, %v1337, 0
        %v1369 = vsel %vm504, %v1346, 0
        %v1372 = vsel %vm504, %v1355, 0
        %v1375 = vsel %vm504, %v1364, 0
        %v1378 = vsel %vm517, %v1320, 0
        %1380 = vmatprep.subr.bf16.mxu0 0
        %1381 = vmatpush1.bf16.msra.mxu0 0
        %1382 = vmatprep.subr.bf16.mxu0 0
        %1383 = vmatpush1.bf16.msra.mxu0 0
        %1384 = vmatprep.subr.bf16.mxu0 0
        %1385 = vmatpush1.bf16.msra.mxu0 0
        %1386 = vmatprep.subr.bf16.mxu0 0
        %1387 = vmatpush1.bf16.msra.mxu0 0
        %1388 = vmatprep.subr.bf16.mxu0 0
        %1389 = vmatpush1.bf16.msra.mxu0 0
        %1390 = vmatprep.subr.bf16.mxu0 0
        %1391 = vmatpush1.bf16.msra.mxu0 0
        %1392 = vmatprep.subr.bf16.mxu0 0
        %1393 = vmatpush1.bf16.msra.mxu0 0
        %1394 = vmatprep.subr.bf16.mxu0 0
        %1395 = vmatpush1.bf16.msra.mxu0 %v1378
        %1396 = vmatprep.subr.bf16.mxu0 0
        %1397 = vmatpush2.bf16.msra.mxu0 0
        %1398 = vmatprep.subr.bf16.mxu0 0
        %1399 = vmatpush2.bf16.msra.mxu0 0
        %1400 = vmatprep.subr.bf16.mxu0 0
        %1401 = vmatpush2.bf16.msra.mxu0 0
        %1402 = vmatprep.subr.bf16.mxu0 0
        %1403 = vmatpush2.bf16.msra.mxu0 0
        %1404 = vmatprep.subr.bf16.mxu0 0
        %1405 = vmatpush2.bf16.msra.mxu0 0
        %1406 = vmatprep.subr.bf16.mxu0 0
        %1407 = vmatpush2.bf16.msra.mxu0 0
        %1408 = vmatprep.subr.bf16.mxu0 0
        %1409 = vmatpush2.bf16.msra.mxu0 0
        %1410 = vmatprep.subr.bf16.mxu0 0
        %1411 = vmatpush2.bf16.msra.mxu0 0
        %1412 = vmatprep.mubr.bf16.mxu0 0
        %1413 = vmatmul.mubr.bf16.gmra.mxu0 %v1366
        %v1414 = vpop.f32.mrf.mxu0
        %v1415 = vadd.f32 0.0, %v1414
        %v1416 = vpop.f32.mrf.mxu0
        %v1417 = vpop.f32.mrf.mxu0
        %v1418 = vadd.f32 0.0, %v1417
        %v1419 = vpop.f32.mrf.mxu0
        %1420 = vmatprep.mubr.bf16.mxu0 0
        %1421 = vmatmul.mubr.bf16.gmra.mxu0 %v1369
        %v1422 = vpop.f32.mrf.mxu0
        %v1423 = vadd.f32 0.0, %v1422
        %v1424 = vpop.f32.mrf.mxu0
        %v1425 = vpop.f32.mrf.mxu0
        %v1426 = vadd.f32 0.0, %v1425
        %v1427 = vpop.f32.mrf.mxu0
        %1428 = vmatprep.mubr.bf16.mxu0 0
        %1429 = vmatmul.mubr.bf16.gmra.mxu0 %v1372
        %v1430 = vpop.f32.mrf.mxu0
        %v1431 = vadd.f32 0.0, %v1430
        %v1432 = vpop.f32.mrf.mxu0
        %v1433 = vpop.f32.mrf.mxu0
        %v1434 = vadd.f32 0.0, %v1433
        %v1435 = vpop.f32.mrf.mxu0
        %1436 = vmatprep.mubr.bf16.mxu0 0
        %1437 = vmatmul.mubr.bf16.gmra.mxu0 %v1375
        %v1438 = vpop.f32.mrf.mxu0
        %v1439 = vadd.f32 0.0, %v1438
        %v1440 = vpop.f32.mrf.mxu0
        %v1441 = vpop.f32.mrf.mxu0
        %v1442 = vadd.f32 0.0, %v1441
        %v1443 = vpop.f32.mrf.mxu0
        %1444 = vdwg.mxu0
        %v1445 = vadd.f32 %v1311, %v1415
        %v1446 = vadd.f32 %v1312, %v1418
        %v1447 = vadd.f32 %v1313, %v1423
        %v1448 = vadd.f32 %v1314, %v1426
        %v1449 = vadd.f32 %v1315, %v1431
        %v1450 = vadd.f32 %v1316, %v1434
        %v1451 = vadd.f32 %v1317, %v1439
        %v1452 = vadd.f32 %v1318, %v1442
        %v1453 = vld [vmem:[%s435 + $0x8] sm:$0xc]
        %v1454 = vld [vmem:[%s435 + $0x28] sm:$0x3]
        %s1455 = scalar_lea.vmem [#allocation4], 16
        %v1456 = vld [vmem:[%s1455] sm:$0x3]
        %v1459 = vunpack.c.l.b16 %v1453
        %v1460 = vunpack.c.l.b16 %v1454
        %v1461 = vpack.c.b16 %v1209, %v1459
        %v1462 = vpack.c.b16 %v1460, %v1460
        %vm1463 = vcmask 1045504
        %v1464 = vrot.slane %v1461, 2
        %v1465 = vrot.slane %v1218, 2
        %v1466 = vsel %vm1463, %v1464, %v1465
        %v1467 = vrot.slane %v1219, 2
        %v1468 = vsel %vm1463, %v1465, %v1467
        %v1469 = vrot.slane %v1220, 2
        %v1470 = vsel %vm1463, %v1467, %v1469
        %v1471 = vrot.slane %v1462, 2
        %v1472 = vsel %vm1463, %v1469, %v1471
        %v1474 = vsel %vm504, %v1466, 0
        %v1477 = vsel %vm504, %v1468, 0
        %v1480 = vsel %vm504, %v1470, 0
        %v1483 = vsel %vm504, %v1472, 0
        %v1486 = vsel %vm517, %v1456, 0
        %1488 = vmatprep.subr.bf16.mxu0 0
        %1489 = vmatpush1.bf16.msra.mxu0 0
        %1490 = vmatprep.subr.bf16.mxu0 0
        %1491 = vmatpush1.bf16.msra.mxu0 0
        %1492 = vmatprep.subr.bf16.mxu0 0
        %1493 = vmatpush1.bf16.msra.mxu0 0
        %1494 = vmatprep.subr.bf16.mxu0 0
        %1495 = vmatpush1.bf16.msra.mxu0 0
        %1496 = vmatprep.subr.bf16.mxu0 0
        %1497 = vmatpush1.bf16.msra.mxu0 0
        %1498 = vmatprep.subr.bf16.mxu0 0
        %1499 = vmatpush1.bf16.msra.mxu0 0
        %1500 = vmatprep.subr.bf16.mxu0 0
        %1501 = vmatpush1.bf16.msra.mxu0 0
        %1502 = vmatprep.subr.bf16.mxu0 0
        %1503 = vmatpush1.bf16.msra.mxu0 %v1486
        %1504 = vmatprep.subr.bf16.mxu0 0
        %1505 = vmatpush2.bf16.msra.mxu0 0
        %1506 = vmatprep.subr.bf16.mxu0 0
        %1507 = vmatpush2.bf16.msra.mxu0 0
        %1508 = vmatprep.subr.bf16.mxu0 0
        %1509 = vmatpush2.bf16.msra.mxu0 0
        %1510 = vmatprep.subr.bf16.mxu0 0
        %1511 = vmatpush2.bf16.msra.mxu0 0
        %1512 = vmatprep.subr.bf16.mxu0 0
        %1513 = vmatpush2.bf16.msra.mxu0 0
        %1514 = vmatprep.subr.bf16.mxu0 0
        %1515 = vmatpush2.bf16.msra.mxu0 0
        %1516 = vmatprep.subr.bf16.mxu0 0
        %1517 = vmatpush2.bf16.msra.mxu0 0
        %1518 = vmatprep.subr.bf16.mxu0 0
        %1519 = vmatpush2.bf16.msra.mxu0 0
        %1520 = vmatprep.mubr.bf16.mxu0 0
        %1521 = vmatmul.mubr.bf16.gmra.mxu0 %v1474
        %v1522 = vpop.f32.mrf.mxu0
        %v1523 = vadd.f32 0.0, %v1522
        %v1524 = vpop.f32.mrf.mxu0
        %v1525 = vpop.f32.mrf.mxu0
        %v1526 = vadd.f32 0.0, %v1525
        %v1527 = vpop.f32.mrf.mxu0
        %1528 = vmatprep.mubr.bf16.mxu0 0
        %1529 = vmatmul.mubr.bf16.gmra.mxu0 %v1477
        %v1530 = vpop.f32.mrf.mxu0
        %v1531 = vadd.f32 0.0, %v1530
        %v1532 = vpop.f32.mrf.mxu0
        %v1533 = vpop.f32.mrf.mxu0
        %v1534 = vadd.f32 0.0, %v1533
        %v1535 = vpop.f32.mrf.mxu0
        %1536 = vmatprep.mubr.bf16.mxu0 0
        %1537 = vmatmul.mubr.bf16.gmra.mxu0 %v1480
        %v1538 = vpop.f32.mrf.mxu0
        %v1539 = vadd.f32 0.0, %v1538
        %v1540 = vpop.f32.mrf.mxu0
        %v1541 = vpop.f32.mrf.mxu0
        %v1542 = vadd.f32 0.0, %v1541
        %v1543 = vpop.f32.mrf.mxu0
        %1544 = vmatprep.mubr.bf16.mxu0 0
        %1545 = vmatmul.mubr.bf16.gmra.mxu0 %v1483
        %v1546 = vpop.f32.mrf.mxu0
        %v1547 = vadd.f32 0.0, %v1546
        %v1548 = vpop.f32.mrf.mxu0
        %v1549 = vpop.f32.mrf.mxu0
        %v1550 = vadd.f32 0.0, %v1549
        %v1551 = vpop.f32.mrf.mxu0
        %1552 = vdwg.mxu0
        %v1553 = vadd.f32 %v1445, %v1523
        %v1554 = vadd.f32 %v1446, %v1526
        %v1555 = vadd.f32 %v1447, %v1531
        %v1556 = vadd.f32 %v1448, %v1534
        %v1557 = vadd.f32 %v1449, %v1539
        %v1558 = vadd.f32 %v1450, %v1542
        %v1559 = vadd.f32 %v1451, %v1547
        %v1560 = vadd.f32 %v1452, %v1550
        %v1561 = vld [vmem:[#allocation6] sm:$0x1]
        %v1563 = vlaneseq
        %v1564 = vshrl.u32 %v1563, 7
        %v1565 = vsub.s32 0, %v1564
        %v1566 = vrot.slane %v1561, %v1565
        %v1568 = vadd.f32 %v1553, %v1566
        %v1569 = vadd.f32 %v1554, %v1566
        %v1570 = vadd.f32 %v1555, %v1566
        %v1571 = vadd.f32 %v1556, %v1566
        %v1572 = vadd.f32 %v1557, %v1566
        %v1573 = vadd.f32 %v1558, %v1566
        %v1574 = vadd.f32 %v1559, %v1566
        %v1575 = vadd.f32 %v1560, %v1566
        %v1576 = vmax.f32 %v1568, 0.0
        %v1577 = vmax.f32 %v1569, 0.0
        %v1578 = vmax.f32 %v1570, 0.0
        %v1579 = vmax.f32 %v1571, 0.0
        %v1580 = vmax.f32 %v1572, 0.0
        %v1581 = vmax.f32 %v1573, 0.0
        %v1582 = vmax.f32 %v1574, 0.0
        %v1583 = vmax.f32 %v1575, 0.0
        %v1584 = vpack.c.bf16 %v1577, %v1576
        %v1585 = vpack.c.bf16 %v1579, %v1578
        %v1586 = vpack.c.bf16 %v1581, %v1580
        %v1587 = vpack.c.bf16 %v1583, %v1582
        %v1592 = vunpack.c.l.b16 %v1584
        %v1593 = vunpack.c.h.b16 %v1584
        %v1594 = vunpack.c.l.b16 %v1585
        %v1595 = vunpack.c.h.b16 %v1585
        %v1596 = vunpack.c.l.b16 %v1586
        %v1597 = vunpack.c.h.b16 %v1586
        %v1598 = vunpack.c.l.b16 %v1587
        %v1599 = vunpack.c.h.b16 %v1587
        %v1600 = vpack.c.b16 %v1592, %v1592
        %v1601 = vpack.c.b16 %v1593, %v1593
        %v1602 = vpack.c.b16 %v1594, %v1594
        %v1603 = vpack.c.b16 %v1595, %v1595
        %v1604 = vpack.c.b16 %v1596, %v1596
        %v1605 = vpack.c.b16 %v1597, %v1597
        %v1606 = vpack.c.b16 %v1598, %v1598
        %v1607 = vpack.c.b16 %v1599, %v1599
        %1616 = vst [vmem:[#allocation2] sm:$0xf] %v1600
        %1617 = vst [vmem:[#allocation2 + $0x4] sm:$0xf] %v1601
        %1618 = vst [vmem:[#allocation2 + $0x8] sm:$0xf] %v1602
        %1619 = vst [vmem:[#allocation2 + $0xc] sm:$0xf] %v1603
        %1620 = vst [vmem:[#allocation2 + $0x10] sm:$0xf] %v1604
        %1621 = vst [vmem:[#allocation2 + $0x14] sm:$0xf] %v1605
        %1622 = vst [vmem:[#allocation2 + $0x18] sm:$0xf] %v1606
        %vm1623 = vcmask 1043456
        %vm1624 = vsmask.f32 3328
        %vm1625 = vmand %vm1623, %vm1624
        %v1626 = vld [vmem:[#allocation2 + $0x1c] sm:$0xf]
        %v1627 = vsel %vm1625, %v1607, %v1626
        %1628 = vst [vmem:[#allocation2 + $0x1c] sm:$0xf] %v1627
        %vm1629 = vcmask 1043459
        %vm1630 = vsmask.f32 7950
        %vm1631 = vmand %vm1629, %vm1630
        %v1632 = vld [vmem:[#allocation2 + $0x1c] sm:$0x8]
        %v1633 = vsel %vm1631, 0, %v1632
        %1634 = vst [vmem:[#allocation2 + $0x1c] sm:$0x8] %v1633
        %vm1635 = vcmask 1040384
        %vm1636 = vsmask.f32 256
        %vm1637 = vmand %vm1635, %vm1636
        %v1638 = vld [vmem:[#allocation2 + $0x20] sm:$0x1]
        %v1639 = vsel %vm1637, 0, %v1638
        %1640 = vst [vmem:[#allocation2 + $0x20] sm:$0x1] %v1639
        %v1641 = vld [vmem:[#allocation2] sm:$0xf]
        %v1642 = vld [vmem:[#allocation2 + $0x4] sm:$0xf]
        %v1643 = vld [vmem:[#allocation2 + $0x8] sm:$0xf]
        %v1644 = vld [vmem:[#allocation2 + $0xc] sm:$0xf]
        %v1645 = vld [vmem:[#allocation2 + $0x10] sm:$0xf]
        %v1646 = vld [vmem:[#allocation2 + $0x14] sm:$0x7]
        %v1647 = vld [vmem:[#allocation8] sm:$0xff]
        %v1648 = vld [vmem:[#allocation8 + $0x8] sm:$0xff]
        %v1649 = vld [vmem:[#allocation8 + $0x10] sm:$0xff]
        %v1650 = vld [vmem:[#allocation8 + $0x18] sm:$0xff]
        %v1651 = vld [vmem:[#allocation8 + $0x20] sm:$0xff]
        %v1652 = vld [vmem:[#allocation8 + $0x28] sm:$0xff]
        %v1653 = vld [vmem:[#allocation8 + $0x30] sm:$0xff]
        %v1654 = vld [vmem:[#allocation8 + $0x38] sm:$0xff]
        %v1655 = vld [vmem:[#allocation8 + $0x40] sm:$0xff]
        %v1656 = vld [vmem:[#allocation8 + $0x48] sm:$0xff]
        %v1657 = vld [vmem:[#allocation8 + $0x50] sm:$0xff]
        %v1658 = vld [vmem:[#allocation8 + $0x58] sm:$0xff]
        %v1659 = vld [vmem:[#allocation8 + $0x60] sm:$0xff]
        %v1660 = vld [vmem:[#allocation8 + $0x68] sm:$0xff]
        %v1661 = vld [vmem:[#allocation8 + $0x70] sm:$0xff]
        %v1662 = vld [vmem:[#allocation8 + $0x78] sm:$0xff]
        %s1663 = scalar_lea.vmem [#allocation8], 128
        %v1664 = vld [vmem:[%s1663] sm:$0xff]
        %v1665 = vld [vmem:[%s1663 + $0x8] sm:$0xff]
        %v1666 = vld [vmem:[%s1663 + $0x10] sm:$0xff]
        %v1667 = vld [vmem:[%s1663 + $0x18] sm:$0xff]
        %v1668 = vld [vmem:[%s1663 + $0x20] sm:$0xff]
        %v1669 = vld [vmem:[%s1663 + $0x28] sm:$0xff]
        %v1670 = vld [vmem:[%s1663 + $0x30] sm:$0xff]
        %v1671 = vld [vmem:[%s1663 + $0x38] sm:$0xff]
        %v1672 = vld [vmem:[%s1663 + $0x40] sm:$0xff]
        %v1673 = vld [vmem:[%s1663 + $0x48] sm:$0xff]
        %v1674 = vld [vmem:[%s1663 + $0x50] sm:$0xff]
        %v1675 = vld [vmem:[%s1663 + $0x58] sm:$0xff]
        %v1676 = vld [vmem:[%s1663 + $0x60] sm:$0xff]
        %v1677 = vld [vmem:[%s1663 + $0x68] sm:$0xff]
        %v1678 = vld [vmem:[%s1663 + $0x70] sm:$0xff]
        %v1679 = vld [vmem:[%s1663 + $0x78] sm:$0xff]
        %v1686 = vunpack.c.l.b16 %v1641
        %v1687 = vunpack.c.l.b16 %v1642
        %v1688 = vunpack.c.l.b16 %v1643
        %v1689 = vunpack.c.l.b16 %v1644
        %v1690 = vunpack.c.l.b16 %v1645
        %v1691 = vunpack.c.l.b16 %v1646
        %v1692 = vpack.c.b16 %v1687, %v1686
        %v1693 = vpack.c.b16 %v1689, %v1688
        %v1694 = vpack.c.b16 %v1691, %v1690
        %v1696 = vshrl.u32 %v1692, 16
        %v1698 = vshll.u32 %v1692, 16
        %v1700 = vrot.slane %v1698, 1
        %v1701 = vor.u32 %v1696, %v1700
        %v1703 = vshll.u32 %v1693, 16
        %v1705 = vrot.slane %v1703, 1
        %v1706 = vsel %vm472, %v1701, %v1705
        %v1707 = vshrl.u32 %v1693, 16
        %v1709 = vor.u32 %v1707, %v1705
        %v1711 = vshll.u32 %v1694, 16
        %v1713 = vrot.slane %v1711, 1
        %v1714 = vsel %vm472, %v1709, %v1713
        %v1715 = vshrl.u32 %v1694, 16
        %v1717 = vor.u32 %v1715, %v1713
        %v1737 = vunpack.c.l.b16 %v1664
        %v1738 = vunpack.c.h.b16 %v1664
        %v1739 = vunpack.c.l.b16 %v1665
        %v1740 = vunpack.c.h.b16 %v1665
        %v1741 = vunpack.c.l.b16 %v1666
        %v1742 = vunpack.c.h.b16 %v1666
        %v1743 = vunpack.c.l.b16 %v1667
        %v1744 = vunpack.c.h.b16 %v1667
        %v1745 = vunpack.c.l.b16 %v1668
        %v1746 = vunpack.c.h.b16 %v1668
        %v1747 = vunpack.c.l.b16 %v1669
        %v1748 = vunpack.c.h.b16 %v1669
        %v1749 = vunpack.c.l.b16 %v1670
        %v1750 = vunpack.c.h.b16 %v1670
        %v1751 = vunpack.c.l.b16 %v1671
        %v1752 = vunpack.c.h.b16 %v1671
        %v1753 = vunpack.c.l.b16 %v1672
        %v1754 = vunpack.c.h.b16 %v1672
        %v1755 = vunpack.c.l.b16 %v1673
        %v1756 = vunpack.c.h.b16 %v1673
        %v1757 = vunpack.c.l.b16 %v1674
        %v1758 = vunpack.c.h.b16 %v1674
        %v1759 = vunpack.c.l.b16 %v1675
        %v1760 = vunpack.c.h.b16 %v1675
        %v1761 = vunpack.c.l.b16 %v1676
        %v1762 = vunpack.c.h.b16 %v1676
        %v1763 = vunpack.c.l.b16 %v1677
        %v1764 = vunpack.c.h.b16 %v1677
        %v1765 = vunpack.c.l.b16 %v1678
        %v1766 = vunpack.c.h.b16 %v1678
        %v1767 = vunpack.c.l.b16 %v1679
        %v1768 = vunpack.c.h.b16 %v1679
        %v1769 = vpack.c.b16 %v1739, %v1737
        %v1770 = vpack.c.b16 %v1740, %v1738
        %v1771 = vpack.c.b16 %v1743, %v1741
        %v1772 = vpack.c.b16 %v1744, %v1742
        %v1773 = vpack.c.b16 %v1747, %v1745
        %v1774 = vpack.c.b16 %v1748, %v1746
        %v1775 = vpack.c.b16 %v1751, %v1749
        %v1776 = vpack.c.b16 %v1752, %v1750
        %v1777 = vpack.c.b16 %v1755, %v1753
        %v1778 = vpack.c.b16 %v1756, %v1754
        %v1779 = vpack.c.b16 %v1759, %v1757
        %v1780 = vpack.c.b16 %v1760, %v1758
        %v1781 = vpack.c.b16 %v1763, %v1761
        %v1782 = vpack.c.b16 %v1764, %v1762
        %v1783 = vpack.c.b16 %v1767, %v1765
        %v1784 = vpack.c.b16 %v1768, %v1766
        %1801 = vmatprep.subr.bf16.mxu0 %v1784
        %1802 = vmatpush1.bf16.msra.mxu0 %v1783
        %1803 = vmatprep.subr.bf16.mxu0 %v1782
        %1804 = vmatpush1.bf16.msra.mxu0 %v1781
        %1805 = vmatprep.subr.bf16.mxu0 %v1780
        %1806 = vmatpush1.bf16.msra.mxu0 %v1779
        %1807 = vmatprep.subr.bf16.mxu0 %v1778
        %1808 = vmatpush1.bf16.msra.mxu0 %v1777
        %1809 = vmatprep.subr.bf16.mxu0 %v1776
        %1810 = vmatpush1.bf16.msra.mxu0 %v1775
        %1811 = vmatprep.subr.bf16.mxu0 %v1774
        %1812 = vmatpush1.bf16.msra.mxu0 %v1773
        %1813 = vmatprep.subr.bf16.mxu0 %v1772
        %1814 = vmatpush1.bf16.msra.mxu0 %v1771
        %1815 = vmatprep.subr.bf16.mxu0 %v1770
        %1816 = vmatpush1.bf16.msra.mxu0 %v1769
        %1817 = vmatprep.subr.bf16.mxu0 0
        %1818 = vmatpush2.bf16.msra.mxu0 0
        %1819 = vmatprep.subr.bf16.mxu0 0
        %1820 = vmatpush2.bf16.msra.mxu0 0
        %1821 = vmatprep.subr.bf16.mxu0 0
        %1822 = vmatpush2.bf16.msra.mxu0 0
        %1823 = vmatprep.subr.bf16.mxu0 0
        %1824 = vmatpush2.bf16.msra.mxu0 0
        %1825 = vmatprep.subr.bf16.mxu0 0
        %1826 = vmatpush2.bf16.msra.mxu0 0
        %1827 = vmatprep.subr.bf16.mxu0 0
        %1828 = vmatpush2.bf16.msra.mxu0 0
        %1829 = vmatprep.subr.bf16.mxu0 0
        %1830 = vmatpush2.bf16.msra.mxu0 0
        %1831 = vmatprep.subr.bf16.mxu0 0
        %1832 = vmatpush2.bf16.msra.mxu0 0
        %1833 = vmatprep.mubr.bf16.mxu0 0
        %1834 = vmatmul.mubr.bf16.gmra.mxu0 %v1706
        %v1835 = vpop.f32.mrf.mxu0
        %v1836 = vadd.f32 0.0, %v1835
        %v1837 = vpop.f32.mrf.mxu0
        %v1838 = vadd.f32 0.0, %v1837
        %v1839 = vpop.f32.mrf.mxu0
        %v1840 = vadd.f32 0.0, %v1839
        %v1841 = vpop.f32.mrf.mxu0
        %v1842 = vadd.f32 0.0, %v1841
        %1843 = vmatprep.mubr.bf16.mxu0 0
        %1844 = vmatmul.mubr.bf16.gmra.mxu0 %v1714
        %v1845 = vpop.f32.mrf.mxu0
        %v1846 = vadd.f32 0.0, %v1845
        %v1847 = vpop.f32.mrf.mxu0
        %v1848 = vadd.f32 0.0, %v1847
        %v1849 = vpop.f32.mrf.mxu0
        %v1850 = vadd.f32 0.0, %v1849
        %v1851 = vpop.f32.mrf.mxu0
        %v1852 = vadd.f32 0.0, %v1851
        %1853 = vmatprep.mubr.bf16.mxu0 0
        %1854 = vmatmul.mubr.bf16.gmra.mxu0 %v1717
        %v1855 = vpop.f32.mrf.mxu0
        %v1856 = vadd.f32 0.0, %v1855
        %v1857 = vpop.f32.mrf.mxu0
        %v1858 = vadd.f32 0.0, %v1857
        %v1859 = vpop.f32.mrf.mxu0
        %v1860 = vadd.f32 0.0, %v1859
        %v1861 = vpop.f32.mrf.mxu0
        %v1862 = vadd.f32 0.0, %v1861
        %1863 = vdwg.mxu0
        %v1883 = vunpack.c.l.b16 %v1647
        %v1884 = vunpack.c.h.b16 %v1647
        %v1885 = vunpack.c.l.b16 %v1648
        %v1886 = vunpack.c.h.b16 %v1648
        %v1887 = vunpack.c.l.b16 %v1649
        %v1888 = vunpack.c.h.b16 %v1649
        %v1889 = vunpack.c.l.b16 %v1650
        %v1890 = vunpack.c.h.b16 %v1650
        %v1891 = vunpack.c.l.b16 %v1651
        %v1892 = vunpack.c.h.b16 %v1651
        %v1893 = vunpack.c.l.b16 %v1652
        %v1894 = vunpack.c.h.b16 %v1652
        %v1895 = vunpack.c.l.b16 %v1653
        %v1896 = vunpack.c.h.b16 %v1653
        %v1897 = vunpack.c.l.b16 %v1654
        %v1898 = vunpack.c.h.b16 %v1654
        %v1899 = vunpack.c.l.b16 %v1655
        %v1900 = vunpack.c.h.b16 %v1655
        %v1901 = vunpack.c.l.b16 %v1656
        %v1902 = vunpack.c.h.b16 %v1656
        %v1903 = vunpack.c.l.b16 %v1657
        %v1904 = vunpack.c.h.b16 %v1657
        %v1905 = vunpack.c.l.b16 %v1658
        %v1906 = vunpack.c.h.b16 %v1658
        %v1907 = vunpack.c.l.b16 %v1659
        %v1908 = vunpack.c.h.b16 %v1659
        %v1909 = vunpack.c.l.b16 %v1660
        %v1910 = vunpack.c.h.b16 %v1660
        %v1911 = vunpack.c.l.b16 %v1661
        %v1912 = vunpack.c.h.b16 %v1661
        %v1913 = vunpack.c.l.b16 %v1662
        %v1914 = vunpack.c.h.b16 %v1662
        %v1915 = vpack.c.b16 %v1885, %v1883
        %v1916 = vpack.c.b16 %v1886, %v1884
        %v1917 = vpack.c.b16 %v1889, %v1887
        %v1918 = vpack.c.b16 %v1890, %v1888
        %v1919 = vpack.c.b16 %v1893, %v1891
        %v1920 = vpack.c.b16 %v1894, %v1892
        %v1921 = vpack.c.b16 %v1897, %v1895
        %v1922 = vpack.c.b16 %v1898, %v1896
        %v1923 = vpack.c.b16 %v1901, %v1899
        %v1924 = vpack.c.b16 %v1902, %v1900
        %v1925 = vpack.c.b16 %v1905, %v1903
        %v1926 = vpack.c.b16 %v1906, %v1904
        %v1927 = vpack.c.b16 %v1909, %v1907
        %v1928 = vpack.c.b16 %v1910, %v1908
        %v1929 = vpack.c.b16 %v1913, %v1911
        %v1930 = vpack.c.b16 %v1914, %v1912
        %1947 = vmatprep.subr.bf16.mxu0 %v1930
        %1948 = vmatpush1.bf16.msra.mxu0 %v1929
        %1949 = vmatprep.subr.bf16.mxu0 %v1928
        %1950 = vmatpush1.bf16.msra.mxu0 %v1927
        %1951 = vmatprep.subr.bf16.mxu0 %v1926
        %1952 = vmatpush1.bf16.msra.mxu0 %v1925
        %1953 = vmatprep.subr.bf16.mxu0 %v1924
        %1954 = vmatpush1.bf16.msra.mxu0 %v1923
        %1955 = vmatprep.subr.bf16.mxu0 %v1922
        %1956 = vmatpush1.bf16.msra.mxu0 %v1921
        %1957 = vmatprep.subr.bf16.mxu0 %v1920
        %1958 = vmatpush1.bf16.msra.mxu0 %v1919
        %1959 = vmatprep.subr.bf16.mxu0 %v1918
        %1960 = vmatpush1.bf16.msra.mxu0 %v1917
        %1961 = vmatprep.subr.bf16.mxu0 %v1916
        %1962 = vmatpush1.bf16.msra.mxu0 %v1915
        %1963 = vmatprep.subr.bf16.mxu0 0
        %1964 = vmatpush2.bf16.msra.mxu0 0
        %1965 = vmatprep.subr.bf16.mxu0 0
        %1966 = vmatpush2.bf16.msra.mxu0 0
        %1967 = vmatprep.subr.bf16.mxu0 0
        %1968 = vmatpush2.bf16.msra.mxu0 0
        %1969 = vmatprep.subr.bf16.mxu0 0
        %1970 = vmatpush2.bf16.msra.mxu0 0
        %1971 = vmatprep.subr.bf16.mxu0 0
        %1972 = vmatpush2.bf16.msra.mxu0 0
        %1973 = vmatprep.subr.bf16.mxu0 0
        %1974 = vmatpush2.bf16.msra.mxu0 0
        %1975 = vmatprep.subr.bf16.mxu0 0
        %1976 = vmatpush2.bf16.msra.mxu0 0
        %1977 = vmatprep.subr.bf16.mxu0 0
        %1978 = vmatpush2.bf16.msra.mxu0 0
        %1979 = vmatprep.mubr.bf16.mxu0 0
        %1980 = vmatmul.mubr.bf16.gmra.mxu0 %v1692
        %v1981 = vpop.f32.mrf.mxu0
        %v1982 = vadd.f32 %v1836, %v1981
        %v1983 = vpop.f32.mrf.mxu0
        %v1984 = vadd.f32 %v1838, %v1983
        %v1985 = vpop.f32.mrf.mxu0
        %v1986 = vadd.f32 %v1840, %v1985
        %v1987 = vpop.f32.mrf.mxu0
        %v1988 = vadd.f32 %v1842, %v1987
        %1989 = vmatprep.mubr.bf16.mxu0 0
        %1990 = vmatmul.mubr.bf16.gmra.mxu0 %v1693
        %v1991 = vpop.f32.mrf.mxu0
        %v1992 = vadd.f32 %v1846, %v1991
        %v1993 = vpop.f32.mrf.mxu0
        %v1994 = vadd.f32 %v1848, %v1993
        %v1995 = vpop.f32.mrf.mxu0
        %v1996 = vadd.f32 %v1850, %v1995
        %v1997 = vpop.f32.mrf.mxu0
        %v1998 = vadd.f32 %v1852, %v1997
        %1999 = vmatprep.mubr.bf16.mxu0 0
        %2000 = vmatmul.mubr.bf16.gmra.mxu0 %v1694
        %v2001 = vpop.f32.mrf.mxu0
        %v2002 = vadd.f32 %v1856, %v2001
        %v2003 = vpop.f32.mrf.mxu0
        %v2004 = vadd.f32 %v1858, %v2003
        %v2005 = vpop.f32.mrf.mxu0
        %v2006 = vadd.f32 %v1860, %v2005
        %v2007 = vpop.f32.mrf.mxu0
        %v2008 = vadd.f32 %v1862, %v2007
        %2009 = vdwg.mxu0
        %v2010 = vld [vmem:[#allocation2] sm:$0xe]
        %v2011 = vld [vmem:[#allocation2 + $0x14] sm:$0xf]
        %s2012 = scalar_lea.vmem [#allocation8], 256
        %v2013 = vld [vmem:[%s2012] sm:$0xff]
        %v2014 = vld [vmem:[%s2012 + $0x8] sm:$0xff]
        %v2015 = vld [vmem:[%s2012 + $0x10] sm:$0xff]
        %v2016 = vld [vmem:[%s2012 + $0x18] sm:$0xff]
        %v2017 = vld [vmem:[%s2012 + $0x20] sm:$0xff]
        %v2018 = vld [vmem:[%s2012 + $0x28] sm:$0xff]
        %v2019 = vld [vmem:[%s2012 + $0x30] sm:$0xff]
        %v2020 = vld [vmem:[%s2012 + $0x38] sm:$0xff]
        %v2021 = vld [vmem:[%s2012 + $0x40] sm:$0xff]
        %v2022 = vld [vmem:[%s2012 + $0x48] sm:$0xff]
        %v2023 = vld [vmem:[%s2012 + $0x50] sm:$0xff]
        %v2024 = vld [vmem:[%s2012 + $0x58] sm:$0xff]
        %v2025 = vld [vmem:[%s2012 + $0x60] sm:$0xff]
        %v2026 = vld [vmem:[%s2012 + $0x68] sm:$0xff]
        %v2027 = vld [vmem:[%s2012 + $0x70] sm:$0xff]
        %v2028 = vld [vmem:[%s2012 + $0x78] sm:$0xff]
        %v2031 = vunpack.c.l.b16 %v2010
        %v2032 = vunpack.c.l.b16 %v2011
        %v2033 = vpack.c.b16 %v1687, %v2031
        %v2034 = vpack.c.b16 %v2032, %v1690
        %v2035 = vrot.slane %v2033, 1
        %v2036 = vrot.slane %v1693, 1
        %v2037 = vsel %vm696, %v2035, %v2036
        %v2038 = vrot.slane %v2034, 1
        %v2039 = vsel %vm696, %v2036, %v2038
        %v2059 = vunpack.c.l.b16 %v2013
        %v2060 = vunpack.c.h.b16 %v2013
        %v2061 = vunpack.c.l.b16 %v2014
        %v2062 = vunpack.c.h.b16 %v2014
        %v2063 = vunpack.c.l.b16 %v2015
        %v2064 = vunpack.c.h.b16 %v2015
        %v2065 = vunpack.c.l.b16 %v2016
        %v2066 = vunpack.c.h.b16 %v2016
        %v2067 = vunpack.c.l.b16 %v2017
        %v2068 = vunpack.c.h.b16 %v2017
        %v2069 = vunpack.c.l.b16 %v2018
        %v2070 = vunpack.c.h.b16 %v2018
        %v2071 = vunpack.c.l.b16 %v2019
        %v2072 = vunpack.c.h.b16 %v2019
        %v2073 = vunpack.c.l.b16 %v2020
        %v2074 = vunpack.c.h.b16 %v2020
        %v2075 = vunpack.c.l.b16 %v2021
        %v2076 = vunpack.c.h.b16 %v2021
        %v2077 = vunpack.c.l.b16 %v2022
        %v2078 = vunpack.c.h.b16 %v2022
        %v2079 = vunpack.c.l.b16 %v2023
        %v2080 = vunpack.c.h.b16 %v2023
        %v2081 = vunpack.c.l.b16 %v2024
        %v2082 = vunpack.c.h.b16 %v2024
        %v2083 = vunpack.c.l.b16 %v2025
        %v2084 = vunpack.c.h.b16 %v2025
        %v2085 = vunpack.c.l.b16 %v2026
        %v2086 = vunpack.c.h.b16 %v2026
        %v2087 = vunpack.c.l.b16 %v2027
        %v2088 = vunpack.c.h.b16 %v2027
        %v2089 = vunpack.c.l.b16 %v2028
        %v2090 = vunpack.c.h.b16 %v2028
        %v2091 = vpack.c.b16 %v2061, %v2059
        %v2092 = vpack.c.b16 %v2062, %v2060
        %v2093 = vpack.c.b16 %v2065, %v2063
        %v2094 = vpack.c.b16 %v2066, %v2064
        %v2095 = vpack.c.b16 %v2069, %v2067
        %v2096 = vpack.c.b16 %v2070, %v2068
        %v2097 = vpack.c.b16 %v2073, %v2071
        %v2098 = vpack.c.b16 %v2074, %v2072
        %v2099 = vpack.c.b16 %v2077, %v2075
        %v2100 = vpack.c.b16 %v2078, %v2076
        %v2101 = vpack.c.b16 %v2081, %v2079
        %v2102 = vpack.c.b16 %v2082, %v2080
        %v2103 = vpack.c.b16 %v2085, %v2083
        %v2104 = vpack.c.b16 %v2086, %v2084
        %v2105 = vpack.c.b16 %v2089, %v2087
        %v2106 = vpack.c.b16 %v2090, %v2088
        %2123 = vmatprep.subr.bf16.mxu0 %v2106
        %2124 = vmatpush1.bf16.msra.mxu0 %v2105
        %2125 = vmatprep.subr.bf16.mxu0 %v2104
        %2126 = vmatpush1.bf16.msra.mxu0 %v2103
        %2127 = vmatprep.subr.bf16.mxu0 %v2102
        %2128 = vmatpush1.bf16.msra.mxu0 %v2101
        %2129 = vmatprep.subr.bf16.mxu0 %v2100
        %2130 = vmatpush1.bf16.msra.mxu0 %v2099
        %2131 = vmatprep.subr.bf16.mxu0 %v2098
        %2132 = vmatpush1.bf16.msra.mxu0 %v2097
        %2133 = vmatprep.subr.bf16.mxu0 %v2096
        %2134 = vmatpush1.bf16.msra.mxu0 %v2095
        %2135 = vmatprep.subr.bf16.mxu0 %v2094
        %2136 = vmatpush1.bf16.msra.mxu0 %v2093
        %2137 = vmatprep.subr.bf16.mxu0 %v2092
        %2138 = vmatpush1.bf16.msra.mxu0 %v2091
        %2139 = vmatprep.subr.bf16.mxu0 0
        %2140 = vmatpush2.bf16.msra.mxu0 0
        %2141 = vmatprep.subr.bf16.mxu0 0
        %2142 = vmatpush2.bf16.msra.mxu0 0
        %2143 = vmatprep.subr.bf16.mxu0 0
        %2144 = vmatpush2.bf16.msra.mxu0 0
        %2145 = vmatprep.subr.bf16.mxu0 0
        %2146 = vmatpush2.bf16.msra.mxu0 0
        %2147 = vmatprep.subr.bf16.mxu0 0
        %2148 = vmatpush2.bf16.msra.mxu0 0
        %2149 = vmatprep.subr.bf16.mxu0 0
        %2150 = vmatpush2.bf16.msra.mxu0 0
        %2151 = vmatprep.subr.bf16.mxu0 0
        %2152 = vmatpush2.bf16.msra.mxu0 0
        %2153 = vmatprep.subr.bf16.mxu0 0
        %2154 = vmatpush2.bf16.msra.mxu0 0
        %2155 = vmatprep.mubr.bf16.mxu0 0
        %2156 = vmatmul.mubr.bf16.gmra.mxu0 %v2037
        %v2157 = vpop.f32.mrf.mxu0
        %v2158 = vadd.f32 0.0, %v2157
        %v2159 = vpop.f32.mrf.mxu0
        %v2160 = vadd.f32 0.0, %v2159
        %v2161 = vpop.f32.mrf.mxu0
        %v2162 = vadd.f32 0.0, %v2161
        %v2163 = vpop.f32.mrf.mxu0
        %v2164 = vadd.f32 0.0, %v2163
        %2165 = vmatprep.mubr.bf16.mxu0 0
        %2166 = vmatmul.mubr.bf16.gmra.mxu0 %v2039
        %v2167 = vpop.f32.mrf.mxu0
        %v2168 = vadd.f32 0.0, %v2167
        %v2169 = vpop.f32.mrf.mxu0
        %v2170 = vadd.f32 0.0, %v2169
        %v2171 = vpop.f32.mrf.mxu0
        %v2172 = vadd.f32 0.0, %v2171
        %v2173 = vpop.f32.mrf.mxu0
        %v2174 = vadd.f32 0.0, %v2173
        %2175 = vmatprep.mubr.bf16.mxu0 0
        %2176 = vmatmul.mubr.bf16.gmra.mxu0 %v2038
        %v2177 = vpop.f32.mrf.mxu0
        %v2178 = vadd.f32 0.0, %v2177
        %v2179 = vpop.f32.mrf.mxu0
        %v2180 = vadd.f32 0.0, %v2179
        %v2181 = vpop.f32.mrf.mxu0
        %v2182 = vadd.f32 0.0, %v2181
        %v2183 = vpop.f32.mrf.mxu0
        %v2184 = vadd.f32 0.0, %v2183
        %2185 = vdwg.mxu0
        %v2186 = vadd.f32 %v1982, %v2158
        %v2187 = vadd.f32 %v1984, %v2160
        %v2188 = vadd.f32 %v1986, %v2162
        %v2189 = vadd.f32 %v1988, %v2164
        %v2190 = vadd.f32 %v1992, %v2168
        %v2191 = vadd.f32 %v1994, %v2170
        %v2192 = vadd.f32 %v1996, %v2172
        %v2193 = vadd.f32 %v1998, %v2174
        %v2194 = vadd.f32 %v2002, %v2178
        %v2195 = vadd.f32 %v2004, %v2180
        %v2196 = vadd.f32 %v2006, %v2182
        %v2197 = vadd.f32 %v2008, %v2184
        %v2198 = vld [vmem:[#allocation2 + $0x4] sm:$0xf]
        %v2199 = vld [vmem:[#allocation2 + $0x8] sm:$0xf]
        %v2200 = vld [vmem:[#allocation2 + $0xc] sm:$0xf]
        %v2201 = vld [vmem:[#allocation2 + $0x10] sm:$0xf]
        %v2202 = vld [vmem:[#allocation2 + $0x14] sm:$0xf]
        %v2203 = vld [vmem:[#allocation2 + $0x18] sm:$0x7]
        %s2204 = scalar_lea.vmem [#allocation8], 384
        %v2205 = vld [vmem:[%s2204] sm:$0xff]
        %v2206 = vld [vmem:[%s2204 + $0x8] sm:$0xff]
        %v2207 = vld [vmem:[%s2204 + $0x10] sm:$0xff]
        %v2208 = vld [vmem:[%s2204 + $0x18] sm:$0xff]
        %v2209 = vld [vmem:[%s2204 + $0x20] sm:$0xff]
        %v2210 = vld [vmem:[%s2204 + $0x28] sm:$0xff]
        %v2211 = vld [vmem:[%s2204 + $0x30] sm:$0xff]
        %v2212 = vld [vmem:[%s2204 + $0x38] sm:$0xff]
        %v2213 = vld [vmem:[%s2204 + $0x40] sm:$0xff]
        %v2214 = vld [vmem:[%s2204 + $0x48] sm:$0xff]
        %v2215 = vld [vmem:[%s2204 + $0x50] sm:$0xff]
        %v2216 = vld [vmem:[%s2204 + $0x58] sm:$0xff]
        %v2217 = vld [vmem:[%s2204 + $0x60] sm:$0xff]
        %v2218 = vld [vmem:[%s2204 + $0x68] sm:$0xff]
        %v2219 = vld [vmem:[%s2204 + $0x70] sm:$0xff]
        %v2220 = vld [vmem:[%s2204 + $0x78] sm:$0xff]
        %v2227 = vunpack.c.l.b16 %v2198
        %v2228 = vunpack.c.l.b16 %v2199
        %v2229 = vunpack.c.l.b16 %v2200
        %v2230 = vunpack.c.l.b16 %v2201
        %v2231 = vunpack.c.l.b16 %v2202
        %v2232 = vunpack.c.l.b16 %v2203
        %v2233 = vpack.c.b16 %v2228, %v2227
        %v2234 = vpack.c.b16 %v2230, %v2229
        %v2235 = vpack.c.b16 %v2232, %v2231
        %v2237 = vshrl.u32 %v2233, 16
        %v2239 = vshll.u32 %v2233, 16
        %v2241 = vrot.slane %v2239, 1
        %v2242 = vor.u32 %v2237, %v2241
        %v2244 = vshll.u32 %v2234, 16
        %v2246 = vrot.slane %v2244, 1
        %v2247 = vsel %vm472, %v2242, %v2246
        %v2248 = vshrl.u32 %v2234, 16
        %v2250 = vor.u32 %v2248, %v2246
        %v2252 = vshll.u32 %v2235, 16
        %v2254 = vrot.slane %v2252, 1
        %v2255 = vsel %vm472, %v2250, %v2254
        %v2256 = vshrl.u32 %v2235, 16
        %v2258 = vor.u32 %v2256, %v2254
        %v2278 = vunpack.c.l.b16 %v2205
        %v2279 = vunpack.c.h.b16 %v2205
        %v2280 = vunpack.c.l.b16 %v2206
        %v2281 = vunpack.c.h.b16 %v2206
        %v2282 = vunpack.c.l.b16 %v2207
        %v2283 = vunpack.c.h.b16 %v2207
        %v2284 = vunpack.c.l.b16 %v2208
        %v2285 = vunpack.c.h.b16 %v2208
        %v2286 = vunpack.c.l.b16 %v2209
        %v2287 = vunpack.c.h.b16 %v2209
        %v2288 = vunpack.c.l.b16 %v2210
        %v2289 = vunpack.c.h.b16 %v2210
        %v2290 = vunpack.c.l.b16 %v2211
        %v2291 = vunpack.c.h.b16 %v2211
        %v2292 = vunpack.c.l.b16 %v2212
        %v2293 = vunpack.c.h.b16 %v2212
        %v2294 = vunpack.c.l.b16 %v2213
        %v2295 = vunpack.c.h.b16 %v2213
        %v2296 = vunpack.c.l.b16 %v2214
        %v2297 = vunpack.c.h.b16 %v2214
        %v2298 = vunpack.c.l.b16 %v2215
        %v2299 = vunpack.c.h.b16 %v2215
        %v2300 = vunpack.c.l.b16 %v2216
        %v2301 = vunpack.c.h.b16 %v2216
        %v2302 = vunpack.c.l.b16 %v2217
        %v2303 = vunpack.c.h.b16 %v2217
        %v2304 = vunpack.c.l.b16 %v2218
        %v2305 = vunpack.c.h.b16 %v2218
        %v2306 = vunpack.c.l.b16 %v2219
        %v2307 = vunpack.c.h.b16 %v2219
        %v2308 = vunpack.c.l.b16 %v2220
        %v2309 = vunpack.c.h.b16 %v2220
        %v2310 = vpack.c.b16 %v2280, %v2278
        %v2311 = vpack.c.b16 %v2281, %v2279
        %v2312 = vpack.c.b16 %v2284, %v2282
        %v2313 = vpack.c.b16 %v2285, %v2283
        %v2314 = vpack.c.b16 %v2288, %v2286
        %v2315 = vpack.c.b16 %v2289, %v2287
        %v2316 = vpack.c.b16 %v2292, %v2290
        %v2317 = vpack.c.b16 %v2293, %v2291
        %v2318 = vpack.c.b16 %v2296, %v2294
        %v2319 = vpack.c.b16 %v2297, %v2295
        %v2320 = vpack.c.b16 %v2300, %v2298
        %v2321 = vpack.c.b16 %v2301, %v2299
        %v2322 = vpack.c.b16 %v2304, %v2302
        %v2323 = vpack.c.b16 %v2305, %v2303
        %v2324 = vpack.c.b16 %v2308, %v2306
        %v2325 = vpack.c.b16 %v2309, %v2307
        %2342 = vmatprep.subr.bf16.mxu0 %v2325
        %2343 = vmatpush1.bf16.msra.mxu0 %v2324
        %2344 = vmatprep.subr.bf16.mxu0 %v2323
        %2345 = vmatpush1.bf16.msra.mxu0 %v2322
        %2346 = vmatprep.subr.bf16.mxu0 %v2321
        %2347 = vmatpush1.bf16.msra.mxu0 %v2320
        %2348 = vmatprep.subr.bf16.mxu0 %v2319
        %2349 = vmatpush1.bf16.msra.mxu0 %v2318
        %2350 = vmatprep.subr.bf16.mxu0 %v2317
        %2351 = vmatpush1.bf16.msra.mxu0 %v2316
        %2352 = vmatprep.subr.bf16.mxu0 %v2315
        %2353 = vmatpush1.bf16.msra.mxu0 %v2314
        %2354 = vmatprep.subr.bf16.mxu0 %v2313
        %2355 = vmatpush1.bf16.msra.mxu0 %v2312
        %2356 = vmatprep.subr.bf16.mxu0 %v2311
        %2357 = vmatpush1.bf16.msra.mxu0 %v2310
        %2358 = vmatprep.subr.bf16.mxu0 0
        %2359 = vmatpush2.bf16.msra.mxu0 0
        %2360 = vmatprep.subr.bf16.mxu0 0
        %2361 = vmatpush2.bf16.msra.mxu0 0
        %2362 = vmatprep.subr.bf16.mxu0 0
        %2363 = vmatpush2.bf16.msra.mxu0 0
        %2364 = vmatprep.subr.bf16.mxu0 0
        %2365 = vmatpush2.bf16.msra.mxu0 0
        %2366 = vmatprep.subr.bf16.mxu0 0
        %2367 = vmatpush2.bf16.msra.mxu0 0
        %2368 = vmatprep.subr.bf16.mxu0 0
        %2369 = vmatpush2.bf16.msra.mxu0 0
        %2370 = vmatprep.subr.bf16.mxu0 0
        %2371 = vmatpush2.bf16.msra.mxu0 0
        %2372 = vmatprep.subr.bf16.mxu0 0
        %2373 = vmatpush2.bf16.msra.mxu0 0
        %2374 = vmatprep.mubr.bf16.mxu0 0
        %2375 = vmatmul.mubr.bf16.gmra.mxu0 %v2247
        %v2376 = vpop.f32.mrf.mxu0
        %v2377 = vadd.f32 0.0, %v2376
        %v2378 = vpop.f32.mrf.mxu0
        %v2379 = vadd.f32 0.0, %v2378
        %v2380 = vpop.f32.mrf.mxu0
        %v2381 = vadd.f32 0.0, %v2380
        %v2382 = vpop.f32.mrf.mxu0
        %v2383 = vadd.f32 0.0, %v2382
        %2384 = vmatprep.mubr.bf16.mxu0 0
        %2385 = vmatmul.mubr.bf16.gmra.mxu0 %v2255
        %v2386 = vpop.f32.mrf.mxu0
        %v2387 = vadd.f32 0.0, %v2386
        %v2388 = vpop.f32.mrf.mxu0
        %v2389 = vadd.f32 0.0, %v2388
        %v2390 = vpop.f32.mrf.mxu0
        %v2391 = vadd.f32 0.0, %v2390
        %v2392 = vpop.f32.mrf.mxu0
        %v2393 = vadd.f32 0.0, %v2392
        %2394 = vmatprep.mubr.bf16.mxu0 0
        %2395 = vmatmul.mubr.bf16.gmra.mxu0 %v2258
        %v2396 = vpop.f32.mrf.mxu0
        %v2397 = vadd.f32 0.0, %v2396
        %v2398 = vpop.f32.mrf.mxu0
        %v2399 = vadd.f32 0.0, %v2398
        %v2400 = vpop.f32.mrf.mxu0
        %v2401 = vadd.f32 0.0, %v2400
        %v2402 = vpop.f32.mrf.mxu0
        %v2403 = vadd.f32 0.0, %v2402
        %2404 = vdwg.mxu0
        %v2405 = vadd.f32 %v2186, %v2377
        %v2406 = vadd.f32 %v2187, %v2379
        %v2407 = vadd.f32 %v2188, %v2381
        %v2408 = vadd.f32 %v2189, %v2383
        %v2409 = vadd.f32 %v2190, %v2387
        %v2410 = vadd.f32 %v2191, %v2389
        %v2411 = vadd.f32 %v2192, %v2391
        %v2412 = vadd.f32 %v2193, %v2393
        %v2413 = vadd.f32 %v2194, %v2397
        %v2414 = vadd.f32 %v2195, %v2399
        %v2415 = vadd.f32 %v2196, %v2401
        %v2416 = vadd.f32 %v2197, %v2403
        %v2417 = vld [vmem:[#allocation2 + $0x4] sm:$0xe]
        %v2418 = vld [vmem:[#allocation2 + $0x18] sm:$0xf]
        %s2419 = scalar_lea.vmem [#allocation8], 512
        %v2420 = vld [vmem:[%s2419] sm:$0xff]
        %v2421 = vld [vmem:[%s2419 + $0x8] sm:$0xff]
        %v2422 = vld [vmem:[%s2419 + $0x10] sm:$0xff]
        %v2423 = vld [vmem:[%s2419 + $0x18] sm:$0xff]
        %v2424 = vld [vmem:[%s2419 + $0x20] sm:$0xff]
        %v2425 = vld [vmem:[%s2419 + $0x28] sm:$0xff]
        %v2426 = vld [vmem:[%s2419 + $0x30] sm:$0xff]
        %v2427 = vld [vmem:[%s2419 + $0x38] sm:$0xff]
        %v2428 = vld [vmem:[%s2419 + $0x40] sm:$0xff]
        %v2429 = vld [vmem:[%s2419 + $0x48] sm:$0xff]
        %v2430 = vld [vmem:[%s2419 + $0x50] sm:$0xff]
        %v2431 = vld [vmem:[%s2419 + $0x58] sm:$0xff]
        %v2432 = vld [vmem:[%s2419 + $0x60] sm:$0xff]
        %v2433 = vld [vmem:[%s2419 + $0x68] sm:$0xff]
        %v2434 = vld [vmem:[%s2419 + $0x70] sm:$0xff]
        %v2435 = vld [vmem:[%s2419 + $0x78] sm:$0xff]
        %v2438 = vunpack.c.l.b16 %v2417
        %v2439 = vunpack.c.l.b16 %v2418
        %v2440 = vpack.c.b16 %v2228, %v2438
        %v2441 = vpack.c.b16 %v2439, %v2231
        %v2442 = vrot.slane %v2440, 1
        %v2443 = vrot.slane %v2234, 1
        %v2444 = vsel %vm696, %v2442, %v2443
        %v2445 = vrot.slane %v2441, 1
        %v2446 = vsel %vm696, %v2443, %v2445
        %v2466 = vunpack.c.l.b16 %v2420
        %v2467 = vunpack.c.h.b16 %v2420
        %v2468 = vunpack.c.l.b16 %v2421
        %v2469 = vunpack.c.h.b16 %v2421
        %v2470 = vunpack.c.l.b16 %v2422
        %v2471 = vunpack.c.h.b16 %v2422
        %v2472 = vunpack.c.l.b16 %v2423
        %v2473 = vunpack.c.h.b16 %v2423
        %v2474 = vunpack.c.l.b16 %v2424
        %v2475 = vunpack.c.h.b16 %v2424
        %v2476 = vunpack.c.l.b16 %v2425
        %v2477 = vunpack.c.h.b16 %v2425
        %v2478 = vunpack.c.l.b16 %v2426
        %v2479 = vunpack.c.h.b16 %v2426
        %v2480 = vunpack.c.l.b16 %v2427
        %v2481 = vunpack.c.h.b16 %v2427
        %v2482 = vunpack.c.l.b16 %v2428
        %v2483 = vunpack.c.h.b16 %v2428
        %v2484 = vunpack.c.l.b16 %v2429
        %v2485 = vunpack.c.h.b16 %v2429
        %v2486 = vunpack.c.l.b16 %v2430
        %v2487 = vunpack.c.h.b16 %v2430
        %v2488 = vunpack.c.l.b16 %v2431
        %v2489 = vunpack.c.h.b16 %v2431
        %v2490 = vunpack.c.l.b16 %v2432
        %v2491 = vunpack.c.h.b16 %v2432
        %v2492 = vunpack.c.l.b16 %v2433
        %v2493 = vunpack.c.h.b16 %v2433
        %v2494 = vunpack.c.l.b16 %v2434
        %v2495 = vunpack.c.h.b16 %v2434
        %v2496 = vunpack.c.l.b16 %v2435
        %v2497 = vunpack.c.h.b16 %v2435
        %v2498 = vpack.c.b16 %v2468, %v2466
        %v2499 = vpack.c.b16 %v2469, %v2467
        %v2500 = vpack.c.b16 %v2472, %v2470
        %v2501 = vpack.c.b16 %v2473, %v2471
        %v2502 = vpack.c.b16 %v2476, %v2474
        %v2503 = vpack.c.b16 %v2477, %v2475
        %v2504 = vpack.c.b16 %v2480, %v2478
        %v2505 = vpack.c.b16 %v2481, %v2479
        %v2506 = vpack.c.b16 %v2484, %v2482
        %v2507 = vpack.c.b16 %v2485, %v2483
        %v2508 = vpack.c.b16 %v2488, %v2486
        %v2509 = vpack.c.b16 %v2489, %v2487
        %v2510 = vpack.c.b16 %v2492, %v2490
        %v2511 = vpack.c.b16 %v2493, %v2491
        %v2512 = vpack.c.b16 %v2496, %v2494
        %v2513 = vpack.c.b16 %v2497, %v2495
        %2530 = vmatprep.subr.bf16.mxu0 %v2513
        %2531 = vmatpush1.bf16.msra.mxu0 %v2512
        %2532 = vmatprep.subr.bf16.mxu0 %v2511
        %2533 = vmatpush1.bf16.msra.mxu0 %v2510
        %2534 = vmatprep.subr.bf16.mxu0 %v2509
        %2535 = vmatpush1.bf16.msra.mxu0 %v2508
        %2536 = vmatprep.subr.bf16.mxu0 %v2507
        %2537 = vmatpush1.bf16.msra.mxu0 %v2506
        %2538 = vmatprep.subr.bf16.mxu0 %v2505
        %2539 = vmatpush1.bf16.msra.mxu0 %v2504
        %2540 = vmatprep.subr.bf16.mxu0 %v2503
        %2541 = vmatpush1.bf16.msra.mxu0 %v2502
        %2542 = vmatprep.subr.bf16.mxu0 %v2501
        %2543 = vmatpush1.bf16.msra.mxu0 %v2500
        %2544 = vmatprep.subr.bf16.mxu0 %v2499
        %2545 = vmatpush1.bf16.msra.mxu0 %v2498
        %2546 = vmatprep.subr.bf16.mxu0 0
        %2547 = vmatpush2.bf16.msra.mxu0 0
        %2548 = vmatprep.subr.bf16.mxu0 0
        %2549 = vmatpush2.bf16.msra.mxu0 0
        %2550 = vmatprep.subr.bf16.mxu0 0
        %2551 = vmatpush2.bf16.msra.mxu0 0
        %2552 = vmatprep.subr.bf16.mxu0 0
        %2553 = vmatpush2.bf16.msra.mxu0 0
        %2554 = vmatprep.subr.bf16.mxu0 0
        %2555 = vmatpush2.bf16.msra.mxu0 0
        %2556 = vmatprep.subr.bf16.mxu0 0
        %2557 = vmatpush2.bf16.msra.mxu0 0
        %2558 = vmatprep.subr.bf16.mxu0 0
        %2559 = vmatpush2.bf16.msra.mxu0 0
        %2560 = vmatprep.subr.bf16.mxu0 0
        %2561 = vmatpush2.bf16.msra.mxu0 0
        %2562 = vmatprep.mubr.bf16.mxu0 0
        %2563 = vmatmul.mubr.bf16.gmra.mxu0 %v2444
        %v2564 = vpop.f32.mrf.mxu0
        %v2565 = vadd.f32 0.0, %v2564
        %v2566 = vpop.f32.mrf.mxu0
        %v2567 = vadd.f32 0.0, %v2566
        %v2568 = vpop.f32.mrf.mxu0
        %v2569 = vadd.f32 0.0, %v2568
        %v2570 = vpop.f32.mrf.mxu0
        %v2571 = vadd.f32 0.0, %v2570
        %2572 = vmatprep.mubr.bf16.mxu0 0
        %2573 = vmatmul.mubr.bf16.gmra.mxu0 %v2446
        %v2574 = vpop.f32.mrf.mxu0
        %v2575 = vadd.f32 0.0, %v2574
        %v2576 = vpop.f32.mrf.mxu0
        %v2577 = vadd.f32 0.0, %v2576
        %v2578 = vpop.f32.mrf.mxu0
        %v2579 = vadd.f32 0.0, %v2578
        %v2580 = vpop.f32.mrf.mxu0
        %v2581 = vadd.f32 0.0, %v2580
        %2582 = vmatprep.mubr.bf16.mxu0 0
        %2583 = vmatmul.mubr.bf16.gmra.mxu0 %v2445
        %v2584 = vpop.f32.mrf.mxu0
        %v2585 = vadd.f32 0.0, %v2584
        %v2586 = vpop.f32.mrf.mxu0
        %v2587 = vadd.f32 0.0, %v2586
        %v2588 = vpop.f32.mrf.mxu0
        %v2589 = vadd.f32 0.0, %v2588
        %v2590 = vpop.f32.mrf.mxu0
        %v2591 = vadd.f32 0.0, %v2590
        %2592 = vdwg.mxu0
        %v2593 = vadd.f32 %v2405, %v2565
        %v2594 = vadd.f32 %v2406, %v2567
        %v2595 = vadd.f32 %v2407, %v2569
        %v2596 = vadd.f32 %v2408, %v2571
        %v2597 = vadd.f32 %v2409, %v2575
        %v2598 = vadd.f32 %v2410, %v2577
        %v2599 = vadd.f32 %v2411, %v2579
        %v2600 = vadd.f32 %v2412, %v2581
        %v2601 = vadd.f32 %v2413, %v2585
        %v2602 = vadd.f32 %v2414, %v2587
        %v2603 = vadd.f32 %v2415, %v2589
        %v2604 = vadd.f32 %v2416, %v2591
        %s2605 = scalar_lea.vmem [#allocation8], 640
        %v2606 = vld [vmem:[%s2605] sm:$0xff]
        %v2607 = vld [vmem:[%s2605 + $0x8] sm:$0xff]
        %v2608 = vld [vmem:[%s2605 + $0x10] sm:$0xff]
        %v2609 = vld [vmem:[%s2605 + $0x18] sm:$0xff]
        %v2610 = vld [vmem:[%s2605 + $0x20] sm:$0xff]
        %v2611 = vld [vmem:[%s2605 + $0x28] sm:$0xff]
        %v2612 = vld [vmem:[%s2605 + $0x30] sm:$0xff]
        %v2613 = vld [vmem:[%s2605 + $0x38] sm:$0xff]
        %v2614 = vld [vmem:[%s2605 + $0x40] sm:$0xff]
        %v2615 = vld [vmem:[%s2605 + $0x48] sm:$0xff]
        %v2616 = vld [vmem:[%s2605 + $0x50] sm:$0xff]
        %v2617 = vld [vmem:[%s2605 + $0x58] sm:$0xff]
        %v2618 = vld [vmem:[%s2605 + $0x60] sm:$0xff]
        %v2619 = vld [vmem:[%s2605 + $0x68] sm:$0xff]
        %v2620 = vld [vmem:[%s2605 + $0x70] sm:$0xff]
        %v2621 = vld [vmem:[%s2605 + $0x78] sm:$0xff]
        %v2623 = vshrl.u32 %v2440, 16
        %v2625 = vrot.slane %v2623, 1
        %v2626 = vshll.u32 %v2440, 16
        %v2628 = vrot.slane %v2626, 2
        %v2629 = vor.u32 %v2625, %v2628
        %v2630 = vrot.slane %v2248, 1
        %v2631 = vrot.slane %v2244, 2
        %v2632 = vor.u32 %v2630, %v2631
        %v2633 = vsel %vm1055, %v2629, %v2632
        %v2635 = vshrl.u32 %v2441, 16
        %v2637 = vrot.slane %v2635, 1
        %v2638 = vshll.u32 %v2441, 16
        %v2640 = vrot.slane %v2638, 2
        %v2641 = vor.u32 %v2637, %v2640
        %v2642 = vsel %vm1055, %v2632, %v2641
        %v2662 = vunpack.c.l.b16 %v2606
        %v2663 = vunpack.c.h.b16 %v2606
        %v2664 = vunpack.c.l.b16 %v2607
        %v2665 = vunpack.c.h.b16 %v2607
        %v2666 = vunpack.c.l.b16 %v2608
        %v2667 = vunpack.c.h.b16 %v2608
        %v2668 = vunpack.c.l.b16 %v2609
        %v2669 = vunpack.c.h.b16 %v2609
        %v2670 = vunpack.c.l.b16 %v2610
        %v2671 = vunpack.c.h.b16 %v2610
        %v2672 = vunpack.c.l.b16 %v2611
        %v2673 = vunpack.c.h.b16 %v2611
        %v2674 = vunpack.c.l.b16 %v2612
        %v2675 = vunpack.c.h.b16 %v2612
        %v2676 = vunpack.c.l.b16 %v2613
        %v2677 = vunpack.c.h.b16 %v2613
        %v2678 = vunpack.c.l.b16 %v2614
        %v2679 = vunpack.c.h.b16 %v2614
        %v2680 = vunpack.c.l.b16 %v2615
        %v2681 = vunpack.c.h.b16 %v2615
        %v2682 = vunpack.c.l.b16 %v2616
        %v2683 = vunpack.c.h.b16 %v2616
        %v2684 = vunpack.c.l.b16 %v2617
        %v2685 = vunpack.c.h.b16 %v2617
        %v2686 = vunpack.c.l.b16 %v2618
        %v2687 = vunpack.c.h.b16 %v2618
        %v2688 = vunpack.c.l.b16 %v2619
        %v2689 = vunpack.c.h.b16 %v2619
        %v2690 = vunpack.c.l.b16 %v2620
        %v2691 = vunpack.c.h.b16 %v2620
        %v2692 = vunpack.c.l.b16 %v2621
        %v2693 = vunpack.c.h.b16 %v2621
        %v2694 = vpack.c.b16 %v2664, %v2662
        %v2695 = vpack.c.b16 %v2665, %v2663
        %v2696 = vpack.c.b16 %v2668, %v2666
        %v2697 = vpack.c.b16 %v2669, %v2667
        %v2698 = vpack.c.b16 %v2672, %v2670
        %v2699 = vpack.c.b16 %v2673, %v2671
        %v2700 = vpack.c.b16 %v2676, %v2674
        %v2701 = vpack.c.b16 %v2677, %v2675
        %v2702 = vpack.c.b16 %v2680, %v2678
        %v2703 = vpack.c.b16 %v2681, %v2679
        %v2704 = vpack.c.b16 %v2684, %v2682
        %v2705 = vpack.c.b16 %v2685, %v2683
        %v2706 = vpack.c.b16 %v2688, %v2686
        %v2707 = vpack.c.b16 %v2689, %v2687
        %v2708 = vpack.c.b16 %v2692, %v2690
        %v2709 = vpack.c.b16 %v2693, %v2691
        %2726 = vmatprep.subr.bf16.mxu0 %v2709
        %2727 = vmatpush1.bf16.msra.mxu0 %v2708
        %2728 = vmatprep.subr.bf16.mxu0 %v2707
        %2729 = vmatpush1.bf16.msra.mxu0 %v2706
        %2730 = vmatprep.subr.bf16.mxu0 %v2705
        %2731 = vmatpush1.bf16.msra.mxu0 %v2704
        %2732 = vmatprep.subr.bf16.mxu0 %v2703
        %2733 = vmatpush1.bf16.msra.mxu0 %v2702
        %2734 = vmatprep.subr.bf16.mxu0 %v2701
        %2735 = vmatpush1.bf16.msra.mxu0 %v2700
        %2736 = vmatprep.subr.bf16.mxu0 %v2699
        %2737 = vmatpush1.bf16.msra.mxu0 %v2698
        %2738 = vmatprep.subr.bf16.mxu0 %v2697
        %2739 = vmatpush1.bf16.msra.mxu0 %v2696
        %2740 = vmatprep.subr.bf16.mxu0 %v2695
        %2741 = vmatpush1.bf16.msra.mxu0 %v2694
        %2742 = vmatprep.subr.bf16.mxu0 0
        %2743 = vmatpush2.bf16.msra.mxu0 0
        %2744 = vmatprep.subr.bf16.mxu0 0
        %2745 = vmatpush2.bf16.msra.mxu0 0
        %2746 = vmatprep.subr.bf16.mxu0 0
        %2747 = vmatpush2.bf16.msra.mxu0 0
        %2748 = vmatprep.subr.bf16.mxu0 0
        %2749 = vmatpush2.bf16.msra.mxu0 0
        %2750 = vmatprep.subr.bf16.mxu0 0
        %2751 = vmatpush2.bf16.msra.mxu0 0
        %2752 = vmatprep.subr.bf16.mxu0 0
        %2753 = vmatpush2.bf16.msra.mxu0 0
        %2754 = vmatprep.subr.bf16.mxu0 0
        %2755 = vmatpush2.bf16.msra.mxu0 0
        %2756 = vmatprep.subr.bf16.mxu0 0
        %2757 = vmatpush2.bf16.msra.mxu0 0
        %2758 = vmatprep.mubr.bf16.mxu0 0
        %2759 = vmatmul.mubr.bf16.gmra.mxu0 %v2633
        %v2760 = vpop.f32.mrf.mxu0
        %v2761 = vadd.f32 0.0, %v2760
        %v2762 = vpop.f32.mrf.mxu0
        %v2763 = vadd.f32 0.0, %v2762
        %v2764 = vpop.f32.mrf.mxu0
        %v2765 = vadd.f32 0.0, %v2764
        %v2766 = vpop.f32.mrf.mxu0
        %v2767 = vadd.f32 0.0, %v2766
        %2768 = vmatprep.mubr.bf16.mxu0 0
        %2769 = vmatmul.mubr.bf16.gmra.mxu0 %v2642
        %v2770 = vpop.f32.mrf.mxu0
        %v2771 = vadd.f32 0.0, %v2770
        %v2772 = vpop.f32.mrf.mxu0
        %v2773 = vadd.f32 0.0, %v2772
        %v2774 = vpop.f32.mrf.mxu0
        %v2775 = vadd.f32 0.0, %v2774
        %v2776 = vpop.f32.mrf.mxu0
        %v2777 = vadd.f32 0.0, %v2776
        %2778 = vmatprep.mubr.bf16.mxu0 0
        %2779 = vmatmul.mubr.bf16.gmra.mxu0 %v2641
        %v2780 = vpop.f32.mrf.mxu0
        %v2781 = vadd.f32 0.0, %v2780
        %v2782 = vpop.f32.mrf.mxu0
        %v2783 = vadd.f32 0.0, %v2782
        %v2784 = vpop.f32.mrf.mxu0
        %v2785 = vadd.f32 0.0, %v2784
        %v2786 = vpop.f32.mrf.mxu0
        %v2787 = vadd.f32 0.0, %v2786
        %2788 = vdwg.mxu0
        %v2789 = vadd.f32 %v2593, %v2761
        %v2790 = vadd.f32 %v2594, %v2763
        %v2791 = vadd.f32 %v2595, %v2765
        %v2792 = vadd.f32 %v2596, %v2767
        %v2793 = vadd.f32 %v2597, %v2771
        %v2794 = vadd.f32 %v2598, %v2773
        %v2795 = vadd.f32 %v2599, %v2775
        %v2796 = vadd.f32 %v2600, %v2777
        %v2797 = vadd.f32 %v2601, %v2781
        %v2798 = vadd.f32 %v2602, %v2783
        %v2799 = vadd.f32 %v2603, %v2785
        %v2800 = vadd.f32 %v2604, %v2787
        %v2801 = vld [vmem:[#allocation2 + $0x8] sm:$0xe]
        %v2802 = vld [vmem:[#allocation2 + $0xc] sm:$0xf]
        %v2803 = vld [vmem:[#allocation2 + $0x10] sm:$0xf]
        %v2804 = vld [vmem:[#allocation2 + $0x14] sm:$0xf]
        %v2805 = vld [vmem:[#allocation2 + $0x18] sm:$0xf]
        %v2806 = vld [vmem:[#allocation2 + $0x1c] sm:$0xf]
        %s2807 = scalar_lea.vmem [#allocation8], 768
        %v2808 = vld [vmem:[%s2807] sm:$0xff]
        %v2809 = vld [vmem:[%s2807 + $0x8] sm:$0xff]
        %v2810 = vld [vmem:[%s2807 + $0x10] sm:$0xff]
        %v2811 = vld [vmem:[%s2807 + $0x18] sm:$0xff]
        %v2812 = vld [vmem:[%s2807 + $0x20] sm:$0xff]
        %v2813 = vld [vmem:[%s2807 + $0x28] sm:$0xff]
        %v2814 = vld [vmem:[%s2807 + $0x30] sm:$0xff]
        %v2815 = vld [vmem:[%s2807 + $0x38] sm:$0xff]
        %v2816 = vld [vmem:[%s2807 + $0x40] sm:$0xff]
        %v2817 = vld [vmem:[%s2807 + $0x48] sm:$0xff]
        %v2818 = vld [vmem:[%s2807 + $0x50] sm:$0xff]
        %v2819 = vld [vmem:[%s2807 + $0x58] sm:$0xff]
        %v2820 = vld [vmem:[%s2807 + $0x60] sm:$0xff]
        %v2821 = vld [vmem:[%s2807 + $0x68] sm:$0xff]
        %v2822 = vld [vmem:[%s2807 + $0x70] sm:$0xff]
        %v2823 = vld [vmem:[%s2807 + $0x78] sm:$0xff]
        %v2830 = vunpack.c.l.b16 %v2801
        %v2831 = vunpack.c.l.b16 %v2802
        %v2832 = vunpack.c.l.b16 %v2803
        %v2833 = vunpack.c.l.b16 %v2804
        %v2834 = vunpack.c.l.b16 %v2805
        %v2835 = vunpack.c.l.b16 %v2806
        %v2836 = vpack.c.b16 %v2831, %v2830
        %v2837 = vpack.c.b16 %v2833, %v2832
        %v2838 = vpack.c.b16 %v2835, %v2834
        %v2839 = vrot.slane %v2836, 1
        %v2840 = vrot.slane %v2837, 1
        %v2841 = vsel %vm696, %v2839, %v2840
        %v2842 = vrot.slane %v2838, 1
        %v2843 = vsel %vm696, %v2840, %v2842
        %v2863 = vunpack.c.l.b16 %v2808
        %v2864 = vunpack.c.h.b16 %v2808
        %v2865 = vunpack.c.l.b16 %v2809
        %v2866 = vunpack.c.h.b16 %v2809
        %v2867 = vunpack.c.l.b16 %v2810
        %v2868 = vunpack.c.h.b16 %v2810
        %v2869 = vunpack.c.l.b16 %v2811
        %v2870 = vunpack.c.h.b16 %v2811
        %v2871 = vunpack.c.l.b16 %v2812
        %v2872 = vunpack.c.h.b16 %v2812
        %v2873 = vunpack.c.l.b16 %v2813
        %v2874 = vunpack.c.h.b16 %v2813
        %v2875 = vunpack.c.l.b16 %v2814
        %v2876 = vunpack.c.h.b16 %v2814
        %v2877 = vunpack.c.l.b16 %v2815
        %v2878 = vunpack.c.h.b16 %v2815
        %v2879 = vunpack.c.l.b16 %v2816
        %v2880 = vunpack.c.h.b16 %v2816
        %v2881 = vunpack.c.l.b16 %v2817
        %v2882 = vunpack.c.h.b16 %v2817
        %v2883 = vunpack.c.l.b16 %v2818
        %v2884 = vunpack.c.h.b16 %v2818
        %v2885 = vunpack.c.l.b16 %v2819
        %v2886 = vunpack.c.h.b16 %v2819
        %v2887 = vunpack.c.l.b16 %v2820
        %v2888 = vunpack.c.h.b16 %v2820
        %v2889 = vunpack.c.l.b16 %v2821
        %v2890 = vunpack.c.h.b16 %v2821
        %v2891 = vunpack.c.l.b16 %v2822
        %v2892 = vunpack.c.h.b16 %v2822
        %v2893 = vunpack.c.l.b16 %v2823
        %v2894 = vunpack.c.h.b16 %v2823
        %v2895 = vpack.c.b16 %v2865, %v2863
        %v2896 = vpack.c.b16 %v2866, %v2864
        %v2897 = vpack.c.b16 %v2869, %v2867
        %v2898 = vpack.c.b16 %v2870, %v2868
        %v2899 = vpack.c.b16 %v2873, %v2871
        %v2900 = vpack.c.b16 %v2874, %v2872
        %v2901 = vpack.c.b16 %v2877, %v2875
        %v2902 = vpack.c.b16 %v2878, %v2876
        %v2903 = vpack.c.b16 %v2881, %v2879
        %v2904 = vpack.c.b16 %v2882, %v2880
        %v2905 = vpack.c.b16 %v2885, %v2883
        %v2906 = vpack.c.b16 %v2886, %v2884
        %v2907 = vpack.c.b16 %v2889, %v2887
        %v2908 = vpack.c.b16 %v2890, %v2888
        %v2909 = vpack.c.b16 %v2893, %v2891
        %v2910 = vpack.c.b16 %v2894, %v2892
        %2927 = vmatprep.subr.bf16.mxu0 %v2910
        %2928 = vmatpush1.bf16.msra.mxu0 %v2909
        %2929 = vmatprep.subr.bf16.mxu0 %v2908
        %2930 = vmatpush1.bf16.msra.mxu0 %v2907
        %2931 = vmatprep.subr.bf16.mxu0 %v2906
        %2932 = vmatpush1.bf16.msra.mxu0 %v2905
        %2933 = vmatprep.subr.bf16.mxu0 %v2904
        %2934 = vmatpush1.bf16.msra.mxu0 %v2903
        %2935 = vmatprep.subr.bf16.mxu0 %v2902
        %2936 = vmatpush1.bf16.msra.mxu0 %v2901
        %2937 = vmatprep.subr.bf16.mxu0 %v2900
        %2938 = vmatpush1.bf16.msra.mxu0 %v2899
        %2939 = vmatprep.subr.bf16.mxu0 %v2898
        %2940 = vmatpush1.bf16.msra.mxu0 %v2897
        %2941 = vmatprep.subr.bf16.mxu0 %v2896
        %2942 = vmatpush1.bf16.msra.mxu0 %v2895
        %2943 = vmatprep.subr.bf16.mxu0 0
        %2944 = vmatpush2.bf16.msra.mxu0 0
        %2945 = vmatprep.subr.bf16.mxu0 0
        %2946 = vmatpush2.bf16.msra.mxu0 0
        %2947 = vmatprep.subr.bf16.mxu0 0
        %2948 = vmatpush2.bf16.msra.mxu0 0
        %2949 = vmatprep.subr.bf16.mxu0 0
        %2950 = vmatpush2.bf16.msra.mxu0 0
        %2951 = vmatprep.subr.bf16.mxu0 0
        %2952 = vmatpush2.bf16.msra.mxu0 0
        %2953 = vmatprep.subr.bf16.mxu0 0
        %2954 = vmatpush2.bf16.msra.mxu0 0
        %2955 = vmatprep.subr.bf16.mxu0 0
        %2956 = vmatpush2.bf16.msra.mxu0 0
        %2957 = vmatprep.subr.bf16.mxu0 0
        %2958 = vmatpush2.bf16.msra.mxu0 0
        %2959 = vmatprep.mubr.bf16.mxu0 0
        %2960 = vmatmul.mubr.bf16.gmra.mxu0 %v2841
        %v2961 = vpop.f32.mrf.mxu0
        %v2962 = vadd.f32 0.0, %v2961
        %v2963 = vpop.f32.mrf.mxu0
        %v2964 = vadd.f32 0.0, %v2963
        %v2965 = vpop.f32.mrf.mxu0
        %v2966 = vadd.f32 0.0, %v2965
        %v2967 = vpop.f32.mrf.mxu0
        %v2968 = vadd.f32 0.0, %v2967
        %2969 = vmatprep.mubr.bf16.mxu0 0
        %2970 = vmatmul.mubr.bf16.gmra.mxu0 %v2843
        %v2971 = vpop.f32.mrf.mxu0
        %v2972 = vadd.f32 0.0, %v2971
        %v2973 = vpop.f32.mrf.mxu0
        %v2974 = vadd.f32 0.0, %v2973
        %v2975 = vpop.f32.mrf.mxu0
        %v2976 = vadd.f32 0.0, %v2975
        %v2977 = vpop.f32.mrf.mxu0
        %v2978 = vadd.f32 0.0, %v2977
        %2979 = vmatprep.mubr.bf16.mxu0 0
        %2980 = vmatmul.mubr.bf16.gmra.mxu0 %v2842
        %v2981 = vpop.f32.mrf.mxu0
        %v2982 = vadd.f32 0.0, %v2981
        %v2983 = vpop.f32.mrf.mxu0
        %v2984 = vadd.f32 0.0, %v2983
        %v2985 = vpop.f32.mrf.mxu0
        %v2986 = vadd.f32 0.0, %v2985
        %v2987 = vpop.f32.mrf.mxu0
        %v2988 = vadd.f32 0.0, %v2987
        %2989 = vdwg.mxu0
        %v2990 = vadd.f32 %v2789, %v2962
        %v2991 = vadd.f32 %v2790, %v2964
        %v2992 = vadd.f32 %v2791, %v2966
        %v2993 = vadd.f32 %v2792, %v2968
        %v2994 = vadd.f32 %v2793, %v2972
        %v2995 = vadd.f32 %v2794, %v2974
        %v2996 = vadd.f32 %v2795, %v2976
        %v2997 = vadd.f32 %v2796, %v2978
        %v2998 = vadd.f32 %v2797, %v2982
        %v2999 = vadd.f32 %v2798, %v2984
        %v3000 = vadd.f32 %v2799, %v2986
        %v3001 = vadd.f32 %v2800, %v2988
        %s3002 = scalar_lea.vmem [#allocation8], 896
        %v3003 = vld [vmem:[%s3002] sm:$0xff]
        %v3004 = vld [vmem:[%s3002 + $0x8] sm:$0xff]
        %v3005 = vld [vmem:[%s3002 + $0x10] sm:$0xff]
        %v3006 = vld [vmem:[%s3002 + $0x18] sm:$0xff]
        %v3007 = vld [vmem:[%s3002 + $0x20] sm:$0xff]
        %v3008 = vld [vmem:[%s3002 + $0x28] sm:$0xff]
        %v3009 = vld [vmem:[%s3002 + $0x30] sm:$0xff]
        %v3010 = vld [vmem:[%s3002 + $0x38] sm:$0xff]
        %v3011 = vld [vmem:[%s3002 + $0x40] sm:$0xff]
        %v3012 = vld [vmem:[%s3002 + $0x48] sm:$0xff]
        %v3013 = vld [vmem:[%s3002 + $0x50] sm:$0xff]
        %v3014 = vld [vmem:[%s3002 + $0x58] sm:$0xff]
        %v3015 = vld [vmem:[%s3002 + $0x60] sm:$0xff]
        %v3016 = vld [vmem:[%s3002 + $0x68] sm:$0xff]
        %v3017 = vld [vmem:[%s3002 + $0x70] sm:$0xff]
        %v3018 = vld [vmem:[%s3002 + $0x78] sm:$0xff]
        %v3020 = vshrl.u32 %v2836, 16
        %v3022 = vrot.slane %v3020, 1
        %v3023 = vshll.u32 %v2836, 16
        %v3025 = vrot.slane %v3023, 2
        %v3026 = vor.u32 %v3022, %v3025
        %v3028 = vshrl.u32 %v2837, 16
        %v3030 = vrot.slane %v3028, 1
        %v3031 = vshll.u32 %v2837, 16
        %v3033 = vrot.slane %v3031, 2
        %v3034 = vor.u32 %v3030, %v3033
        %v3035 = vsel %vm1055, %v3026, %v3034
        %v3037 = vshrl.u32 %v2838, 16
        %v3039 = vrot.slane %v3037, 1
        %v3040 = vshll.u32 %v2838, 16
        %v3042 = vrot.slane %v3040, 2
        %v3043 = vor.u32 %v3039, %v3042
        %v3044 = vsel %vm1055, %v3034, %v3043
        %v3064 = vunpack.c.l.b16 %v3003
        %v3065 = vunpack.c.h.b16 %v3003
        %v3066 = vunpack.c.l.b16 %v3004
        %v3067 = vunpack.c.h.b16 %v3004
        %v3068 = vunpack.c.l.b16 %v3005
        %v3069 = vunpack.c.h.b16 %v3005
        %v3070 = vunpack.c.l.b16 %v3006
        %v3071 = vunpack.c.h.b16 %v3006
        %v3072 = vunpack.c.l.b16 %v3007
        %v3073 = vunpack.c.h.b16 %v3007
        %v3074 = vunpack.c.l.b16 %v3008
        %v3075 = vunpack.c.h.b16 %v3008
        %v3076 = vunpack.c.l.b16 %v3009
        %v3077 = vunpack.c.h.b16 %v3009
        %v3078 = vunpack.c.l.b16 %v3010
        %v3079 = vunpack.c.h.b16 %v3010
        %v3080 = vunpack.c.l.b16 %v3011
        %v3081 = vunpack.c.h.b16 %v3011
        %v3082 = vunpack.c.l.b16 %v3012
        %v3083 = vunpack.c.h.b16 %v3012
        %v3084 = vunpack.c.l.b16 %v3013
        %v3085 = vunpack.c.h.b16 %v3013
        %v3086 = vunpack.c.l.b16 %v3014
        %v3087 = vunpack.c.h.b16 %v3014
        %v3088 = vunpack.c.l.b16 %v3015
        %v3089 = vunpack.c.h.b16 %v3015
        %v3090 = vunpack.c.l.b16 %v3016
        %v3091 = vunpack.c.h.b16 %v3016
        %v3092 = vunpack.c.l.b16 %v3017
        %v3093 = vunpack.c.h.b16 %v3017
        %v3094 = vunpack.c.l.b16 %v3018
        %v3095 = vunpack.c.h.b16 %v3018
        %v3096 = vpack.c.b16 %v3066, %v3064
        %v3097 = vpack.c.b16 %v3067, %v3065
        %v3098 = vpack.c.b16 %v3070, %v3068
        %v3099 = vpack.c.b16 %v3071, %v3069
        %v3100 = vpack.c.b16 %v3074, %v3072
        %v3101 = vpack.c.b16 %v3075, %v3073
        %v3102 = vpack.c.b16 %v3078, %v3076
        %v3103 = vpack.c.b16 %v3079, %v3077
        %v3104 = vpack.c.b16 %v3082, %v3080
        %v3105 = vpack.c.b16 %v3083, %v3081
        %v3106 = vpack.c.b16 %v3086, %v3084
        %v3107 = vpack.c.b16 %v3087, %v3085
        %v3108 = vpack.c.b16 %v3090, %v3088
        %v3109 = vpack.c.b16 %v3091, %v3089
        %v3110 = vpack.c.b16 %v3094, %v3092
        %v3111 = vpack.c.b16 %v3095, %v3093
        %3128 = vmatprep.subr.bf16.mxu0 %v3111
        %3129 = vmatpush1.bf16.msra.mxu0 %v3110
        %3130 = vmatprep.subr.bf16.mxu0 %v3109
        %3131 = vmatpush1.bf16.msra.mxu0 %v3108
        %3132 = vmatprep.subr.bf16.mxu0 %v3107
        %3133 = vmatpush1.bf16.msra.mxu0 %v3106
        %3134 = vmatprep.subr.bf16.mxu0 %v3105
        %3135 = vmatpush1.bf16.msra.mxu0 %v3104
        %3136 = vmatprep.subr.bf16.mxu0 %v3103
        %3137 = vmatpush1.bf16.msra.mxu0 %v3102
        %3138 = vmatprep.subr.bf16.mxu0 %v3101
        %3139 = vmatpush1.bf16.msra.mxu0 %v3100
        %3140 = vmatprep.subr.bf16.mxu0 %v3099
        %3141 = vmatpush1.bf16.msra.mxu0 %v3098
        %3142 = vmatprep.subr.bf16.mxu0 %v3097
        %3143 = vmatpush1.bf16.msra.mxu0 %v3096
        %3144 = vmatprep.subr.bf16.mxu0 0
        %3145 = vmatpush2.bf16.msra.mxu0 0
        %3146 = vmatprep.subr.bf16.mxu0 0
        %3147 = vmatpush2.bf16.msra.mxu0 0
        %3148 = vmatprep.subr.bf16.mxu0 0
        %3149 = vmatpush2.bf16.msra.mxu0 0
        %3150 = vmatprep.subr.bf16.mxu0 0
        %3151 = vmatpush2.bf16.msra.mxu0 0
        %3152 = vmatprep.subr.bf16.mxu0 0
        %3153 = vmatpush2.bf16.msra.mxu0 0
        %3154 = vmatprep.subr.bf16.mxu0 0
        %3155 = vmatpush2.bf16.msra.mxu0 0
        %3156 = vmatprep.subr.bf16.mxu0 0
        %3157 = vmatpush2.bf16.msra.mxu0 0
        %3158 = vmatprep.subr.bf16.mxu0 0
        %3159 = vmatpush2.bf16.msra.mxu0 0
        %3160 = vmatprep.mubr.bf16.mxu0 0
        %3161 = vmatmul.mubr.bf16.gmra.mxu0 %v3035
        %v3162 = vpop.f32.mrf.mxu0
        %v3163 = vadd.f32 0.0, %v3162
        %v3164 = vpop.f32.mrf.mxu0
        %v3165 = vadd.f32 0.0, %v3164
        %v3166 = vpop.f32.mrf.mxu0
        %v3167 = vadd.f32 0.0, %v3166
        %v3168 = vpop.f32.mrf.mxu0
        %v3169 = vadd.f32 0.0, %v3168
        %3170 = vmatprep.mubr.bf16.mxu0 0
        %3171 = vmatmul.mubr.bf16.gmra.mxu0 %v3044
        %v3172 = vpop.f32.mrf.mxu0
        %v3173 = vadd.f32 0.0, %v3172
        %v3174 = vpop.f32.mrf.mxu0
        %v3175 = vadd.f32 0.0, %v3174
        %v3176 = vpop.f32.mrf.mxu0
        %v3177 = vadd.f32 0.0, %v3176
        %v3178 = vpop.f32.mrf.mxu0
        %v3179 = vadd.f32 0.0, %v3178
        %3180 = vmatprep.mubr.bf16.mxu0 0
        %3181 = vmatmul.mubr.bf16.gmra.mxu0 %v3043
        %v3182 = vpop.f32.mrf.mxu0
        %v3183 = vadd.f32 0.0, %v3182
        %v3184 = vpop.f32.mrf.mxu0
        %v3185 = vadd.f32 0.0, %v3184
        %v3186 = vpop.f32.mrf.mxu0
        %v3187 = vadd.f32 0.0, %v3186
        %v3188 = vpop.f32.mrf.mxu0
        %v3189 = vadd.f32 0.0, %v3188
        %3190 = vdwg.mxu0
        %v3191 = vadd.f32 %v2990, %v3163
        %v3192 = vadd.f32 %v2991, %v3165
        %v3193 = vadd.f32 %v2992, %v3167
        %v3194 = vadd.f32 %v2993, %v3169
        %v3195 = vadd.f32 %v2994, %v3173
        %v3196 = vadd.f32 %v2995, %v3175
        %v3197 = vadd.f32 %v2996, %v3177
        %v3198 = vadd.f32 %v2997, %v3179
        %v3199 = vadd.f32 %v2998, %v3183
        %v3200 = vadd.f32 %v2999, %v3185
        %v3201 = vadd.f32 %v3000, %v3187
        %v3202 = vadd.f32 %v3001, %v3189
        %v3203 = vld [vmem:[#allocation2 + $0x8] sm:$0xc]
        %v3204 = vld [vmem:[#allocation2 + $0xc] sm:$0xf]
        %v3205 = vld [vmem:[#allocation2 + $0x10] sm:$0xf]
        %v3206 = vld [vmem:[#allocation2 + $0x14] sm:$0xf]
        %v3207 = vld [vmem:[#allocation2 + $0x18] sm:$0xf]
        %v3208 = vld [vmem:[#allocation2 + $0x1c] sm:$0xf]
        %v3209 = vld [vmem:[#allocation2 + $0x20] sm:$0x1]
        %s3210 = scalar_lea.vmem [#allocation8], 1024
        %v3211 = vld [vmem:[%s3210] sm:$0xff]
        %v3212 = vld [vmem:[%s3210 + $0x8] sm:$0xff]
        %v3213 = vld [vmem:[%s3210 + $0x10] sm:$0xff]
        %v3214 = vld [vmem:[%s3210 + $0x18] sm:$0xff]
        %v3215 = vld [vmem:[%s3210 + $0x20] sm:$0xff]
        %v3216 = vld [vmem:[%s3210 + $0x28] sm:$0xff]
        %v3217 = vld [vmem:[%s3210 + $0x30] sm:$0xff]
        %v3218 = vld [vmem:[%s3210 + $0x38] sm:$0xff]
        %v3219 = vld [vmem:[%s3210 + $0x40] sm:$0xff]
        %v3220 = vld [vmem:[%s3210 + $0x48] sm:$0xff]
        %v3221 = vld [vmem:[%s3210 + $0x50] sm:$0xff]
        %v3222 = vld [vmem:[%s3210 + $0x58] sm:$0xff]
        %v3223 = vld [vmem:[%s3210 + $0x60] sm:$0xff]
        %v3224 = vld [vmem:[%s3210 + $0x68] sm:$0xff]
        %v3225 = vld [vmem:[%s3210 + $0x70] sm:$0xff]
        %v3226 = vld [vmem:[%s3210 + $0x78] sm:$0xff]
        %v3234 = vunpack.c.l.b16 %v3203
        %v3235 = vunpack.c.l.b16 %v3204
        %v3236 = vunpack.c.l.b16 %v3205
        %v3237 = vunpack.c.l.b16 %v3206
        %v3238 = vunpack.c.l.b16 %v3207
        %v3239 = vunpack.c.l.b16 %v3208
        %v3240 = vunpack.c.l.b16 %v3209
        %v3241 = vpack.c.b16 %v3235, %v3234
        %v3242 = vpack.c.b16 %v3237, %v3236
        %v3243 = vpack.c.b16 %v3239, %v3238
        %v3244 = vpack.c.b16 %v3240, %v3240
        %v3245 = vrot.slane %v3241, 2
        %v3246 = vrot.slane %v3242, 2
        %v3247 = vsel %vm1463, %v3245, %v3246
        %v3248 = vrot.slane %v3243, 2
        %v3249 = vsel %vm1463, %v3246, %v3248
        %v3250 = vrot.slane %v3244, 2
        %v3251 = vsel %vm1463, %v3248, %v3250
        %v3271 = vunpack.c.l.b16 %v3211
        %v3272 = vunpack.c.h.b16 %v3211
        %v3273 = vunpack.c.l.b16 %v3212
        %v3274 = vunpack.c.h.b16 %v3212
        %v3275 = vunpack.c.l.b16 %v3213
        %v3276 = vunpack.c.h.b16 %v3213
        %v3277 = vunpack.c.l.b16 %v3214
        %v3278 = vunpack.c.h.b16 %v3214
        %v3279 = vunpack.c.l.b16 %v3215
        %v3280 = vunpack.c.h.b16 %v3215
        %v3281 = vunpack.c.l.b16 %v3216
        %v3282 = vunpack.c.h.b16 %v3216
        %v3283 = vunpack.c.l.b16 %v3217
        %v3284 = vunpack.c.h.b16 %v3217
        %v3285 = vunpack.c.l.b16 %v3218
        %v3286 = vunpack.c.h.b16 %v3218
        %v3287 = vunpack.c.l.b16 %v3219
        %v3288 = vunpack.c.h.b16 %v3219
        %v3289 = vunpack.c.l.b16 %v3220
        %v3290 = vunpack.c.h.b16 %v3220
        %v3291 = vunpack.c.l.b16 %v3221
        %v3292 = vunpack.c.h.b16 %v3221
        %v3293 = vunpack.c.l.b16 %v3222
        %v3294 = vunpack.c.h.b16 %v3222
        %v3295 = vunpack.c.l.b16 %v3223
        %v3296 = vunpack.c.h.b16 %v3223
        %v3297 = vunpack.c.l.b16 %v3224
        %v3298 = vunpack.c.h.b16 %v3224
        %v3299 = vunpack.c.l.b16 %v3225
        %v3300 = vunpack.c.h.b16 %v3225
        %v3301 = vunpack.c.l.b16 %v3226
        %v3302 = vunpack.c.h.b16 %v3226
        %v3303 = vpack.c.b16 %v3273, %v3271
        %v3304 = vpack.c.b16 %v3274, %v3272
        %v3305 = vpack.c.b16 %v3277, %v3275
        %v3306 = vpack.c.b16 %v3278, %v3276
        %v3307 = vpack.c.b16 %v3281, %v3279
        %v3308 = vpack.c.b16 %v3282, %v3280
        %v3309 = vpack.c.b16 %v3285, %v3283
        %v3310 = vpack.c.b16 %v3286, %v3284
        %v3311 = vpack.c.b16 %v3289, %v3287
        %v3312 = vpack.c.b16 %v3290, %v3288
        %v3313 = vpack.c.b16 %v3293, %v3291
        %v3314 = vpack.c.b16 %v3294, %v3292
        %v3315 = vpack.c.b16 %v3297, %v3295
        %v3316 = vpack.c.b16 %v3298, %v3296
        %v3317 = vpack.c.b16 %v3301, %v3299
        %v3318 = vpack.c.b16 %v3302, %v3300
        %3335 = vmatprep.subr.bf16.mxu0 %v3318
        %3336 = vmatpush1.bf16.msra.mxu0 %v3317
        %3337 = vmatprep.subr.bf16.mxu0 %v3316
        %3338 = vmatpush1.bf16.msra.mxu0 %v3315
        %3339 = vmatprep.subr.bf16.mxu0 %v3314
        %3340 = vmatpush1.bf16.msra.mxu0 %v3313
        %3341 = vmatprep.subr.bf16.mxu0 %v3312
        %3342 = vmatpush1.bf16.msra.mxu0 %v3311
        %3343 = vmatprep.subr.bf16.mxu0 %v3310
        %3344 = vmatpush1.bf16.msra.mxu0 %v3309
        %3345 = vmatprep.subr.bf16.mxu0 %v3308
        %3346 = vmatpush1.bf16.msra.mxu0 %v3307
        %3347 = vmatprep.subr.bf16.mxu0 %v3306
        %3348 = vmatpush1.bf16.msra.mxu0 %v3305
        %3349 = vmatprep.subr.bf16.mxu0 %v3304
        %3350 = vmatpush1.bf16.msra.mxu0 %v3303
        %3351 = vmatprep.subr.bf16.mxu0 0
        %3352 = vmatpush2.bf16.msra.mxu0 0
        %3353 = vmatprep.subr.bf16.mxu0 0
        %3354 = vmatpush2.bf16.msra.mxu0 0
        %3355 = vmatprep.subr.bf16.mxu0 0
        %3356 = vmatpush2.bf16.msra.mxu0 0
        %3357 = vmatprep.subr.bf16.mxu0 0
        %3358 = vmatpush2.bf16.msra.mxu0 0
        %3359 = vmatprep.subr.bf16.mxu0 0
        %3360 = vmatpush2.bf16.msra.mxu0 0
        %3361 = vmatprep.subr.bf16.mxu0 0
        %3362 = vmatpush2.bf16.msra.mxu0 0
        %3363 = vmatprep.subr.bf16.mxu0 0
        %3364 = vmatpush2.bf16.msra.mxu0 0
        %3365 = vmatprep.subr.bf16.mxu0 0
        %3366 = vmatpush2.bf16.msra.mxu0 0
        %3367 = vmatprep.mubr.bf16.mxu0 0
        %3368 = vmatmul.mubr.bf16.gmra.mxu0 %v3247
        %v3369 = vpop.f32.mrf.mxu0
        %v3370 = vadd.f32 0.0, %v3369
        %v3371 = vpop.f32.mrf.mxu0
        %v3372 = vadd.f32 0.0, %v3371
        %v3373 = vpop.f32.mrf.mxu0
        %v3374 = vadd.f32 0.0, %v3373
        %v3375 = vpop.f32.mrf.mxu0
        %v3376 = vadd.f32 0.0, %v3375
        %3377 = vmatprep.mubr.bf16.mxu0 0
        %3378 = vmatmul.mubr.bf16.gmra.mxu0 %v3249
        %v3379 = vpop.f32.mrf.mxu0
        %v3380 = vadd.f32 0.0, %v3379
        %v3381 = vpop.f32.mrf.mxu0
        %v3382 = vadd.f32 0.0, %v3381
        %v3383 = vpop.f32.mrf.mxu0
        %v3384 = vadd.f32 0.0, %v3383
        %v3385 = vpop.f32.mrf.mxu0
        %v3386 = vadd.f32 0.0, %v3385
        %3387 = vmatprep.mubr.bf16.mxu0 0
        %3388 = vmatmul.mubr.bf16.gmra.mxu0 %v3251
        %v3389 = vpop.f32.mrf.mxu0
        %v3390 = vadd.f32 0.0, %v3389
        %v3391 = vpop.f32.mrf.mxu0
        %v3392 = vadd.f32 0.0, %v3391
        %v3393 = vpop.f32.mrf.mxu0
        %v3394 = vadd.f32 0.0, %v3393
        %v3395 = vpop.f32.mrf.mxu0
        %v3396 = vadd.f32 0.0, %v3395
        %3397 = vdwg.mxu0
        %v3398 = vadd.f32 %v3191, %v3370
        %v3399 = vadd.f32 %v3192, %v3372
        %v3400 = vadd.f32 %v3193, %v3374
        %v3401 = vadd.f32 %v3194, %v3376
        %v3402 = vadd.f32 %v3195, %v3380
        %v3403 = vadd.f32 %v3196, %v3382
        %v3404 = vadd.f32 %v3197, %v3384
        %v3405 = vadd.f32 %v3198, %v3386
        %v3406 = vadd.f32 %v3199, %v3390
        %v3407 = vadd.f32 %v3200, %v3392
        %v3408 = vadd.f32 %v3201, %v3394
        %v3409 = vadd.f32 %v3202, %v3396
        %v3410 = vld [vmem:[#allocation9] sm:$0x3]
        %v3412 = vlaneseq
        %v3413 = vshrl.u32 %v3412, 7
        %v3414 = vsub.s32 0, %v3413
        %v3415 = vrot.slane %v3410, %v3414
        %v3416 = vlaneseq
        %v3417 = vshrl.u32 %v3416, 7
        %v3418 = vsub.s32 1, %v3417
        %v3419 = vrot.slane %v3410, %v3418
        %v3422 = vadd.f32 %v3398, %v3415
        %v3423 = vadd.f32 %v3399, %v3419
        %v3424 = vadd.f32 %v3400, %v3415
        %v3425 = vadd.f32 %v3401, %v3419
        %v3426 = vadd.f32 %v3402, %v3415
        %v3427 = vadd.f32 %v3403, %v3419
        %v3428 = vadd.f32 %v3404, %v3415
        %v3429 = vadd.f32 %v3405, %v3419
        %v3430 = vadd.f32 %v3406, %v3415
        %v3431 = vadd.f32 %v3407, %v3419
        %v3432 = vadd.f32 %v3408, %v3415
        %v3433 = vadd.f32 %v3409, %v3419
        %v3434 = vmax.f32 %v3422, 0.0
        %v3435 = vmax.f32 %v3423, 0.0
        %v3436 = vmax.f32 %v3424, 0.0
        %v3437 = vmax.f32 %v3425, 0.0
        %v3438 = vmax.f32 %v3426, 0.0
        %v3439 = vmax.f32 %v3427, 0.0
        %v3440 = vmax.f32 %v3428, 0.0
        %v3441 = vmax.f32 %v3429, 0.0
        %v3442 = vmax.f32 %v3430, 0.0
        %v3443 = vmax.f32 %v3431, 0.0
        %v3444 = vmax.f32 %v3432, 0.0
        %v3445 = vmax.f32 %v3433, 0.0
        %v3446 = vpack.c.bf16 %v3436, %v3434
        %v3447 = vpack.c.bf16 %v3437, %v3435
        %v3448 = vpack.c.bf16 %v3440, %v3438
        %v3449 = vpack.c.bf16 %v3441, %v3439
        %v3450 = vpack.c.bf16 %v3444, %v3442
        %v3451 = vpack.c.bf16 %v3445, %v3443
        %v3458 = vunpack.c.l.b16 %v3446
        %v3459 = vunpack.c.l.b16 %v3447
        %v3460 = vunpack.c.h.b16 %v3446
        %v3461 = vunpack.c.h.b16 %v3447
        %v3462 = vunpack.c.l.b16 %v3448
        %v3463 = vunpack.c.l.b16 %v3449
        %v3464 = vunpack.c.h.b16 %v3448
        %v3465 = vunpack.c.h.b16 %v3449
        %v3466 = vunpack.c.l.b16 %v3450
        %v3467 = vunpack.c.l.b16 %v3451
        %v3468 = vunpack.c.h.b16 %v3450
        %v3469 = vunpack.c.h.b16 %v3451
        %v3470 = vpack.c.b16 %v3459, %v3458
        %v3471 = vpack.c.b16 %v3461, %v3460
        %v3472 = vpack.c.b16 %v3463, %v3462
        %v3473 = vpack.c.b16 %v3465, %v3464
        %v3474 = vpack.c.b16 %v3467, %v3466
        %v3475 = vpack.c.b16 %v3469, %v3468
        %3482 = vst [vmem:[#allocation3] sm:$0xff] %v3470
        %3483 = vst [vmem:[#allocation3 + $0x8] sm:$0xff] %v3471
        %3484 = vst [vmem:[#allocation3 + $0x10] sm:$0xff] %v3472
        %3485 = vst [vmem:[#allocation3 + $0x18] sm:$0xff] %v3473
        %3486 = vst [vmem:[#allocation3 + $0x20] sm:$0xff] %v3474
        %vm3487 = vcmask 1042432
        %vm3488 = vsmask.f32 2304
        %vm3489 = vmand %vm3487, %vm3488
        %vm3490 = vcmask 1046532
        %vm3491 = vmand %vm3490, %vm1055
        %vm3492 = vmor %vm3491, %vm3489
        %v3493 = vld [vmem:[#allocation3 + $0x28] sm:$0x77]
        %v3494 = vsel %vm3492, %v3475, %v3493
        %3495 = vst [vmem:[#allocation3 + $0x28] sm:$0x77] %v3494
        %vm3496 = vcmask 1043458
        %vm3497 = vsmask.f32 3338
        %vm3498 = vmand %vm3496, %vm3497
        %vm3499 = vcmask 1047558
        %vm3500 = vsmask.f32 7450
        %vm3501 = vmand %vm3499, %vm3500
        %vm3502 = vmor %vm3501, %vm3498
        %v3503 = vld [vmem:[#allocation3 + $0x28] sm:$0xcc]
        %v3504 = vsel %vm3502, 0, %v3503
        %3505 = vst [vmem:[#allocation3 + $0x28] sm:$0xcc] %v3504
        %v3506 = vld [vmem:[#allocation3] sm:$0xff]
        %v3507 = vld [vmem:[#allocation3 + $0x8] sm:$0xff]
        %v3508 = vld [vmem:[#allocation3 + $0x10] sm:$0xff]
        %v3509 = vld [vmem:[#allocation3 + $0x18] sm:$0x33]
        %v3510 = vld [vmem:[#allocation11] sm:$0xff]
        %v3511 = vld [vmem:[#allocation11 + $0x8] sm:$0xff]
        %v3512 = vld [vmem:[#allocation11 + $0x10] sm:$0xff]
        %v3513 = vld [vmem:[#allocation11 + $0x18] sm:$0xff]
        %v3514 = vld [vmem:[#allocation11 + $0x20] sm:$0xff]
        %v3515 = vld [vmem:[#allocation11 + $0x28] sm:$0xff]
        %v3516 = vld [vmem:[#allocation11 + $0x30] sm:$0xff]
        %v3517 = vld [vmem:[#allocation11 + $0x38] sm:$0xff]
        %v3518 = vld [vmem:[#allocation11 + $0x40] sm:$0xff]
        %v3519 = vld [vmem:[#allocation11 + $0x48] sm:$0xff]
        %v3520 = vld [vmem:[#allocation11 + $0x50] sm:$0xff]
        %v3521 = vld [vmem:[#allocation11 + $0x58] sm:$0xff]
        %v3522 = vld [vmem:[#allocation11 + $0x60] sm:$0xff]
        %v3523 = vld [vmem:[#allocation11 + $0x68] sm:$0xff]
        %v3524 = vld [vmem:[#allocation11 + $0x70] sm:$0xff]
        %v3525 = vld [vmem:[#allocation11 + $0x78] sm:$0xff]
        %v3526 = vld [vmem:[#allocation11 + $0x80] sm:$0xff]
        %v3527 = vld [vmem:[#allocation11 + $0x88] sm:$0xff]
        %v3528 = vld [vmem:[#allocation11 + $0x90] sm:$0xff]
        %v3529 = vld [vmem:[#allocation11 + $0x98] sm:$0xff]
        %v3530 = vld [vmem:[#allocation11 + $0xa0] sm:$0xff]
        %v3531 = vld [vmem:[#allocation11 + $0xa8] sm:$0xff]
        %v3532 = vld [vmem:[#allocation11 + $0xb0] sm:$0xff]
        %v3533 = vld [vmem:[#allocation11 + $0xb8] sm:$0xff]
        %v3534 = vld [vmem:[#allocation11 + $0xc0] sm:$0xff]
        %v3535 = vld [vmem:[#allocation11 + $0xc8] sm:$0xff]
        %v3536 = vld [vmem:[#allocation11 + $0xd0] sm:$0xff]
        %v3537 = vld [vmem:[#allocation11 + $0xd8] sm:$0xff]
        %v3538 = vld [vmem:[#allocation11 + $0xe0] sm:$0xff]
        %v3539 = vld [vmem:[#allocation11 + $0xe8] sm:$0xff]
        %v3540 = vld [vmem:[#allocation11 + $0xf0] sm:$0xff]
        %v3541 = vld [vmem:[#allocation11 + $0xf8] sm:$0xff]
        %s3542 = scalar_lea.vmem [#allocation11], 256
        %v3543 = vld [vmem:[%s3542] sm:$0xff]
        %v3544 = vld [vmem:[%s3542 + $0x8] sm:$0xff]
        %v3545 = vld [vmem:[%s3542 + $0x10] sm:$0xff]
        %v3546 = vld [vmem:[%s3542 + $0x18] sm:$0xff]
        %v3547 = vld [vmem:[%s3542 + $0x20] sm:$0xff]
        %v3548 = vld [vmem:[%s3542 + $0x28] sm:$0xff]
        %v3549 = vld [vmem:[%s3542 + $0x30] sm:$0xff]
        %v3550 = vld [vmem:[%s3542 + $0x38] sm:$0xff]
        %v3551 = vld [vmem:[%s3542 + $0x40] sm:$0xff]
        %v3552 = vld [vmem:[%s3542 + $0x48] sm:$0xff]
        %v3553 = vld [vmem:[%s3542 + $0x50] sm:$0xff]
        %v3554 = vld [vmem:[%s3542 + $0x58] sm:$0xff]
        %v3555 = vld [vmem:[%s3542 + $0x60] sm:$0xff]
        %v3556 = vld [vmem:[%s3542 + $0x68] sm:$0xff]
        %v3557 = vld [vmem:[%s3542 + $0x70] sm:$0xff]
        %v3558 = vld [vmem:[%s3542 + $0x78] sm:$0xff]
        %v3559 = vld [vmem:[%s3542 + $0x80] sm:$0xff]
        %v3560 = vld [vmem:[%s3542 + $0x88] sm:$0xff]
        %v3561 = vld [vmem:[%s3542 + $0x90] sm:$0xff]
        %v3562 = vld [vmem:[%s3542 + $0x98] sm:$0xff]
        %v3563 = vld [vmem:[%s3542 + $0xa0] sm:$0xff]
        %v3564 = vld [vmem:[%s3542 + $0xa8] sm:$0xff]
        %v3565 = vld [vmem:[%s3542 + $0xb0] sm:$0xff]
        %v3566 = vld [vmem:[%s3542 + $0xb8] sm:$0xff]
        %v3567 = vld [vmem:[%s3542 + $0xc0] sm:$0xff]
        %v3568 = vld [vmem:[%s3542 + $0xc8] sm:$0xff]
        %v3569 = vld [vmem:[%s3542 + $0xd0] sm:$0xff]
        %v3570 = vld [vmem:[%s3542 + $0xd8] sm:$0xff]
        %v3571 = vld [vmem:[%s3542 + $0xe0] sm:$0xff]
        %v3572 = vld [vmem:[%s3542 + $0xe8] sm:$0xff]
        %v3573 = vld [vmem:[%s3542 + $0xf0] sm:$0xff]
        %v3574 = vld [vmem:[%s3542 + $0xf8] sm:$0xff]
        %v3579 = vunpack.c.l.b16 %v3506
        %v3580 = vunpack.c.h.b16 %v3506
        %v3581 = vunpack.c.l.b16 %v3507
        %v3582 = vunpack.c.h.b16 %v3507
        %v3583 = vunpack.c.l.b16 %v3508
        %v3584 = vunpack.c.h.b16 %v3508
        %v3585 = vunpack.c.l.b16 %v3509
        %v3586 = vunpack.c.h.b16 %v3509
        %v3587 = vpack.c.b16 %v3581, %v3579
        %v3588 = vpack.c.b16 %v3582, %v3580
        %v3589 = vpack.c.b16 %v3585, %v3583
        %v3590 = vpack.c.b16 %v3586, %v3584
        %v3592 = vshrl.u32 %v3587, 16
        %v3594 = vshll.u32 %v3587, 16
        %v3596 = vrot.slane %v3594, 1
        %v3597 = vor.u32 %v3592, %v3596
        %v3599 = vshll.u32 %v3589, 16
        %v3601 = vrot.slane %v3599, 1
        %v3602 = vsel %vm472, %v3597, %v3601
        %v3604 = vshrl.u32 %v3588, 16
        %v3606 = vshll.u32 %v3588, 16
        %v3608 = vrot.slane %v3606, 1
        %v3609 = vor.u32 %v3604, %v3608
        %v3611 = vshll.u32 %v3590, 16
        %v3613 = vrot.slane %v3611, 1
        %v3614 = vsel %vm472, %v3609, %v3613
        %v3615 = vshrl.u32 %v3589, 16
        %v3617 = vor.u32 %v3615, %v3601
        %v3618 = vshrl.u32 %v3590, 16
        %v3620 = vor.u32 %v3618, %v3613
        %v3657 = vunpack.c.l.b16 %v3543
        %v3658 = vunpack.c.h.b16 %v3543
        %v3659 = vunpack.c.l.b16 %v3544
        %v3660 = vunpack.c.h.b16 %v3544
        %v3661 = vunpack.c.l.b16 %v3545
        %v3662 = vunpack.c.h.b16 %v3545
        %v3663 = vunpack.c.l.b16 %v3546
        %v3664 = vunpack.c.h.b16 %v3546
        %v3665 = vunpack.c.l.b16 %v3547
        %v3666 = vunpack.c.h.b16 %v3547
        %v3667 = vunpack.c.l.b16 %v3548
        %v3668 = vunpack.c.h.b16 %v3548
        %v3669 = vunpack.c.l.b16 %v3549
        %v3670 = vunpack.c.h.b16 %v3549
        %v3671 = vunpack.c.l.b16 %v3550
        %v3672 = vunpack.c.h.b16 %v3550
        %v3673 = vunpack.c.l.b16 %v3551
        %v3674 = vunpack.c.h.b16 %v3551
        %v3675 = vunpack.c.l.b16 %v3552
        %v3676 = vunpack.c.h.b16 %v3552
        %v3677 = vunpack.c.l.b16 %v3553
        %v3678 = vunpack.c.h.b16 %v3553
        %v3679 = vunpack.c.l.b16 %v3554
        %v3680 = vunpack.c.h.b16 %v3554
        %v3681 = vunpack.c.l.b16 %v3555
        %v3682 = vunpack.c.h.b16 %v3555
        %v3683 = vunpack.c.l.b16 %v3556
        %v3684 = vunpack.c.h.b16 %v3556
        %v3685 = vunpack.c.l.b16 %v3557
        %v3686 = vunpack.c.h.b16 %v3557
        %v3687 = vunpack.c.l.b16 %v3558
        %v3688 = vunpack.c.h.b16 %v3558
        %v3689 = vunpack.c.l.b16 %v3559
        %v3690 = vunpack.c.h.b16 %v3559
        %v3691 = vunpack.c.l.b16 %v3560
        %v3692 = vunpack.c.h.b16 %v3560
        %v3693 = vunpack.c.l.b16 %v3561
        %v3694 = vunpack.c.h.b16 %v3561
        %v3695 = vunpack.c.l.b16 %v3562
        %v3696 = vunpack.c.h.b16 %v3562
        %v3697 = vunpack.c.l.b16 %v3563
        %v3698 = vunpack.c.h.b16 %v3563
        %v3699 = vunpack.c.l.b16 %v3564
        %v3700 = vunpack.c.h.b16 %v3564
        %v3701 = vunpack.c.l.b16 %v3565
        %v3702 = vunpack.c.h.b16 %v3565
        %v3703 = vunpack.c.l.b16 %v3566
        %v3704 = vunpack.c.h.b16 %v3566
        %v3705 = vunpack.c.l.b16 %v3567
        %v3706 = vunpack.c.h.b16 %v3567
        %v3707 = vunpack.c.l.b16 %v3568
        %v3708 = vunpack.c.h.b16 %v3568
        %v3709 = vunpack.c.l.b16 %v3569
        %v3710 = vunpack.c.h.b16 %v3569
        %v3711 = vunpack.c.l.b16 %v3570
        %v3712 = vunpack.c.h.b16 %v3570
        %v3713 = vunpack.c.l.b16 %v3571
        %v3714 = vunpack.c.h.b16 %v3571
        %v3715 = vunpack.c.l.b16 %v3572
        %v3716 = vunpack.c.h.b16 %v3572
        %v3717 = vunpack.c.l.b16 %v3573
        %v3718 = vunpack.c.h.b16 %v3573
        %v3719 = vunpack.c.l.b16 %v3574
        %v3720 = vunpack.c.h.b16 %v3574
        %v3721 = vpack.c.b16 %v3659, %v3657
        %v3722 = vpack.c.b16 %v3660, %v3658
        %v3723 = vpack.c.b16 %v3663, %v3661
        %v3724 = vpack.c.b16 %v3664, %v3662
        %v3725 = vpack.c.b16 %v3667, %v3665
        %v3726 = vpack.c.b16 %v3668, %v3666
        %v3727 = vpack.c.b16 %v3671, %v3669
        %v3728 = vpack.c.b16 %v3672, %v3670
        %v3729 = vpack.c.b16 %v3675, %v3673
        %v3730 = vpack.c.b16 %v3676, %v3674
        %v3731 = vpack.c.b16 %v3679, %v3677
        %v3732 = vpack.c.b16 %v3680, %v3678
        %v3733 = vpack.c.b16 %v3683, %v3681
        %v3734 = vpack.c.b16 %v3684, %v3682
        %v3735 = vpack.c.b16 %v3687, %v3685
        %v3736 = vpack.c.b16 %v3688, %v3686
        %v3737 = vpack.c.b16 %v3691, %v3689
        %v3738 = vpack.c.b16 %v3692, %v3690
        %v3739 = vpack.c.b16 %v3695, %v3693
        %v3740 = vpack.c.b16 %v3696, %v3694
        %v3741 = vpack.c.b16 %v3699, %v3697
        %v3742 = vpack.c.b16 %v3700, %v3698
        %v3743 = vpack.c.b16 %v3703, %v3701
        %v3744 = vpack.c.b16 %v3704, %v3702
        %v3745 = vpack.c.b16 %v3707, %v3705
        %v3746 = vpack.c.b16 %v3708, %v3706
        %v3747 = vpack.c.b16 %v3711, %v3709
        %v3748 = vpack.c.b16 %v3712, %v3710
        %v3749 = vpack.c.b16 %v3715, %v3713
        %v3750 = vpack.c.b16 %v3716, %v3714
        %v3751 = vpack.c.b16 %v3719, %v3717
        %v3752 = vpack.c.b16 %v3720, %v3718
        %3785 = vmatprep.subr.bf16.mxu0 %v3736
        %3786 = vmatpush1.bf16.msra.mxu0 %v3735
        %3787 = vmatprep.subr.bf16.mxu0 %v3734
        %3788 = vmatpush1.bf16.msra.mxu0 %v3733
        %3789 = vmatprep.subr.bf16.mxu0 %v3732
        %3790 = vmatpush1.bf16.msra.mxu0 %v3731
        %3791 = vmatprep.subr.bf16.mxu0 %v3730
        %3792 = vmatpush1.bf16.msra.mxu0 %v3729
        %3793 = vmatprep.subr.bf16.mxu0 %v3728
        %3794 = vmatpush1.bf16.msra.mxu0 %v3727
        %3795 = vmatprep.subr.bf16.mxu0 %v3726
        %3796 = vmatpush1.bf16.msra.mxu0 %v3725
        %3797 = vmatprep.subr.bf16.mxu0 %v3724
        %3798 = vmatpush1.bf16.msra.mxu0 %v3723
        %3799 = vmatprep.subr.bf16.mxu0 %v3722
        %3800 = vmatpush1.bf16.msra.mxu0 %v3721
        %3801 = vmatprep.subr.bf16.mxu0 %v3752
        %3802 = vmatpush2.bf16.msra.mxu0 %v3751
        %3803 = vmatprep.subr.bf16.mxu0 %v3750
        %3804 = vmatpush2.bf16.msra.mxu0 %v3749
        %3805 = vmatprep.subr.bf16.mxu0 %v3748
        %3806 = vmatpush2.bf16.msra.mxu0 %v3747
        %3807 = vmatprep.subr.bf16.mxu0 %v3746
        %3808 = vmatpush2.bf16.msra.mxu0 %v3745
        %3809 = vmatprep.subr.bf16.mxu0 %v3744
        %3810 = vmatpush2.bf16.msra.mxu0 %v3743
        %3811 = vmatprep.subr.bf16.mxu0 %v3742
        %3812 = vmatpush2.bf16.msra.mxu0 %v3741
        %3813 = vmatprep.subr.bf16.mxu0 %v3740
        %3814 = vmatpush2.bf16.msra.mxu0 %v3739
        %3815 = vmatprep.subr.bf16.mxu0 %v3738
        %3816 = vmatpush2.bf16.msra.mxu0 %v3737
        %3817 = vmatprep.mubr.bf16.mxu0 %v3614
        %3818 = vmatmul.mubr.bf16.gmra.mxu0 %v3602
        %v3819 = vpop.f32.mrf.mxu0
        %v3820 = vadd.f32 0.0, %v3819
        %v3821 = vpop.f32.mrf.mxu0
        %v3822 = vadd.f32 0.0, %v3821
        %v3823 = vpop.f32.mrf.mxu0
        %v3824 = vadd.f32 0.0, %v3823
        %v3825 = vpop.f32.mrf.mxu0
        %v3826 = vadd.f32 0.0, %v3825
        %3827 = vmatprep.mubr.bf16.mxu0 %v3620
        %3828 = vmatmul.mubr.bf16.gmra.mxu0 %v3617
        %v3829 = vpop.f32.mrf.mxu0
        %v3830 = vadd.f32 0.0, %v3829
        %v3831 = vpop.f32.mrf.mxu0
        %v3832 = vadd.f32 0.0, %v3831
        %v3833 = vpop.f32.mrf.mxu0
        %v3834 = vadd.f32 0.0, %v3833
        %v3835 = vpop.f32.mrf.mxu0
        %v3836 = vadd.f32 0.0, %v3835
        %3837 = vdwg.mxu0
        %v3874 = vunpack.c.l.b16 %v3510
        %v3875 = vunpack.c.h.b16 %v3510
        %v3876 = vunpack.c.l.b16 %v3511
        %v3877 = vunpack.c.h.b16 %v3511
        %v3878 = vunpack.c.l.b16 %v3512
        %v3879 = vunpack.c.h.b16 %v3512
        %v3880 = vunpack.c.l.b16 %v3513
        %v3881 = vunpack.c.h.b16 %v3513
        %v3882 = vunpack.c.l.b16 %v3514
        %v3883 = vunpack.c.h.b16 %v3514
        %v3884 = vunpack.c.l.b16 %v3515
        %v3885 = vunpack.c.h.b16 %v3515
        %v3886 = vunpack.c.l.b16 %v3516
        %v3887 = vunpack.c.h.b16 %v3516
        %v3888 = vunpack.c.l.b16 %v3517
        %v3889 = vunpack.c.h.b16 %v3517
        %v3890 = vunpack.c.l.b16 %v3518
        %v3891 = vunpack.c.h.b16 %v3518
        %v3892 = vunpack.c.l.b16 %v3519
        %v3893 = vunpack.c.h.b16 %v3519
        %v3894 = vunpack.c.l.b16 %v3520
        %v3895 = vunpack.c.h.b16 %v3520
        %v3896 = vunpack.c.l.b16 %v3521
        %v3897 = vunpack.c.h.b16 %v3521
        %v3898 = vunpack.c.l.b16 %v3522
        %v3899 = vunpack.c.h.b16 %v3522
        %v3900 = vunpack.c.l.b16 %v3523
        %v3901 = vunpack.c.h.b16 %v3523
        %v3902 = vunpack.c.l.b16 %v3524
        %v3903 = vunpack.c.h.b16 %v3524
        %v3904 = vunpack.c.l.b16 %v3525
        %v3905 = vunpack.c.h.b16 %v3525
        %v3906 = vunpack.c.l.b16 %v3526
        %v3907 = vunpack.c.h.b16 %v3526
        %v3908 = vunpack.c.l.b16 %v3527
        %v3909 = vunpack.c.h.b16 %v3527
        %v3910 = vunpack.c.l.b16 %v3528
        %v3911 = vunpack.c.h.b16 %v3528
        %v3912 = vunpack.c.l.b16 %v3529
        %v3913 = vunpack.c.h.b16 %v3529
        %v3914 = vunpack.c.l.b16 %v3530
        %v3915 = vunpack.c.h.b16 %v3530
        %v3916 = vunpack.c.l.b16 %v3531
        %v3917 = vunpack.c.h.b16 %v3531
        %v3918 = vunpack.c.l.b16 %v3532
        %v3919 = vunpack.c.h.b16 %v3532
        %v3920 = vunpack.c.l.b16 %v3533
        %v3921 = vunpack.c.h.b16 %v3533
        %v3922 = vunpack.c.l.b16 %v3534
        %v3923 = vunpack.c.h.b16 %v3534
        %v3924 = vunpack.c.l.b16 %v3535
        %v3925 = vunpack.c.h.b16 %v3535
        %v3926 = vunpack.c.l.b16 %v3536
        %v3927 = vunpack.c.h.b16 %v3536
        %v3928 = vunpack.c.l.b16 %v3537
        %v3929 = vunpack.c.h.b16 %v3537
        %v3930 = vunpack.c.l.b16 %v3538
        %v3931 = vunpack.c.h.b16 %v3538
        %v3932 = vunpack.c.l.b16 %v3539
        %v3933 = vunpack.c.h.b16 %v3539
        %v3934 = vunpack.c.l.b16 %v3540
        %v3935 = vunpack.c.h.b16 %v3540
        %v3936 = vunpack.c.l.b16 %v3541
        %v3937 = vunpack.c.h.b16 %v3541
        %v3938 = vpack.c.b16 %v3876, %v3874
        %v3939 = vpack.c.b16 %v3877, %v3875
        %v3940 = vpack.c.b16 %v3880, %v3878
        %v3941 = vpack.c.b16 %v3881, %v3879
        %v3942 = vpack.c.b16 %v3884, %v3882
        %v3943 = vpack.c.b16 %v3885, %v3883
        %v3944 = vpack.c.b16 %v3888, %v3886
        %v3945 = vpack.c.b16 %v3889, %v3887
        %v3946 = vpack.c.b16 %v3892, %v3890
        %v3947 = vpack.c.b16 %v3893, %v3891
        %v3948 = vpack.c.b16 %v3896, %v3894
        %v3949 = vpack.c.b16 %v3897, %v3895
        %v3950 = vpack.c.b16 %v3900, %v3898
        %v3951 = vpack.c.b16 %v3901, %v3899
        %v3952 = vpack.c.b16 %v3904, %v3902
        %v3953 = vpack.c.b16 %v3905, %v3903
        %v3954 = vpack.c.b16 %v3908, %v3906
        %v3955 = vpack.c.b16 %v3909, %v3907
        %v3956 = vpack.c.b16 %v3912, %v3910
        %v3957 = vpack.c.b16 %v3913, %v3911
        %v3958 = vpack.c.b16 %v3916, %v3914
        %v3959 = vpack.c.b16 %v3917, %v3915
        %v3960 = vpack.c.b16 %v3920, %v3918
        %v3961 = vpack.c.b16 %v3921, %v3919
        %v3962 = vpack.c.b16 %v3924, %v3922
        %v3963 = vpack.c.b16 %v3925, %v3923
        %v3964 = vpack.c.b16 %v3928, %v3926
        %v3965 = vpack.c.b16 %v3929, %v3927
        %v3966 = vpack.c.b16 %v3932, %v3930
        %v3967 = vpack.c.b16 %v3933, %v3931
        %v3968 = vpack.c.b16 %v3936, %v3934
        %v3969 = vpack.c.b16 %v3937, %v3935
        %4002 = vmatprep.subr.bf16.mxu0 %v3953
        %4003 = vmatpush1.bf16.msra.mxu0 %v3952
        %4004 = vmatprep.subr.bf16.mxu0 %v3951
        %4005 = vmatpush1.bf16.msra.mxu0 %v3950
        %4006 = vmatprep.subr.bf16.mxu0 %v3949
        %4007 = vmatpush1.bf16.msra.mxu0 %v3948
        %4008 = vmatprep.subr.bf16.mxu0 %v3947
        %4009 = vmatpush1.bf16.msra.mxu0 %v3946
        %4010 = vmatprep.subr.bf16.mxu0 %v3945
        %4011 = vmatpush1.bf16.msra.mxu0 %v3944
        %4012 = vmatprep.subr.bf16.mxu0 %v3943
        %4013 = vmatpush1.bf16.msra.mxu0 %v3942
        %4014 = vmatprep.subr.bf16.mxu0 %v3941
        %4015 = vmatpush1.bf16.msra.mxu0 %v3940
        %4016 = vmatprep.subr.bf16.mxu0 %v3939
        %4017 = vmatpush1.bf16.msra.mxu0 %v3938
        %4018 = vmatprep.subr.bf16.mxu0 %v3969
        %4019 = vmatpush2.bf16.msra.mxu0 %v3968
        %4020 = vmatprep.subr.bf16.mxu0 %v3967
        %4021 = vmatpush2.bf16.msra.mxu0 %v3966
        %4022 = vmatprep.subr.bf16.mxu0 %v3965
        %4023 = vmatpush2.bf16.msra.mxu0 %v3964
        %4024 = vmatprep.subr.bf16.mxu0 %v3963
        %4025 = vmatpush2.bf16.msra.mxu0 %v3962
        %4026 = vmatprep.subr.bf16.mxu0 %v3961
        %4027 = vmatpush2.bf16.msra.mxu0 %v3960
        %4028 = vmatprep.subr.bf16.mxu0 %v3959
        %4029 = vmatpush2.bf16.msra.mxu0 %v3958
        %4030 = vmatprep.subr.bf16.mxu0 %v3957
        %4031 = vmatpush2.bf16.msra.mxu0 %v3956
        %4032 = vmatprep.subr.bf16.mxu0 %v3955
        %4033 = vmatpush2.bf16.msra.mxu0 %v3954
        %4034 = vmatprep.mubr.bf16.mxu0 %v3588
        %4035 = vmatmul.mubr.bf16.gmra.mxu0 %v3587
        %v4036 = vpop.f32.mrf.mxu0
        %v4037 = vadd.f32 %v3820, %v4036
        %v4038 = vpop.f32.mrf.mxu0
        %v4039 = vadd.f32 %v3822, %v4038
        %v4040 = vpop.f32.mrf.mxu0
        %v4041 = vadd.f32 %v3824, %v4040
        %v4042 = vpop.f32.mrf.mxu0
        %v4043 = vadd.f32 %v3826, %v4042
        %4044 = vmatprep.mubr.bf16.mxu0 %v3590
        %4045 = vmatmul.mubr.bf16.gmra.mxu0 %v3589
        %v4046 = vpop.f32.mrf.mxu0
        %v4047 = vadd.f32 %v3830, %v4046
        %v4048 = vpop.f32.mrf.mxu0
        %v4049 = vadd.f32 %v3832, %v4048
        %v4050 = vpop.f32.mrf.mxu0
        %v4051 = vadd.f32 %v3834, %v4050
        %v4052 = vpop.f32.mrf.mxu0
        %v4053 = vadd.f32 %v3836, %v4052
        %4054 = vdwg.mxu0
        %v4055 = vld [vmem:[#allocation3] sm:$0xee]
        %v4056 = vld [vmem:[#allocation3 + $0x18] sm:$0x77]
        %s4057 = scalar_lea.vmem [#allocation11], 512
        %v4058 = vld [vmem:[%s4057] sm:$0xff]
        %v4059 = vld [vmem:[%s4057 + $0x8] sm:$0xff]
        %v4060 = vld [vmem:[%s4057 + $0x10] sm:$0xff]
        %v4061 = vld [vmem:[%s4057 + $0x18] sm:$0xff]
        %v4062 = vld [vmem:[%s4057 + $0x20] sm:$0xff]
        %v4063 = vld [vmem:[%s4057 + $0x28] sm:$0xff]
        %v4064 = vld [vmem:[%s4057 + $0x30] sm:$0xff]
        %v4065 = vld [vmem:[%s4057 + $0x38] sm:$0xff]
        %v4066 = vld [vmem:[%s4057 + $0x40] sm:$0xff]
        %v4067 = vld [vmem:[%s4057 + $0x48] sm:$0xff]
        %v4068 = vld [vmem:[%s4057 + $0x50] sm:$0xff]
        %v4069 = vld [vmem:[%s4057 + $0x58] sm:$0xff]
        %v4070 = vld [vmem:[%s4057 + $0x60] sm:$0xff]
        %v4071 = vld [vmem:[%s4057 + $0x68] sm:$0xff]
        %v4072 = vld [vmem:[%s4057 + $0x70] sm:$0xff]
        %v4073 = vld [vmem:[%s4057 + $0x78] sm:$0xff]
        %v4074 = vld [vmem:[%s4057 + $0x80] sm:$0xff]
        %v4075 = vld [vmem:[%s4057 + $0x88] sm:$0xff]
        %v4076 = vld [vmem:[%s4057 + $0x90] sm:$0xff]
        %v4077 = vld [vmem:[%s4057 + $0x98] sm:$0xff]
        %v4078 = vld [vmem:[%s4057 + $0xa0] sm:$0xff]
        %v4079 = vld [vmem:[%s4057 + $0xa8] sm:$0xff]
        %v4080 = vld [vmem:[%s4057 + $0xb0] sm:$0xff]
        %v4081 = vld [vmem:[%s4057 + $0xb8] sm:$0xff]
        %v4082 = vld [vmem:[%s4057 + $0xc0] sm:$0xff]
        %v4083 = vld [vmem:[%s4057 + $0xc8] sm:$0xff]
        %v4084 = vld [vmem:[%s4057 + $0xd0] sm:$0xff]
        %v4085 = vld [vmem:[%s4057 + $0xd8] sm:$0xff]
        %v4086 = vld [vmem:[%s4057 + $0xe0] sm:$0xff]
        %v4087 = vld [vmem:[%s4057 + $0xe8] sm:$0xff]
        %v4088 = vld [vmem:[%s4057 + $0xf0] sm:$0xff]
        %v4089 = vld [vmem:[%s4057 + $0xf8] sm:$0xff]
        %v4092 = vunpack.c.l.b16 %v4055
        %v4093 = vunpack.c.h.b16 %v4055
        %v4094 = vunpack.c.l.b16 %v4056
        %v4095 = vunpack.c.h.b16 %v4056
        %v4096 = vpack.c.b16 %v3581, %v4092
        %v4097 = vpack.c.b16 %v3582, %v4093
        %v4098 = vpack.c.b16 %v4094, %v3583
        %v4099 = vpack.c.b16 %v4095, %v3584
        %v4100 = vrot.slane %v4096, 1
        %v4101 = vrot.slane %v4098, 1
        %v4102 = vsel %vm696, %v4100, %v4101
        %v4103 = vrot.slane %v4097, 1
        %v4104 = vrot.slane %v4099, 1
        %v4105 = vsel %vm696, %v4103, %v4104
        %v4142 = vunpack.c.l.b16 %v4058
        %v4143 = vunpack.c.h.b16 %v4058
        %v4144 = vunpack.c.l.b16 %v4059
        %v4145 = vunpack.c.h.b16 %v4059
        %v4146 = vunpack.c.l.b16 %v4060
        %v4147 = vunpack.c.h.b16 %v4060
        %v4148 = vunpack.c.l.b16 %v4061
        %v4149 = vunpack.c.h.b16 %v4061
        %v4150 = vunpack.c.l.b16 %v4062
        %v4151 = vunpack.c.h.b16 %v4062
        %v4152 = vunpack.c.l.b16 %v4063
        %v4153 = vunpack.c.h.b16 %v4063
        %v4154 = vunpack.c.l.b16 %v4064
        %v4155 = vunpack.c.h.b16 %v4064
        %v4156 = vunpack.c.l.b16 %v4065
        %v4157 = vunpack.c.h.b16 %v4065
        %v4158 = vunpack.c.l.b16 %v4066
        %v4159 = vunpack.c.h.b16 %v4066
        %v4160 = vunpack.c.l.b16 %v4067
        %v4161 = vunpack.c.h.b16 %v4067
        %v4162 = vunpack.c.l.b16 %v4068
        %v4163 = vunpack.c.h.b16 %v4068
        %v4164 = vunpack.c.l.b16 %v4069
        %v4165 = vunpack.c.h.b16 %v4069
        %v4166 = vunpack.c.l.b16 %v4070
        %v4167 = vunpack.c.h.b16 %v4070
        %v4168 = vunpack.c.l.b16 %v4071
        %v4169 = vunpack.c.h.b16 %v4071
        %v4170 = vunpack.c.l.b16 %v4072
        %v4171 = vunpack.c.h.b16 %v4072
        %v4172 = vunpack.c.l.b16 %v4073
        %v4173 = vunpack.c.h.b16 %v4073
        %v4174 = vunpack.c.l.b16 %v4074
        %v4175 = vunpack.c.h.b16 %v4074
        %v4176 = vunpack.c.l.b16 %v4075
        %v4177 = vunpack.c.h.b16 %v4075
        %v4178 = vunpack.c.l.b16 %v4076
        %v4179 = vunpack.c.h.b16 %v4076
        %v4180 = vunpack.c.l.b16 %v4077
        %v4181 = vunpack.c.h.b16 %v4077
        %v4182 = vunpack.c.l.b16 %v4078
        %v4183 = vunpack.c.h.b16 %v4078
        %v4184 = vunpack.c.l.b16 %v4079
        %v4185 = vunpack.c.h.b16 %v4079
        %v4186 = vunpack.c.l.b16 %v4080
        %v4187 = vunpack.c.h.b16 %v4080
        %v4188 = vunpack.c.l.b16 %v4081
        %v4189 = vunpack.c.h.b16 %v4081
        %v4190 = vunpack.c.l.b16 %v4082
        %v4191 = vunpack.c.h.b16 %v4082
        %v4192 = vunpack.c.l.b16 %v4083
        %v4193 = vunpack.c.h.b16 %v4083
        %v4194 = vunpack.c.l.b16 %v4084
        %v4195 = vunpack.c.h.b16 %v4084
        %v4196 = vunpack.c.l.b16 %v4085
        %v4197 = vunpack.c.h.b16 %v4085
        %v4198 = vunpack.c.l.b16 %v4086
        %v4199 = vunpack.c.h.b16 %v4086
        %v4200 = vunpack.c.l.b16 %v4087
        %v4201 = vunpack.c.h.b16 %v4087
        %v4202 = vunpack.c.l.b16 %v4088
        %v4203 = vunpack.c.h.b16 %v4088
        %v4204 = vunpack.c.l.b16 %v4089
        %v4205 = vunpack.c.h.b16 %v4089
        %v4206 = vpack.c.b16 %v4144, %v4142
        %v4207 = vpack.c.b16 %v4145, %v4143
        %v4208 = vpack.c.b16 %v4148, %v4146
        %v4209 = vpack.c.b16 %v4149, %v4147
        %v4210 = vpack.c.b16 %v4152, %v4150
        %v4211 = vpack.c.b16 %v4153, %v4151
        %v4212 = vpack.c.b16 %v4156, %v4154
        %v4213 = vpack.c.b16 %v4157, %v4155
        %v4214 = vpack.c.b16 %v4160, %v4158
        %v4215 = vpack.c.b16 %v4161, %v4159
        %v4216 = vpack.c.b16 %v4164, %v4162
        %v4217 = vpack.c.b16 %v4165, %v4163
        %v4218 = vpack.c.b16 %v4168, %v4166
        %v4219 = vpack.c.b16 %v4169, %v4167
        %v4220 = vpack.c.b16 %v4172, %v4170
        %v4221 = vpack.c.b16 %v4173, %v4171
        %v4222 = vpack.c.b16 %v4176, %v4174
        %v4223 = vpack.c.b16 %v4177, %v4175
        %v4224 = vpack.c.b16 %v4180, %v4178
        %v4225 = vpack.c.b16 %v4181, %v4179
        %v4226 = vpack.c.b16 %v4184, %v4182
        %v4227 = vpack.c.b16 %v4185, %v4183
        %v4228 = vpack.c.b16 %v4188, %v4186
        %v4229 = vpack.c.b16 %v4189, %v4187
        %v4230 = vpack.c.b16 %v4192, %v4190
        %v4231 = vpack.c.b16 %v4193, %v4191
        %v4232 = vpack.c.b16 %v4196, %v4194
        %v4233 = vpack.c.b16 %v4197, %v4195
        %v4234 = vpack.c.b16 %v4200, %v4198
        %v4235 = vpack.c.b16 %v4201, %v4199
        %v4236 = vpack.c.b16 %v4204, %v4202
        %v4237 = vpack.c.b16 %v4205, %v4203
        %4270 = vmatprep.subr.bf16.mxu0 %v4221
        %4271 = vmatpush1.bf16.msra.mxu0 %v4220
        %4272 = vmatprep.subr.bf16.mxu0 %v4219
        %4273 = vmatpush1.bf16.msra.mxu0 %v4218
        %4274 = vmatprep.subr.bf16.mxu0 %v4217
        %4275 = vmatpush1.bf16.msra.mxu0 %v4216
        %4276 = vmatprep.subr.bf16.mxu0 %v4215
        %4277 = vmatpush1.bf16.msra.mxu0 %v4214
        %4278 = vmatprep.subr.bf16.mxu0 %v4213
        %4279 = vmatpush1.bf16.msra.mxu0 %v4212
        %4280 = vmatprep.subr.bf16.mxu0 %v4211
        %4281 = vmatpush1.bf16.msra.mxu0 %v4210
        %4282 = vmatprep.subr.bf16.mxu0 %v4209
        %4283 = vmatpush1.bf16.msra.mxu0 %v4208
        %4284 = vmatprep.subr.bf16.mxu0 %v4207
        %4285 = vmatpush1.bf16.msra.mxu0 %v4206
        %4286 = vmatprep.subr.bf16.mxu0 %v4237
        %4287 = vmatpush2.bf16.msra.mxu0 %v4236
        %4288 = vmatprep.subr.bf16.mxu0 %v4235
        %4289 = vmatpush2.bf16.msra.mxu0 %v4234
        %4290 = vmatprep.subr.bf16.mxu0 %v4233
        %4291 = vmatpush2.bf16.msra.mxu0 %v4232
        %4292 = vmatprep.subr.bf16.mxu0 %v4231
        %4293 = vmatpush2.bf16.msra.mxu0 %v4230
        %4294 = vmatprep.subr.bf16.mxu0 %v4229
        %4295 = vmatpush2.bf16.msra.mxu0 %v4228
        %4296 = vmatprep.subr.bf16.mxu0 %v4227
        %4297 = vmatpush2.bf16.msra.mxu0 %v4226
        %4298 = vmatprep.subr.bf16.mxu0 %v4225
        %4299 = vmatpush2.bf16.msra.mxu0 %v4224
        %4300 = vmatprep.subr.bf16.mxu0 %v4223
        %4301 = vmatpush2.bf16.msra.mxu0 %v4222
        %4302 = vmatprep.mubr.bf16.mxu0 %v4105
        %4303 = vmatmul.mubr.bf16.gmra.mxu0 %v4102
        %v4304 = vpop.f32.mrf.mxu0
        %v4305 = vadd.f32 0.0, %v4304
        %v4306 = vpop.f32.mrf.mxu0
        %v4307 = vadd.f32 0.0, %v4306
        %v4308 = vpop.f32.mrf.mxu0
        %v4309 = vadd.f32 0.0, %v4308
        %v4310 = vpop.f32.mrf.mxu0
        %v4311 = vadd.f32 0.0, %v4310
        %4312 = vmatprep.mubr.bf16.mxu0 %v4104
        %4313 = vmatmul.mubr.bf16.gmra.mxu0 %v4101
        %v4314 = vpop.f32.mrf.mxu0
        %v4315 = vadd.f32 0.0, %v4314
        %v4316 = vpop.f32.mrf.mxu0
        %v4317 = vadd.f32 0.0, %v4316
        %v4318 = vpop.f32.mrf.mxu0
        %v4319 = vadd.f32 0.0, %v4318
        %v4320 = vpop.f32.mrf.mxu0
        %v4321 = vadd.f32 0.0, %v4320
        %4322 = vdwg.mxu0
        %v4323 = vadd.f32 %v4037, %v4305
        %v4324 = vadd.f32 %v4039, %v4307
        %v4325 = vadd.f32 %v4041, %v4309
        %v4326 = vadd.f32 %v4043, %v4311
        %v4327 = vadd.f32 %v4047, %v4315
        %v4328 = vadd.f32 %v4049, %v4317
        %v4329 = vadd.f32 %v4051, %v4319
        %v4330 = vadd.f32 %v4053, %v4321
        %v4331 = vld [vmem:[#allocation3 + $0x8] sm:$0xff]
        %v4332 = vld [vmem:[#allocation3 + $0x10] sm:$0xff]
        %v4333 = vld [vmem:[#allocation3 + $0x18] sm:$0xff]
        %v4334 = vld [vmem:[#allocation3 + $0x20] sm:$0x33]
        %s4335 = scalar_lea.vmem [#allocation11], 768
        %v4336 = vld [vmem:[%s4335] sm:$0xff]
        %v4337 = vld [vmem:[%s4335 + $0x8] sm:$0xff]
        %v4338 = vld [vmem:[%s4335 + $0x10] sm:$0xff]
        %v4339 = vld [vmem:[%s4335 + $0x18] sm:$0xff]
        %v4340 = vld [vmem:[%s4335 + $0x20] sm:$0xff]
        %v4341 = vld [vmem:[%s4335 + $0x28] sm:$0xff]
        %v4342 = vld [vmem:[%s4335 + $0x30] sm:$0xff]
        %v4343 = vld [vmem:[%s4335 + $0x38] sm:$0xff]
        %v4344 = vld [vmem:[%s4335 + $0x40] sm:$0xff]
        %v4345 = vld [vmem:[%s4335 + $0x48] sm:$0xff]
        %v4346 = vld [vmem:[%s4335 + $0x50] sm:$0xff]
        %v4347 = vld [vmem:[%s4335 + $0x58] sm:$0xff]
        %v4348 = vld [vmem:[%s4335 + $0x60] sm:$0xff]
        %v4349 = vld [vmem:[%s4335 + $0x68] sm:$0xff]
        %v4350 = vld [vmem:[%s4335 + $0x70] sm:$0xff]
        %v4351 = vld [vmem:[%s4335 + $0x78] sm:$0xff]
        %v4352 = vld [vmem:[%s4335 + $0x80] sm:$0xff]
        %v4353 = vld [vmem:[%s4335 + $0x88] sm:$0xff]
        %v4354 = vld [vmem:[%s4335 + $0x90] sm:$0xff]
        %v4355 = vld [vmem:[%s4335 + $0x98] sm:$0xff]
        %v4356 = vld [vmem:[%s4335 + $0xa0] sm:$0xff]
        %v4357 = vld [vmem:[%s4335 + $0xa8] sm:$0xff]
        %v4358 = vld [vmem:[%s4335 + $0xb0] sm:$0xff]
        %v4359 = vld [vmem:[%s4335 + $0xb8] sm:$0xff]
        %v4360 = vld [vmem:[%s4335 + $0xc0] sm:$0xff]
        %v4361 = vld [vmem:[%s4335 + $0xc8] sm:$0xff]
        %v4362 = vld [vmem:[%s4335 + $0xd0] sm:$0xff]
        %v4363 = vld [vmem:[%s4335 + $0xd8] sm:$0xff]
        %v4364 = vld [vmem:[%s4335 + $0xe0] sm:$0xff]
        %v4365 = vld [vmem:[%s4335 + $0xe8] sm:$0xff]
        %v4366 = vld [vmem:[%s4335 + $0xf0] sm:$0xff]
        %v4367 = vld [vmem:[%s4335 + $0xf8] sm:$0xff]
        %v4372 = vunpack.c.l.b16 %v4331
        %v4373 = vunpack.c.h.b16 %v4331
        %v4374 = vunpack.c.l.b16 %v4332
        %v4375 = vunpack.c.h.b16 %v4332
        %v4376 = vunpack.c.l.b16 %v4333
        %v4377 = vunpack.c.h.b16 %v4333
        %v4378 = vunpack.c.l.b16 %v4334
        %v4379 = vunpack.c.h.b16 %v4334
        %v4380 = vpack.c.b16 %v4374, %v4372
        %v4381 = vpack.c.b16 %v4375, %v4373
        %v4382 = vpack.c.b16 %v4378, %v4376
        %v4383 = vpack.c.b16 %v4379, %v4377
        %v4385 = vshrl.u32 %v4380, 16
        %v4387 = vshll.u32 %v4380, 16
        %v4389 = vrot.slane %v4387, 1
        %v4390 = vor.u32 %v4385, %v4389
        %v4392 = vshll.u32 %v4382, 16
        %v4394 = vrot.slane %v4392, 1
        %v4395 = vsel %vm472, %v4390, %v4394
        %v4397 = vshrl.u32 %v4381, 16
        %v4399 = vshll.u32 %v4381, 16
        %v4401 = vrot.slane %v4399, 1
        %v4402 = vor.u32 %v4397, %v4401
        %v4404 = vshll.u32 %v4383, 16
        %v4406 = vrot.slane %v4404, 1
        %v4407 = vsel %vm472, %v4402, %v4406
        %v4408 = vshrl.u32 %v4382, 16
        %v4410 = vor.u32 %v4408, %v4394
        %v4411 = vshrl.u32 %v4383, 16
        %v4413 = vor.u32 %v4411, %v4406
        %v4450 = vunpack.c.l.b16 %v4336
        %v4451 = vunpack.c.h.b16 %v4336
        %v4452 = vunpack.c.l.b16 %v4337
        %v4453 = vunpack.c.h.b16 %v4337
        %v4454 = vunpack.c.l.b16 %v4338
        %v4455 = vunpack.c.h.b16 %v4338
        %v4456 = vunpack.c.l.b16 %v4339
        %v4457 = vunpack.c.h.b16 %v4339
        %v4458 = vunpack.c.l.b16 %v4340
        %v4459 = vunpack.c.h.b16 %v4340
        %v4460 = vunpack.c.l.b16 %v4341
        %v4461 = vunpack.c.h.b16 %v4341
        %v4462 = vunpack.c.l.b16 %v4342
        %v4463 = vunpack.c.h.b16 %v4342
        %v4464 = vunpack.c.l.b16 %v4343
        %v4465 = vunpack.c.h.b16 %v4343
        %v4466 = vunpack.c.l.b16 %v4344
        %v4467 = vunpack.c.h.b16 %v4344
        %v4468 = vunpack.c.l.b16 %v4345
        %v4469 = vunpack.c.h.b16 %v4345
        %v4470 = vunpack.c.l.b16 %v4346
        %v4471 = vunpack.c.h.b16 %v4346
        %v4472 = vunpack.c.l.b16 %v4347
        %v4473 = vunpack.c.h.b16 %v4347
        %v4474 = vunpack.c.l.b16 %v4348
        %v4475 = vunpack.c.h.b16 %v4348
        %v4476 = vunpack.c.l.b16 %v4349
        %v4477 = vunpack.c.h.b16 %v4349
        %v4478 = vunpack.c.l.b16 %v4350
        %v4479 = vunpack.c.h.b16 %v4350
        %v4480 = vunpack.c.l.b16 %v4351
        %v4481 = vunpack.c.h.b16 %v4351
        %v4482 = vunpack.c.l.b16 %v4352
        %v4483 = vunpack.c.h.b16 %v4352
        %v4484 = vunpack.c.l.b16 %v4353
        %v4485 = vunpack.c.h.b16 %v4353
        %v4486 = vunpack.c.l.b16 %v4354
        %v4487 = vunpack.c.h.b16 %v4354
        %v4488 = vunpack.c.l.b16 %v4355
        %v4489 = vunpack.c.h.b16 %v4355
        %v4490 = vunpack.c.l.b16 %v4356
        %v4491 = vunpack.c.h.b16 %v4356
        %v4492 = vunpack.c.l.b16 %v4357
        %v4493 = vunpack.c.h.b16 %v4357
        %v4494 = vunpack.c.l.b16 %v4358
        %v4495 = vunpack.c.h.b16 %v4358
        %v4496 = vunpack.c.l.b16 %v4359
        %v4497 = vunpack.c.h.b16 %v4359
        %v4498 = vunpack.c.l.b16 %v4360
        %v4499 = vunpack.c.h.b16 %v4360
        %v4500 = vunpack.c.l.b16 %v4361
        %v4501 = vunpack.c.h.b16 %v4361
        %v4502 = vunpack.c.l.b16 %v4362
        %v4503 = vunpack.c.h.b16 %v4362
        %v4504 = vunpack.c.l.b16 %v4363
        %v4505 = vunpack.c.h.b16 %v4363
        %v4506 = vunpack.c.l.b16 %v4364
        %v4507 = vunpack.c.h.b16 %v4364
        %v4508 = vunpack.c.l.b16 %v4365
        %v4509 = vunpack.c.h.b16 %v4365
        %v4510 = vunpack.c.l.b16 %v4366
        %v4511 = vunpack.c.h.b16 %v4366
        %v4512 = vunpack.c.l.b16 %v4367
        %v4513 = vunpack.c.h.b16 %v4367
        %v4514 = vpack.c.b16 %v4452, %v4450
        %v4515 = vpack.c.b16 %v4453, %v4451
        %v4516 = vpack.c.b16 %v4456, %v4454
        %v4517 = vpack.c.b16 %v4457, %v4455
        %v4518 = vpack.c.b16 %v4460, %v4458
        %v4519 = vpack.c.b16 %v4461, %v4459
        %v4520 = vpack.c.b16 %v4464, %v4462
        %v4521 = vpack.c.b16 %v4465, %v4463
        %v4522 = vpack.c.b16 %v4468, %v4466
        %v4523 = vpack.c.b16 %v4469, %v4467
        %v4524 = vpack.c.b16 %v4472, %v4470
        %v4525 = vpack.c.b16 %v4473, %v4471
        %v4526 = vpack.c.b16 %v4476, %v4474
        %v4527 = vpack.c.b16 %v4477, %v4475
        %v4528 = vpack.c.b16 %v4480, %v4478
        %v4529 = vpack.c.b16 %v4481, %v4479
        %v4530 = vpack.c.b16 %v4484, %v4482
        %v4531 = vpack.c.b16 %v4485, %v4483
        %v4532 = vpack.c.b16 %v4488, %v4486
        %v4533 = vpack.c.b16 %v4489, %v4487
        %v4534 = vpack.c.b16 %v4492, %v4490
        %v4535 = vpack.c.b16 %v4493, %v4491
        %v4536 = vpack.c.b16 %v4496, %v4494
        %v4537 = vpack.c.b16 %v4497, %v4495
        %v4538 = vpack.c.b16 %v4500, %v4498
        %v4539 = vpack.c.b16 %v4501, %v4499
        %v4540 = vpack.c.b16 %v4504, %v4502
        %v4541 = vpack.c.b16 %v4505, %v4503
        %v4542 = vpack.c.b16 %v4508, %v4506
        %v4543 = vpack.c.b16 %v4509, %v4507
        %v4544 = vpack.c.b16 %v4512, %v4510
        %v4545 = vpack.c.b16 %v4513, %v4511
        %4578 = vmatprep.subr.bf16.mxu0 %v4529
        %4579 = vmatpush1.bf16.msra.mxu0 %v4528
        %4580 = vmatprep.subr.bf16.mxu0 %v4527
        %4581 = vmatpush1.bf16.msra.mxu0 %v4526
        %4582 = vmatprep.subr.bf16.mxu0 %v4525
        %4583 = vmatpush1.bf16.msra.mxu0 %v4524
        %4584 = vmatprep.subr.bf16.mxu0 %v4523
        %4585 = vmatpush1.bf16.msra.mxu0 %v4522
        %4586 = vmatprep.subr.bf16.mxu0 %v4521
        %4587 = vmatpush1.bf16.msra.mxu0 %v4520
        %4588 = vmatprep.subr.bf16.mxu0 %v4519
        %4589 = vmatpush1.bf16.msra.mxu0 %v4518
        %4590 = vmatprep.subr.bf16.mxu0 %v4517
        %4591 = vmatpush1.bf16.msra.mxu0 %v4516
        %4592 = vmatprep.subr.bf16.mxu0 %v4515
        %4593 = vmatpush1.bf16.msra.mxu0 %v4514
        %4594 = vmatprep.subr.bf16.mxu0 %v4545
        %4595 = vmatpush2.bf16.msra.mxu0 %v4544
        %4596 = vmatprep.subr.bf16.mxu0 %v4543
        %4597 = vmatpush2.bf16.msra.mxu0 %v4542
        %4598 = vmatprep.subr.bf16.mxu0 %v4541
        %4599 = vmatpush2.bf16.msra.mxu0 %v4540
        %4600 = vmatprep.subr.bf16.mxu0 %v4539
        %4601 = vmatpush2.bf16.msra.mxu0 %v4538
        %4602 = vmatprep.subr.bf16.mxu0 %v4537
        %4603 = vmatpush2.bf16.msra.mxu0 %v4536
        %4604 = vmatprep.subr.bf16.mxu0 %v4535
        %4605 = vmatpush2.bf16.msra.mxu0 %v4534
        %4606 = vmatprep.subr.bf16.mxu0 %v4533
        %4607 = vmatpush2.bf16.msra.mxu0 %v4532
        %4608 = vmatprep.subr.bf16.mxu0 %v4531
        %4609 = vmatpush2.bf16.msra.mxu0 %v4530
        %4610 = vmatprep.mubr.bf16.mxu0 %v4407
        %4611 = vmatmul.mubr.bf16.gmra.mxu0 %v4395
        %v4612 = vpop.f32.mrf.mxu0
        %v4613 = vadd.f32 0.0, %v4612
        %v4614 = vpop.f32.mrf.mxu0
        %v4615 = vadd.f32 0.0, %v4614
        %v4616 = vpop.f32.mrf.mxu0
        %v4617 = vadd.f32 0.0, %v4616
        %v4618 = vpop.f32.mrf.mxu0
        %v4619 = vadd.f32 0.0, %v4618
        %4620 = vmatprep.mubr.bf16.mxu0 %v4413
        %4621 = vmatmul.mubr.bf16.gmra.mxu0 %v4410
        %v4622 = vpop.f32.mrf.mxu0
        %v4623 = vadd.f32 0.0, %v4622
        %v4624 = vpop.f32.mrf.mxu0
        %v4625 = vadd.f32 0.0, %v4624
        %v4626 = vpop.f32.mrf.mxu0
        %v4627 = vadd.f32 0.0, %v4626
        %v4628 = vpop.f32.mrf.mxu0
        %v4629 = vadd.f32 0.0, %v4628
        %4630 = vdwg.mxu0
        %v4631 = vadd.f32 %v4323, %v4613
        %v4632 = vadd.f32 %v4324, %v4615
        %v4633 = vadd.f32 %v4325, %v4617
        %v4634 = vadd.f32 %v4326, %v4619
        %v4635 = vadd.f32 %v4327, %v4623
        %v4636 = vadd.f32 %v4328, %v4625
        %v4637 = vadd.f32 %v4329, %v4627
        %v4638 = vadd.f32 %v4330, %v4629
        %v4639 = vld [vmem:[#allocation3 + $0x8] sm:$0xee]
        %v4640 = vld [vmem:[#allocation3 + $0x20] sm:$0x77]
        %s4641 = scalar_lea.vmem [#allocation11], 1024
        %v4642 = vld [vmem:[%s4641] sm:$0xff]
        %v4643 = vld [vmem:[%s4641 + $0x8] sm:$0xff]
        %v4644 = vld [vmem:[%s4641 + $0x10] sm:$0xff]
        %v4645 = vld [vmem:[%s4641 + $0x18] sm:$0xff]
        %v4646 = vld [vmem:[%s4641 + $0x20] sm:$0xff]
        %v4647 = vld [vmem:[%s4641 + $0x28] sm:$0xff]
        %v4648 = vld [vmem:[%s4641 + $0x30] sm:$0xff]
        %v4649 = vld [vmem:[%s4641 + $0x38] sm:$0xff]
        %v4650 = vld [vmem:[%s4641 + $0x40] sm:$0xff]
        %v4651 = vld [vmem:[%s4641 + $0x48] sm:$0xff]
        %v4652 = vld [vmem:[%s4641 + $0x50] sm:$0xff]
        %v4653 = vld [vmem:[%s4641 + $0x58] sm:$0xff]
        %v4654 = vld [vmem:[%s4641 + $0x60] sm:$0xff]
        %v4655 = vld [vmem:[%s4641 + $0x68] sm:$0xff]
        %v4656 = vld [vmem:[%s4641 + $0x70] sm:$0xff]
        %v4657 = vld [vmem:[%s4641 + $0x78] sm:$0xff]
        %v4658 = vld [vmem:[%s4641 + $0x80] sm:$0xff]
        %v4659 = vld [vmem:[%s4641 + $0x88] sm:$0xff]
        %v4660 = vld [vmem:[%s4641 + $0x90] sm:$0xff]
        %v4661 = vld [vmem:[%s4641 + $0x98] sm:$0xff]
        %v4662 = vld [vmem:[%s4641 + $0xa0] sm:$0xff]
        %v4663 = vld [vmem:[%s4641 + $0xa8] sm:$0xff]
        %v4664 = vld [vmem:[%s4641 + $0xb0] sm:$0xff]
        %v4665 = vld [vmem:[%s4641 + $0xb8] sm:$0xff]
        %v4666 = vld [vmem:[%s4641 + $0xc0] sm:$0xff]
        %v4667 = vld [vmem:[%s4641 + $0xc8] sm:$0xff]
        %v4668 = vld [vmem:[%s4641 + $0xd0] sm:$0xff]
        %v4669 = vld [vmem:[%s4641 + $0xd8] sm:$0xff]
        %v4670 = vld [vmem:[%s4641 + $0xe0] sm:$0xff]
        %v4671 = vld [vmem:[%s4641 + $0xe8] sm:$0xff]
        %v4672 = vld [vmem:[%s4641 + $0xf0] sm:$0xff]
        %v4673 = vld [vmem:[%s4641 + $0xf8] sm:$0xff]
        %v4676 = vunpack.c.l.b16 %v4639
        %v4677 = vunpack.c.h.b16 %v4639
        %v4678 = vunpack.c.l.b16 %v4640
        %v4679 = vunpack.c.h.b16 %v4640
        %v4680 = vpack.c.b16 %v4374, %v4676
        %v4681 = vpack.c.b16 %v4375, %v4677
        %v4682 = vpack.c.b16 %v4678, %v4376
        %v4683 = vpack.c.b16 %v4679, %v4377
        %v4684 = vrot.slane %v4680, 1
        %v4685 = vrot.slane %v4682, 1
        %v4686 = vsel %vm696, %v4684, %v4685
        %v4687 = vrot.slane %v4681, 1
        %v4688 = vrot.slane %v4683, 1
        %v4689 = vsel %vm696, %v4687, %v4688
        %v4726 = vunpack.c.l.b16 %v4642
        %v4727 = vunpack.c.h.b16 %v4642
        %v4728 = vunpack.c.l.b16 %v4643
        %v4729 = vunpack.c.h.b16 %v4643
        %v4730 = vunpack.c.l.b16 %v4644
        %v4731 = vunpack.c.h.b16 %v4644
        %v4732 = vunpack.c.l.b16 %v4645
        %v4733 = vunpack.c.h.b16 %v4645
        %v4734 = vunpack.c.l.b16 %v4646
        %v4735 = vunpack.c.h.b16 %v4646
        %v4736 = vunpack.c.l.b16 %v4647
        %v4737 = vunpack.c.h.b16 %v4647
        %v4738 = vunpack.c.l.b16 %v4648
        %v4739 = vunpack.c.h.b16 %v4648
        %v4740 = vunpack.c.l.b16 %v4649
        %v4741 = vunpack.c.h.b16 %v4649
        %v4742 = vunpack.c.l.b16 %v4650
        %v4743 = vunpack.c.h.b16 %v4650
        %v4744 = vunpack.c.l.b16 %v4651
        %v4745 = vunpack.c.h.b16 %v4651
        %v4746 = vunpack.c.l.b16 %v4652
        %v4747 = vunpack.c.h.b16 %v4652
        %v4748 = vunpack.c.l.b16 %v4653
        %v4749 = vunpack.c.h.b16 %v4653
        %v4750 = vunpack.c.l.b16 %v4654
        %v4751 = vunpack.c.h.b16 %v4654
        %v4752 = vunpack.c.l.b16 %v4655
        %v4753 = vunpack.c.h.b16 %v4655
        %v4754 = vunpack.c.l.b16 %v4656
        %v4755 = vunpack.c.h.b16 %v4656
        %v4756 = vunpack.c.l.b16 %v4657
        %v4757 = vunpack.c.h.b16 %v4657
        %v4758 = vunpack.c.l.b16 %v4658
        %v4759 = vunpack.c.h.b16 %v4658
        %v4760 = vunpack.c.l.b16 %v4659
        %v4761 = vunpack.c.h.b16 %v4659
        %v4762 = vunpack.c.l.b16 %v4660
        %v4763 = vunpack.c.h.b16 %v4660
        %v4764 = vunpack.c.l.b16 %v4661
        %v4765 = vunpack.c.h.b16 %v4661
        %v4766 = vunpack.c.l.b16 %v4662
        %v4767 = vunpack.c.h.b16 %v4662
        %v4768 = vunpack.c.l.b16 %v4663
        %v4769 = vunpack.c.h.b16 %v4663
        %v4770 = vunpack.c.l.b16 %v4664
        %v4771 = vunpack.c.h.b16 %v4664
        %v4772 = vunpack.c.l.b16 %v4665
        %v4773 = vunpack.c.h.b16 %v4665
        %v4774 = vunpack.c.l.b16 %v4666
        %v4775 = vunpack.c.h.b16 %v4666
        %v4776 = vunpack.c.l.b16 %v4667
        %v4777 = vunpack.c.h.b16 %v4667
        %v4778 = vunpack.c.l.b16 %v4668
        %v4779 = vunpack.c.h.b16 %v4668
        %v4780 = vunpack.c.l.b16 %v4669
        %v4781 = vunpack.c.h.b16 %v4669
        %v4782 = vunpack.c.l.b16 %v4670
        %v4783 = vunpack.c.h.b16 %v4670
        %v4784 = vunpack.c.l.b16 %v4671
        %v4785 = vunpack.c.h.b16 %v4671
        %v4786 = vunpack.c.l.b16 %v4672
        %v4787 = vunpack.c.h.b16 %v4672
        %v4788 = vunpack.c.l.b16 %v4673
        %v4789 = vunpack.c.h.b16 %v4673
        %v4790 = vpack.c.b16 %v4728, %v4726
        %v4791 = vpack.c.b16 %v4729, %v4727
        %v4792 = vpack.c.b16 %v4732, %v4730
        %v4793 = vpack.c.b16 %v4733, %v4731
        %v4794 = vpack.c.b16 %v4736, %v4734
        %v4795 = vpack.c.b16 %v4737, %v4735
        %v4796 = vpack.c.b16 %v4740, %v4738
        %v4797 = vpack.c.b16 %v4741, %v4739
        %v4798 = vpack.c.b16 %v4744, %v4742
        %v4799 = vpack.c.b16 %v4745, %v4743
        %v4800 = vpack.c.b16 %v4748, %v4746
        %v4801 = vpack.c.b16 %v4749, %v4747
        %v4802 = vpack.c.b16 %v4752, %v4750
        %v4803 = vpack.c.b16 %v4753, %v4751
        %v4804 = vpack.c.b16 %v4756, %v4754
        %v4805 = vpack.c.b16 %v4757, %v4755
        %v4806 = vpack.c.b16 %v4760, %v4758
        %v4807 = vpack.c.b16 %v4761, %v4759
        %v4808 = vpack.c.b16 %v4764, %v4762
        %v4809 = vpack.c.b16 %v4765, %v4763
        %v4810 = vpack.c.b16 %v4768, %v4766
        %v4811 = vpack.c.b16 %v4769, %v4767
        %v4812 = vpack.c.b16 %v4772, %v4770
        %v4813 = vpack.c.b16 %v4773, %v4771
        %v4814 = vpack.c.b16 %v4776, %v4774
        %v4815 = vpack.c.b16 %v4777, %v4775
        %v4816 = vpack.c.b16 %v4780, %v4778
        %v4817 = vpack.c.b16 %v4781, %v4779
        %v4818 = vpack.c.b16 %v4784, %v4782
        %v4819 = vpack.c.b16 %v4785, %v4783
        %v4820 = vpack.c.b16 %v4788, %v4786
        %v4821 = vpack.c.b16 %v4789, %v4787
        %4854 = vmatprep.subr.bf16.mxu0 %v4805
        %4855 = vmatpush1.bf16.msra.mxu0 %v4804
        %4856 = vmatprep.subr.bf16.mxu0 %v4803
        %4857 = vmatpush1.bf16.msra.mxu0 %v4802
        %4858 = vmatprep.subr.bf16.mxu0 %v4801
        %4859 = vmatpush1.bf16.msra.mxu0 %v4800
        %4860 = vmatprep.subr.bf16.mxu0 %v4799
        %4861 = vmatpush1.bf16.msra.mxu0 %v4798
        %4862 = vmatprep.subr.bf16.mxu0 %v4797
        %4863 = vmatpush1.bf16.msra.mxu0 %v4796
        %4864 = vmatprep.subr.bf16.mxu0 %v4795
        %4865 = vmatpush1.bf16.msra.mxu0 %v4794
        %4866 = vmatprep.subr.bf16.mxu0 %v4793
        %4867 = vmatpush1.bf16.msra.mxu0 %v4792
        %4868 = vmatprep.subr.bf16.mxu0 %v4791
        %4869 = vmatpush1.bf16.msra.mxu0 %v4790
        %4870 = vmatprep.subr.bf16.mxu0 %v4821
        %4871 = vmatpush2.bf16.msra.mxu0 %v4820
        %4872 = vmatprep.subr.bf16.mxu0 %v4819
        %4873 = vmatpush2.bf16.msra.mxu0 %v4818
        %4874 = vmatprep.subr.bf16.mxu0 %v4817
        %4875 = vmatpush2.bf16.msra.mxu0 %v4816
        %4876 = vmatprep.subr.bf16.mxu0 %v4815
        %4877 = vmatpush2.bf16.msra.mxu0 %v4814
        %4878 = vmatprep.subr.bf16.mxu0 %v4813
        %4879 = vmatpush2.bf16.msra.mxu0 %v4812
        %4880 = vmatprep.subr.bf16.mxu0 %v4811
        %4881 = vmatpush2.bf16.msra.mxu0 %v4810
        %4882 = vmatprep.subr.bf16.mxu0 %v4809
        %4883 = vmatpush2.bf16.msra.mxu0 %v4808
        %4884 = vmatprep.subr.bf16.mxu0 %v4807
        %4885 = vmatpush2.bf16.msra.mxu0 %v4806
        %4886 = vmatprep.mubr.bf16.mxu0 %v4689
        %4887 = vmatmul.mubr.bf16.gmra.mxu0 %v4686
        %v4888 = vpop.f32.mrf.mxu0
        %v4889 = vadd.f32 0.0, %v4888
        %v4890 = vpop.f32.mrf.mxu0
        %v4891 = vadd.f32 0.0, %v4890
        %v4892 = vpop.f32.mrf.mxu0
        %v4893 = vadd.f32 0.0, %v4892
        %v4894 = vpop.f32.mrf.mxu0
        %v4895 = vadd.f32 0.0, %v4894
        %4896 = vmatprep.mubr.bf16.mxu0 %v4688
        %4897 = vmatmul.mubr.bf16.gmra.mxu0 %v4685
        %v4898 = vpop.f32.mrf.mxu0
        %v4899 = vadd.f32 0.0, %v4898
        %v4900 = vpop.f32.mrf.mxu0
        %v4901 = vadd.f32 0.0, %v4900
        %v4902 = vpop.f32.mrf.mxu0
        %v4903 = vadd.f32 0.0, %v4902
        %v4904 = vpop.f32.mrf.mxu0
        %v4905 = vadd.f32 0.0, %v4904
        %4906 = vdwg.mxu0
        %v4907 = vadd.f32 %v4631, %v4889
        %v4908 = vadd.f32 %v4632, %v4891
        %v4909 = vadd.f32 %v4633, %v4893
        %v4910 = vadd.f32 %v4634, %v4895
        %v4911 = vadd.f32 %v4635, %v4899
        %v4912 = vadd.f32 %v4636, %v4901
        %v4913 = vadd.f32 %v4637, %v4903
        %v4914 = vadd.f32 %v4638, %v4905
        %s4915 = scalar_lea.vmem [#allocation11], 1280
        %v4916 = vld [vmem:[%s4915] sm:$0xff]
        %v4917 = vld [vmem:[%s4915 + $0x8] sm:$0xff]
        %v4918 = vld [vmem:[%s4915 + $0x10] sm:$0xff]
        %v4919 = vld [vmem:[%s4915 + $0x18] sm:$0xff]
        %v4920 = vld [vmem:[%s4915 + $0x20] sm:$0xff]
        %v4921 = vld [vmem:[%s4915 + $0x28] sm:$0xff]
        %v4922 = vld [vmem:[%s4915 + $0x30] sm:$0xff]
        %v4923 = vld [vmem:[%s4915 + $0x38] sm:$0xff]
        %v4924 = vld [vmem:[%s4915 + $0x40] sm:$0xff]
        %v4925 = vld [vmem:[%s4915 + $0x48] sm:$0xff]
        %v4926 = vld [vmem:[%s4915 + $0x50] sm:$0xff]
        %v4927 = vld [vmem:[%s4915 + $0x58] sm:$0xff]
        %v4928 = vld [vmem:[%s4915 + $0x60] sm:$0xff]
        %v4929 = vld [vmem:[%s4915 + $0x68] sm:$0xff]
        %v4930 = vld [vmem:[%s4915 + $0x70] sm:$0xff]
        %v4931 = vld [vmem:[%s4915 + $0x78] sm:$0xff]
        %v4932 = vld [vmem:[%s4915 + $0x80] sm:$0xff]
        %v4933 = vld [vmem:[%s4915 + $0x88] sm:$0xff]
        %v4934 = vld [vmem:[%s4915 + $0x90] sm:$0xff]
        %v4935 = vld [vmem:[%s4915 + $0x98] sm:$0xff]
        %v4936 = vld [vmem:[%s4915 + $0xa0] sm:$0xff]
        %v4937 = vld [vmem:[%s4915 + $0xa8] sm:$0xff]
        %v4938 = vld [vmem:[%s4915 + $0xb0] sm:$0xff]
        %v4939 = vld [vmem:[%s4915 + $0xb8] sm:$0xff]
        %v4940 = vld [vmem:[%s4915 + $0xc0] sm:$0xff]
        %v4941 = vld [vmem:[%s4915 + $0xc8] sm:$0xff]
        %v4942 = vld [vmem:[%s4915 + $0xd0] sm:$0xff]
        %v4943 = vld [vmem:[%s4915 + $0xd8] sm:$0xff]
        %v4944 = vld [vmem:[%s4915 + $0xe0] sm:$0xff]
        %v4945 = vld [vmem:[%s4915 + $0xe8] sm:$0xff]
        %v4946 = vld [vmem:[%s4915 + $0xf0] sm:$0xff]
        %v4947 = vld [vmem:[%s4915 + $0xf8] sm:$0xff]
        %v4949 = vshrl.u32 %v4680, 16
        %v4951 = vrot.slane %v4949, 1
        %v4952 = vshll.u32 %v4680, 16
        %v4954 = vrot.slane %v4952, 2
        %v4955 = vor.u32 %v4951, %v4954
        %v4957 = vshrl.u32 %v4682, 16
        %v4959 = vrot.slane %v4957, 1
        %v4960 = vshll.u32 %v4682, 16
        %v4962 = vrot.slane %v4960, 2
        %v4963 = vor.u32 %v4959, %v4962
        %v4964 = vsel %vm1055, %v4955, %v4963
        %v4966 = vshrl.u32 %v4681, 16
        %v4968 = vrot.slane %v4966, 1
        %v4969 = vshll.u32 %v4681, 16
        %v4971 = vrot.slane %v4969, 2
        %v4972 = vor.u32 %v4968, %v4971
        %v4974 = vshrl.u32 %v4683, 16
        %v4976 = vrot.slane %v4974, 1
        %v4977 = vshll.u32 %v4683, 16
        %v4979 = vrot.slane %v4977, 2
        %v4980 = vor.u32 %v4976, %v4979
        %v4981 = vsel %vm1055, %v4972, %v4980
        %v5018 = vunpack.c.l.b16 %v4916
        %v5019 = vunpack.c.h.b16 %v4916
        %v5020 = vunpack.c.l.b16 %v4917
        %v5021 = vunpack.c.h.b16 %v4917
        %v5022 = vunpack.c.l.b16 %v4918
        %v5023 = vunpack.c.h.b16 %v4918
        %v5024 = vunpack.c.l.b16 %v4919
        %v5025 = vunpack.c.h.b16 %v4919
        %v5026 = vunpack.c.l.b16 %v4920
        %v5027 = vunpack.c.h.b16 %v4920
        %v5028 = vunpack.c.l.b16 %v4921
        %v5029 = vunpack.c.h.b16 %v4921
        %v5030 = vunpack.c.l.b16 %v4922
        %v5031 = vunpack.c.h.b16 %v4922
        %v5032 = vunpack.c.l.b16 %v4923
        %v5033 = vunpack.c.h.b16 %v4923
        %v5034 = vunpack.c.l.b16 %v4924
        %v5035 = vunpack.c.h.b16 %v4924
        %v5036 = vunpack.c.l.b16 %v4925
        %v5037 = vunpack.c.h.b16 %v4925
        %v5038 = vunpack.c.l.b16 %v4926
        %v5039 = vunpack.c.h.b16 %v4926
        %v5040 = vunpack.c.l.b16 %v4927
        %v5041 = vunpack.c.h.b16 %v4927
        %v5042 = vunpack.c.l.b16 %v4928
        %v5043 = vunpack.c.h.b16 %v4928
        %v5044 = vunpack.c.l.b16 %v4929
        %v5045 = vunpack.c.h.b16 %v4929
        %v5046 = vunpack.c.l.b16 %v4930
        %v5047 = vunpack.c.h.b16 %v4930
        %v5048 = vunpack.c.l.b16 %v4931
        %v5049 = vunpack.c.h.b16 %v4931
        %v5050 = vunpack.c.l.b16 %v4932
        %v5051 = vunpack.c.h.b16 %v4932
        %v5052 = vunpack.c.l.b16 %v4933
        %v5053 = vunpack.c.h.b16 %v4933
        %v5054 = vunpack.c.l.b16 %v4934
        %v5055 = vunpack.c.h.b16 %v4934
        %v5056 = vunpack.c.l.b16 %v4935
        %v5057 = vunpack.c.h.b16 %v4935
        %v5058 = vunpack.c.l.b16 %v4936
        %v5059 = vunpack.c.h.b16 %v4936
        %v5060 = vunpack.c.l.b16 %v4937
        %v5061 = vunpack.c.h.b16 %v4937
        %v5062 = vunpack.c.l.b16 %v4938
        %v5063 = vunpack.c.h.b16 %v4938
        %v5064 = vunpack.c.l.b16 %v4939
        %v5065 = vunpack.c.h.b16 %v4939
        %v5066 = vunpack.c.l.b16 %v4940
        %v5067 = vunpack.c.h.b16 %v4940
        %v5068 = vunpack.c.l.b16 %v4941
        %v5069 = vunpack.c.h.b16 %v4941
        %v5070 = vunpack.c.l.b16 %v4942
        %v5071 = vunpack.c.h.b16 %v4942
        %v5072 = vunpack.c.l.b16 %v4943
        %v5073 = vunpack.c.h.b16 %v4943
        %v5074 = vunpack.c.l.b16 %v4944
        %v5075 = vunpack.c.h.b16 %v4944
        %v5076 = vunpack.c.l.b16 %v4945
        %v5077 = vunpack.c.h.b16 %v4945
        %v5078 = vunpack.c.l.b16 %v4946
        %v5079 = vunpack.c.h.b16 %v4946
        %v5080 = vunpack.c.l.b16 %v4947
        %v5081 = vunpack.c.h.b16 %v4947
        %v5082 = vpack.c.b16 %v5020, %v5018
        %v5083 = vpack.c.b16 %v5021, %v5019
        %v5084 = vpack.c.b16 %v5024, %v5022
        %v5085 = vpack.c.b16 %v5025, %v5023
        %v5086 = vpack.c.b16 %v5028, %v5026
        %v5087 = vpack.c.b16 %v5029, %v5027
        %v5088 = vpack.c.b16 %v5032, %v5030
        %v5089 = vpack.c.b16 %v5033, %v5031
        %v5090 = vpack.c.b16 %v5036, %v5034
        %v5091 = vpack.c.b16 %v5037, %v5035
        %v5092 = vpack.c.b16 %v5040, %v5038
        %v5093 = vpack.c.b16 %v5041, %v5039
        %v5094 = vpack.c.b16 %v5044, %v5042
        %v5095 = vpack.c.b16 %v5045, %v5043
        %v5096 = vpack.c.b16 %v5048, %v5046
        %v5097 = vpack.c.b16 %v5049, %v5047
        %v5098 = vpack.c.b16 %v5052, %v5050
        %v5099 = vpack.c.b16 %v5053, %v5051
        %v5100 = vpack.c.b16 %v5056, %v5054
        %v5101 = vpack.c.b16 %v5057, %v5055
        %v5102 = vpack.c.b16 %v5060, %v5058
        %v5103 = vpack.c.b16 %v5061, %v5059
        %v5104 = vpack.c.b16 %v5064, %v5062
        %v5105 = vpack.c.b16 %v5065, %v5063
        %v5106 = vpack.c.b16 %v5068, %v5066
        %v5107 = vpack.c.b16 %v5069, %v5067
        %v5108 = vpack.c.b16 %v5072, %v5070
        %v5109 = vpack.c.b16 %v5073, %v5071
        %v5110 = vpack.c.b16 %v5076, %v5074
        %v5111 = vpack.c.b16 %v5077, %v5075
        %v5112 = vpack.c.b16 %v5080, %v5078
        %v5113 = vpack.c.b16 %v5081, %v5079
        %5146 = vmatprep.subr.bf16.mxu0 %v5097
        %5147 = vmatpush1.bf16.msra.mxu0 %v5096
        %5148 = vmatprep.subr.bf16.mxu0 %v5095
        %5149 = vmatpush1.bf16.msra.mxu0 %v5094
        %5150 = vmatprep.subr.bf16.mxu0 %v5093
        %5151 = vmatpush1.bf16.msra.mxu0 %v5092
        %5152 = vmatprep.subr.bf16.mxu0 %v5091
        %5153 = vmatpush1.bf16.msra.mxu0 %v5090
        %5154 = vmatprep.subr.bf16.mxu0 %v5089
        %5155 = vmatpush1.bf16.msra.mxu0 %v5088
        %5156 = vmatprep.subr.bf16.mxu0 %v5087
        %5157 = vmatpush1.bf16.msra.mxu0 %v5086
        %5158 = vmatprep.subr.bf16.mxu0 %v5085
        %5159 = vmatpush1.bf16.msra.mxu0 %v5084
        %5160 = vmatprep.subr.bf16.mxu0 %v5083
        %5161 = vmatpush1.bf16.msra.mxu0 %v5082
        %5162 = vmatprep.subr.bf16.mxu0 %v5113
        %5163 = vmatpush2.bf16.msra.mxu0 %v5112
        %5164 = vmatprep.subr.bf16.mxu0 %v5111
        %5165 = vmatpush2.bf16.msra.mxu0 %v5110
        %5166 = vmatprep.subr.bf16.mxu0 %v5109
        %5167 = vmatpush2.bf16.msra.mxu0 %v5108
        %5168 = vmatprep.subr.bf16.mxu0 %v5107
        %5169 = vmatpush2.bf16.msra.mxu0 %v5106
        %5170 = vmatprep.subr.bf16.mxu0 %v5105
        %5171 = vmatpush2.bf16.msra.mxu0 %v5104
        %5172 = vmatprep.subr.bf16.mxu0 %v5103
        %5173 = vmatpush2.bf16.msra.mxu0 %v5102
        %5174 = vmatprep.subr.bf16.mxu0 %v5101
        %5175 = vmatpush2.bf16.msra.mxu0 %v5100
        %5176 = vmatprep.subr.bf16.mxu0 %v5099
        %5177 = vmatpush2.bf16.msra.mxu0 %v5098
        %5178 = vmatprep.mubr.bf16.mxu0 %v4981
        %5179 = vmatmul.mubr.bf16.gmra.mxu0 %v4964
        %v5180 = vpop.f32.mrf.mxu0
        %v5181 = vadd.f32 0.0, %v5180
        %v5182 = vpop.f32.mrf.mxu0
        %v5183 = vadd.f32 0.0, %v5182
        %v5184 = vpop.f32.mrf.mxu0
        %v5185 = vadd.f32 0.0, %v5184
        %v5186 = vpop.f32.mrf.mxu0
        %v5187 = vadd.f32 0.0, %v5186
        %5188 = vmatprep.mubr.bf16.mxu0 %v4980
        %5189 = vmatmul.mubr.bf16.gmra.mxu0 %v4963
        %v5190 = vpop.f32.mrf.mxu0
        %v5191 = vadd.f32 0.0, %v5190
        %v5192 = vpop.f32.mrf.mxu0
        %v5193 = vadd.f32 0.0, %v5192
        %v5194 = vpop.f32.mrf.mxu0
        %v5195 = vadd.f32 0.0, %v5194
        %v5196 = vpop.f32.mrf.mxu0
        %v5197 = vadd.f32 0.0, %v5196
        %5198 = vdwg.mxu0
        %v5199 = vadd.f32 %v4907, %v5181
        %v5200 = vadd.f32 %v4908, %v5183
        %v5201 = vadd.f32 %v4909, %v5185
        %v5202 = vadd.f32 %v4910, %v5187
        %v5203 = vadd.f32 %v4911, %v5191
        %v5204 = vadd.f32 %v4912, %v5193
        %v5205 = vadd.f32 %v4913, %v5195
        %v5206 = vadd.f32 %v4914, %v5197
        %v5207 = vld [vmem:[#allocation3 + $0x10] sm:$0xee]
        %v5208 = vld [vmem:[#allocation3 + $0x18] sm:$0xff]
        %v5209 = vld [vmem:[#allocation3 + $0x20] sm:$0xff]
        %v5210 = vld [vmem:[#allocation3 + $0x28] sm:$0x77]
        %s5211 = scalar_lea.vmem [#allocation11], 1536
        %v5212 = vld [vmem:[%s5211] sm:$0xff]
        %v5213 = vld [vmem:[%s5211 + $0x8] sm:$0xff]
        %v5214 = vld [vmem:[%s5211 + $0x10] sm:$0xff]
        %v5215 = vld [vmem:[%s5211 + $0x18] sm:$0xff]
        %v5216 = vld [vmem:[%s5211 + $0x20] sm:$0xff]
        %v5217 = vld [vmem:[%s5211 + $0x28] sm:$0xff]
        %v5218 = vld [vmem:[%s5211 + $0x30] sm:$0xff]
        %v5219 = vld [vmem:[%s5211 + $0x38] sm:$0xff]
        %v5220 = vld [vmem:[%s5211 + $0x40] sm:$0xff]
        %v5221 = vld [vmem:[%s5211 + $0x48] sm:$0xff]
        %v5222 = vld [vmem:[%s5211 + $0x50] sm:$0xff]
        %v5223 = vld [vmem:[%s5211 + $0x58] sm:$0xff]
        %v5224 = vld [vmem:[%s5211 + $0x60] sm:$0xff]
        %v5225 = vld [vmem:[%s5211 + $0x68] sm:$0xff]
        %v5226 = vld [vmem:[%s5211 + $0x70] sm:$0xff]
        %v5227 = vld [vmem:[%s5211 + $0x78] sm:$0xff]
        %v5228 = vld [vmem:[%s5211 + $0x80] sm:$0xff]
        %v5229 = vld [vmem:[%s5211 + $0x88] sm:$0xff]
        %v5230 = vld [vmem:[%s5211 + $0x90] sm:$0xff]
        %v5231 = vld [vmem:[%s5211 + $0x98] sm:$0xff]
        %v5232 = vld [vmem:[%s5211 + $0xa0] sm:$0xff]
        %v5233 = vld [vmem:[%s5211 + $0xa8] sm:$0xff]
        %v5234 = vld [vmem:[%s5211 + $0xb0] sm:$0xff]
        %v5235 = vld [vmem:[%s5211 + $0xb8] sm:$0xff]
        %v5236 = vld [vmem:[%s5211 + $0xc0] sm:$0xff]
        %v5237 = vld [vmem:[%s5211 + $0xc8] sm:$0xff]
        %v5238 = vld [vmem:[%s5211 + $0xd0] sm:$0xff]
        %v5239 = vld [vmem:[%s5211 + $0xd8] sm:$0xff]
        %v5240 = vld [vmem:[%s5211 + $0xe0] sm:$0xff]
        %v5241 = vld [vmem:[%s5211 + $0xe8] sm:$0xff]
        %v5242 = vld [vmem:[%s5211 + $0xf0] sm:$0xff]
        %v5243 = vld [vmem:[%s5211 + $0xf8] sm:$0xff]
        %v5248 = vunpack.c.l.b16 %v5207
        %v5249 = vunpack.c.h.b16 %v5207
        %v5250 = vunpack.c.l.b16 %v5208
        %v5251 = vunpack.c.h.b16 %v5208
        %v5252 = vunpack.c.l.b16 %v5209
        %v5253 = vunpack.c.h.b16 %v5209
        %v5254 = vunpack.c.l.b16 %v5210
        %v5255 = vunpack.c.h.b16 %v5210
        %v5256 = vpack.c.b16 %v5250, %v5248
        %v5257 = vpack.c.b16 %v5251, %v5249
        %v5258 = vpack.c.b16 %v5254, %v5252
        %v5259 = vpack.c.b16 %v5255, %v5253
        %v5260 = vrot.slane %v5256, 1
        %v5261 = vrot.slane %v5258, 1
        %v5262 = vsel %vm696, %v5260, %v5261
        %v5263 = vrot.slane %v5257, 1
        %v5264 = vrot.slane %v5259, 1
        %v5265 = vsel %vm696, %v5263, %v5264
        %v5302 = vunpack.c.l.b16 %v5212
        %v5303 = vunpack.c.h.b16 %v5212
        %v5304 = vunpack.c.l.b16 %v5213
        %v5305 = vunpack.c.h.b16 %v5213
        %v5306 = vunpack.c.l.b16 %v5214
        %v5307 = vunpack.c.h.b16 %v5214
        %v5308 = vunpack.c.l.b16 %v5215
        %v5309 = vunpack.c.h.b16 %v5215
        %v5310 = vunpack.c.l.b16 %v5216
        %v5311 = vunpack.c.h.b16 %v5216
        %v5312 = vunpack.c.l.b16 %v5217
        %v5313 = vunpack.c.h.b16 %v5217
        %v5314 = vunpack.c.l.b16 %v5218
        %v5315 = vunpack.c.h.b16 %v5218
        %v5316 = vunpack.c.l.b16 %v5219
        %v5317 = vunpack.c.h.b16 %v5219
        %v5318 = vunpack.c.l.b16 %v5220
        %v5319 = vunpack.c.h.b16 %v5220
        %v5320 = vunpack.c.l.b16 %v5221
        %v5321 = vunpack.c.h.b16 %v5221
        %v5322 = vunpack.c.l.b16 %v5222
        %v5323 = vunpack.c.h.b16 %v5222
        %v5324 = vunpack.c.l.b16 %v5223
        %v5325 = vunpack.c.h.b16 %v5223
        %v5326 = vunpack.c.l.b16 %v5224
        %v5327 = vunpack.c.h.b16 %v5224
        %v5328 = vunpack.c.l.b16 %v5225
        %v5329 = vunpack.c.h.b16 %v5225
        %v5330 = vunpack.c.l.b16 %v5226
        %v5331 = vunpack.c.h.b16 %v5226
        %v5332 = vunpack.c.l.b16 %v5227
        %v5333 = vunpack.c.h.b16 %v5227
        %v5334 = vunpack.c.l.b16 %v5228
        %v5335 = vunpack.c.h.b16 %v5228
        %v5336 = vunpack.c.l.b16 %v5229
        %v5337 = vunpack.c.h.b16 %v5229
        %v5338 = vunpack.c.l.b16 %v5230
        %v5339 = vunpack.c.h.b16 %v5230
        %v5340 = vunpack.c.l.b16 %v5231
        %v5341 = vunpack.c.h.b16 %v5231
        %v5342 = vunpack.c.l.b16 %v5232
        %v5343 = vunpack.c.h.b16 %v5232
        %v5344 = vunpack.c.l.b16 %v5233
        %v5345 = vunpack.c.h.b16 %v5233
        %v5346 = vunpack.c.l.b16 %v5234
        %v5347 = vunpack.c.h.b16 %v5234
        %v5348 = vunpack.c.l.b16 %v5235
        %v5349 = vunpack.c.h.b16 %v5235
        %v5350 = vunpack.c.l.b16 %v5236
        %v5351 = vunpack.c.h.b16 %v5236
        %v5352 = vunpack.c.l.b16 %v5237
        %v5353 = vunpack.c.h.b16 %v5237
        %v5354 = vunpack.c.l.b16 %v5238
        %v5355 = vunpack.c.h.b16 %v5238
        %v5356 = vunpack.c.l.b16 %v5239
        %v5357 = vunpack.c.h.b16 %v5239
        %v5358 = vunpack.c.l.b16 %v5240
        %v5359 = vunpack.c.h.b16 %v5240
        %v5360 = vunpack.c.l.b16 %v5241
        %v5361 = vunpack.c.h.b16 %v5241
        %v5362 = vunpack.c.l.b16 %v5242
        %v5363 = vunpack.c.h.b16 %v5242
        %v5364 = vunpack.c.l.b16 %v5243
        %v5365 = vunpack.c.h.b16 %v5243
        %v5366 = vpack.c.b16 %v5304, %v5302
        %v5367 = vpack.c.b16 %v5305, %v5303
        %v5368 = vpack.c.b16 %v5308, %v5306
        %v5369 = vpack.c.b16 %v5309, %v5307
        %v5370 = vpack.c.b16 %v5312, %v5310
        %v5371 = vpack.c.b16 %v5313, %v5311
        %v5372 = vpack.c.b16 %v5316, %v5314
        %v5373 = vpack.c.b16 %v5317, %v5315
        %v5374 = vpack.c.b16 %v5320, %v5318
        %v5375 = vpack.c.b16 %v5321, %v5319
        %v5376 = vpack.c.b16 %v5324, %v5322
        %v5377 = vpack.c.b16 %v5325, %v5323
        %v5378 = vpack.c.b16 %v5328, %v5326
        %v5379 = vpack.c.b16 %v5329, %v5327
        %v5380 = vpack.c.b16 %v5332, %v5330
        %v5381 = vpack.c.b16 %v5333, %v5331
        %v5382 = vpack.c.b16 %v5336, %v5334
        %v5383 = vpack.c.b16 %v5337, %v5335
        %v5384 = vpack.c.b16 %v5340, %v5338
        %v5385 = vpack.c.b16 %v5341, %v5339
        %v5386 = vpack.c.b16 %v5344, %v5342
        %v5387 = vpack.c.b16 %v5345, %v5343
        %v5388 = vpack.c.b16 %v5348, %v5346
        %v5389 = vpack.c.b16 %v5349, %v5347
        %v5390 = vpack.c.b16 %v5352, %v5350
        %v5391 = vpack.c.b16 %v5353, %v5351
        %v5392 = vpack.c.b16 %v5356, %v5354
        %v5393 = vpack.c.b16 %v5357, %v5355
        %v5394 = vpack.c.b16 %v5360, %v5358
        %v5395 = vpack.c.b16 %v5361, %v5359
        %v5396 = vpack.c.b16 %v5364, %v5362
        %v5397 = vpack.c.b16 %v5365, %v5363
        %5430 = vmatprep.subr.bf16.mxu0 %v5381
        %5431 = vmatpush1.bf16.msra.mxu0 %v5380
        %5432 = vmatprep.subr.bf16.mxu0 %v5379
        %5433 = vmatpush1.bf16.msra.mxu0 %v5378
        %5434 = vmatprep.subr.bf16.mxu0 %v5377
        %5435 = vmatpush1.bf16.msra.mxu0 %v5376
        %5436 = vmatprep.subr.bf16.mxu0 %v5375
        %5437 = vmatpush1.bf16.msra.mxu0 %v5374
        %5438 = vmatprep.subr.bf16.mxu0 %v5373
        %5439 = vmatpush1.bf16.msra.mxu0 %v5372
        %5440 = vmatprep.subr.bf16.mxu0 %v5371
        %5441 = vmatpush1.bf16.msra.mxu0 %v5370
        %5442 = vmatprep.subr.bf16.mxu0 %v5369
        %5443 = vmatpush1.bf16.msra.mxu0 %v5368
        %5444 = vmatprep.subr.bf16.mxu0 %v5367
        %5445 = vmatpush1.bf16.msra.mxu0 %v5366
        %5446 = vmatprep.subr.bf16.mxu0 %v5397
        %5447 = vmatpush2.bf16.msra.mxu0 %v5396
        %5448 = vmatprep.subr.bf16.mxu0 %v5395
        %5449 = vmatpush2.bf16.msra.mxu0 %v5394
        %5450 = vmatprep.subr.bf16.mxu0 %v5393
        %5451 = vmatpush2.bf16.msra.mxu0 %v5392
        %5452 = vmatprep.subr.bf16.mxu0 %v5391
        %5453 = vmatpush2.bf16.msra.mxu0 %v5390
        %5454 = vmatprep.subr.bf16.mxu0 %v5389
        %5455 = vmatpush2.bf16.msra.mxu0 %v5388
        %5456 = vmatprep.subr.bf16.mxu0 %v5387
        %5457 = vmatpush2.bf16.msra.mxu0 %v5386
        %5458 = vmatprep.subr.bf16.mxu0 %v5385
        %5459 = vmatpush2.bf16.msra.mxu0 %v5384
        %5460 = vmatprep.subr.bf16.mxu0 %v5383
        %5461 = vmatpush2.bf16.msra.mxu0 %v5382
        %5462 = vmatprep.mubr.bf16.mxu0 %v5265
        %5463 = vmatmul.mubr.bf16.gmra.mxu0 %v5262
        %v5464 = vpop.f32.mrf.mxu0
        %v5465 = vadd.f32 0.0, %v5464
        %v5466 = vpop.f32.mrf.mxu0
        %v5467 = vadd.f32 0.0, %v5466
        %v5468 = vpop.f32.mrf.mxu0
        %v5469 = vadd.f32 0.0, %v5468
        %v5470 = vpop.f32.mrf.mxu0
        %v5471 = vadd.f32 0.0, %v5470
        %5472 = vmatprep.mubr.bf16.mxu0 %v5264
        %5473 = vmatmul.mubr.bf16.gmra.mxu0 %v5261
        %v5474 = vpop.f32.mrf.mxu0
        %v5475 = vadd.f32 0.0, %v5474
        %v5476 = vpop.f32.mrf.mxu0
        %v5477 = vadd.f32 0.0, %v5476
        %v5478 = vpop.f32.mrf.mxu0
        %v5479 = vadd.f32 0.0, %v5478
        %v5480 = vpop.f32.mrf.mxu0
        %v5481 = vadd.f32 0.0, %v5480
        %5482 = vdwg.mxu0
        %v5483 = vadd.f32 %v5199, %v5465
        %v5484 = vadd.f32 %v5200, %v5467
        %v5485 = vadd.f32 %v5201, %v5469
        %v5486 = vadd.f32 %v5202, %v5471
        %v5487 = vadd.f32 %v5203, %v5475
        %v5488 = vadd.f32 %v5204, %v5477
        %v5489 = vadd.f32 %v5205, %v5479
        %v5490 = vadd.f32 %v5206, %v5481
        %s5491 = scalar_lea.vmem [#allocation11], 1792
        %v5492 = vld [vmem:[%s5491] sm:$0xff]
        %v5493 = vld [vmem:[%s5491 + $0x8] sm:$0xff]
        %v5494 = vld [vmem:[%s5491 + $0x10] sm:$0xff]
        %v5495 = vld [vmem:[%s5491 + $0x18] sm:$0xff]
        %v5496 = vld [vmem:[%s5491 + $0x20] sm:$0xff]
        %v5497 = vld [vmem:[%s5491 + $0x28] sm:$0xff]
        %v5498 = vld [vmem:[%s5491 + $0x30] sm:$0xff]
        %v5499 = vld [vmem:[%s5491 + $0x38] sm:$0xff]
        %v5500 = vld [vmem:[%s5491 + $0x40] sm:$0xff]
        %v5501 = vld [vmem:[%s5491 + $0x48] sm:$0xff]
        %v5502 = vld [vmem:[%s5491 + $0x50] sm:$0xff]
        %v5503 = vld [vmem:[%s5491 + $0x58] sm:$0xff]
        %v5504 = vld [vmem:[%s5491 + $0x60] sm:$0xff]
        %v5505 = vld [vmem:[%s5491 + $0x68] sm:$0xff]
        %v5506 = vld [vmem:[%s5491 + $0x70] sm:$0xff]
        %v5507 = vld [vmem:[%s5491 + $0x78] sm:$0xff]
        %v5508 = vld [vmem:[%s5491 + $0x80] sm:$0xff]
        %v5509 = vld [vmem:[%s5491 + $0x88] sm:$0xff]
        %v5510 = vld [vmem:[%s5491 + $0x90] sm:$0xff]
        %v5511 = vld [vmem:[%s5491 + $0x98] sm:$0xff]
        %v5512 = vld [vmem:[%s5491 + $0xa0] sm:$0xff]
        %v5513 = vld [vmem:[%s5491 + $0xa8] sm:$0xff]
        %v5514 = vld [vmem:[%s5491 + $0xb0] sm:$0xff]
        %v5515 = vld [vmem:[%s5491 + $0xb8] sm:$0xff]
        %v5516 = vld [vmem:[%s5491 + $0xc0] sm:$0xff]
        %v5517 = vld [vmem:[%s5491 + $0xc8] sm:$0xff]
        %v5518 = vld [vmem:[%s5491 + $0xd0] sm:$0xff]
        %v5519 = vld [vmem:[%s5491 + $0xd8] sm:$0xff]
        %v5520 = vld [vmem:[%s5491 + $0xe0] sm:$0xff]
        %v5521 = vld [vmem:[%s5491 + $0xe8] sm:$0xff]
        %v5522 = vld [vmem:[%s5491 + $0xf0] sm:$0xff]
        %v5523 = vld [vmem:[%s5491 + $0xf8] sm:$0xff]
        %v5525 = vshrl.u32 %v5256, 16
        %v5527 = vrot.slane %v5525, 1
        %v5528 = vshll.u32 %v5256, 16
        %v5530 = vrot.slane %v5528, 2
        %v5531 = vor.u32 %v5527, %v5530
        %v5533 = vshrl.u32 %v5258, 16
        %v5535 = vrot.slane %v5533, 1
        %v5536 = vshll.u32 %v5258, 16
        %v5538 = vrot.slane %v5536, 2
        %v5539 = vor.u32 %v5535, %v5538
        %v5540 = vsel %vm1055, %v5531, %v5539
        %v5542 = vshrl.u32 %v5257, 16
        %v5544 = vrot.slane %v5542, 1
        %v5545 = vshll.u32 %v5257, 16
        %v5547 = vrot.slane %v5545, 2
        %v5548 = vor.u32 %v5544, %v5547
        %v5550 = vshrl.u32 %v5259, 16
        %v5552 = vrot.slane %v5550, 1
        %v5553 = vshll.u32 %v5259, 16
        %v5555 = vrot.slane %v5553, 2
        %v5556 = vor.u32 %v5552, %v5555
        %v5557 = vsel %vm1055, %v5548, %v5556
        %v5594 = vunpack.c.l.b16 %v5492
        %v5595 = vunpack.c.h.b16 %v5492
        %v5596 = vunpack.c.l.b16 %v5493
        %v5597 = vunpack.c.h.b16 %v5493
        %v5598 = vunpack.c.l.b16 %v5494
        %v5599 = vunpack.c.h.b16 %v5494
        %v5600 = vunpack.c.l.b16 %v5495
        %v5601 = vunpack.c.h.b16 %v5495
        %v5602 = vunpack.c.l.b16 %v5496
        %v5603 = vunpack.c.h.b16 %v5496
        %v5604 = vunpack.c.l.b16 %v5497
        %v5605 = vunpack.c.h.b16 %v5497
        %v5606 = vunpack.c.l.b16 %v5498
        %v5607 = vunpack.c.h.b16 %v5498
        %v5608 = vunpack.c.l.b16 %v5499
        %v5609 = vunpack.c.h.b16 %v5499
        %v5610 = vunpack.c.l.b16 %v5500
        %v5611 = vunpack.c.h.b16 %v5500
        %v5612 = vunpack.c.l.b16 %v5501
        %v5613 = vunpack.c.h.b16 %v5501
        %v5614 = vunpack.c.l.b16 %v5502
        %v5615 = vunpack.c.h.b16 %v5502
        %v5616 = vunpack.c.l.b16 %v5503
        %v5617 = vunpack.c.h.b16 %v5503
        %v5618 = vunpack.c.l.b16 %v5504
        %v5619 = vunpack.c.h.b16 %v5504
        %v5620 = vunpack.c.l.b16 %v5505
        %v5621 = vunpack.c.h.b16 %v5505
        %v5622 = vunpack.c.l.b16 %v5506
        %v5623 = vunpack.c.h.b16 %v5506
        %v5624 = vunpack.c.l.b16 %v5507
        %v5625 = vunpack.c.h.b16 %v5507
        %v5626 = vunpack.c.l.b16 %v5508
        %v5627 = vunpack.c.h.b16 %v5508
        %v5628 = vunpack.c.l.b16 %v5509
        %v5629 = vunpack.c.h.b16 %v5509
        %v5630 = vunpack.c.l.b16 %v5510
        %v5631 = vunpack.c.h.b16 %v5510
        %v5632 = vunpack.c.l.b16 %v5511
        %v5633 = vunpack.c.h.b16 %v5511
        %v5634 = vunpack.c.l.b16 %v5512
        %v5635 = vunpack.c.h.b16 %v5512
        %v5636 = vunpack.c.l.b16 %v5513
        %v5637 = vunpack.c.h.b16 %v5513
        %v5638 = vunpack.c.l.b16 %v5514
        %v5639 = vunpack.c.h.b16 %v5514
        %v5640 = vunpack.c.l.b16 %v5515
        %v5641 = vunpack.c.h.b16 %v5515
        %v5642 = vunpack.c.l.b16 %v5516
        %v5643 = vunpack.c.h.b16 %v5516
        %v5644 = vunpack.c.l.b16 %v5517
        %v5645 = vunpack.c.h.b16 %v5517
        %v5646 = vunpack.c.l.b16 %v5518
        %v5647 = vunpack.c.h.b16 %v5518
        %v5648 = vunpack.c.l.b16 %v5519
        %v5649 = vunpack.c.h.b16 %v5519
        %v5650 = vunpack.c.l.b16 %v5520
        %v5651 = vunpack.c.h.b16 %v5520
        %v5652 = vunpack.c.l.b16 %v5521
        %v5653 = vunpack.c.h.b16 %v5521
        %v5654 = vunpack.c.l.b16 %v5522
        %v5655 = vunpack.c.h.b16 %v5522
        %v5656 = vunpack.c.l.b16 %v5523
        %v5657 = vunpack.c.h.b16 %v5523
        %v5658 = vpack.c.b16 %v5596, %v5594
        %v5659 = vpack.c.b16 %v5597, %v5595
        %v5660 = vpack.c.b16 %v5600, %v5598
        %v5661 = vpack.c.b16 %v5601, %v5599
        %v5662 = vpack.c.b16 %v5604, %v5602
        %v5663 = vpack.c.b16 %v5605, %v5603
        %v5664 = vpack.c.b16 %v5608, %v5606
        %v5665 = vpack.c.b16 %v5609, %v5607
        %v5666 = vpack.c.b16 %v5612, %v5610
        %v5667 = vpack.c.b16 %v5613, %v5611
        %v5668 = vpack.c.b16 %v5616, %v5614
        %v5669 = vpack.c.b16 %v5617, %v5615
        %v5670 = vpack.c.b16 %v5620, %v5618
        %v5671 = vpack.c.b16 %v5621, %v5619
        %v5672 = vpack.c.b16 %v5624, %v5622
        %v5673 = vpack.c.b16 %v5625, %v5623
        %v5674 = vpack.c.b16 %v5628, %v5626
        %v5675 = vpack.c.b16 %v5629, %v5627
        %v5676 = vpack.c.b16 %v5632, %v5630
        %v5677 = vpack.c.b16 %v5633, %v5631
        %v5678 = vpack.c.b16 %v5636, %v5634
        %v5679 = vpack.c.b16 %v5637, %v5635
        %v5680 = vpack.c.b16 %v5640, %v5638
        %v5681 = vpack.c.b16 %v5641, %v5639
        %v5682 = vpack.c.b16 %v5644, %v5642
        %v5683 = vpack.c.b16 %v5645, %v5643
        %v5684 = vpack.c.b16 %v5648, %v5646
        %v5685 = vpack.c.b16 %v5649, %v5647
        %v5686 = vpack.c.b16 %v5652, %v5650
        %v5687 = vpack.c.b16 %v5653, %v5651
        %v5688 = vpack.c.b16 %v5656, %v5654
        %v5689 = vpack.c.b16 %v5657, %v5655
        %5722 = vmatprep.subr.bf16.mxu0 %v5673
        %5723 = vmatpush1.bf16.msra.mxu0 %v5672
        %5724 = vmatprep.subr.bf16.mxu0 %v5671
        %5725 = vmatpush1.bf16.msra.mxu0 %v5670
        %5726 = vmatprep.subr.bf16.mxu0 %v5669
        %5727 = vmatpush1.bf16.msra.mxu0 %v5668
        %5728 = vmatprep.subr.bf16.mxu0 %v5667
        %5729 = vmatpush1.bf16.msra.mxu0 %v5666
        %5730 = vmatprep.subr.bf16.mxu0 %v5665
        %5731 = vmatpush1.bf16.msra.mxu0 %v5664
        %5732 = vmatprep.subr.bf16.mxu0 %v5663
        %5733 = vmatpush1.bf16.msra.mxu0 %v5662
        %5734 = vmatprep.subr.bf16.mxu0 %v5661
        %5735 = vmatpush1.bf16.msra.mxu0 %v5660
        %5736 = vmatprep.subr.bf16.mxu0 %v5659
        %5737 = vmatpush1.bf16.msra.mxu0 %v5658
        %5738 = vmatprep.subr.bf16.mxu0 %v5689
        %5739 = vmatpush2.bf16.msra.mxu0 %v5688
        %5740 = vmatprep.subr.bf16.mxu0 %v5687
        %5741 = vmatpush2.bf16.msra.mxu0 %v5686
        %5742 = vmatprep.subr.bf16.mxu0 %v5685
        %5743 = vmatpush2.bf16.msra.mxu0 %v5684
        %5744 = vmatprep.subr.bf16.mxu0 %v5683
        %5745 = vmatpush2.bf16.msra.mxu0 %v5682
        %5746 = vmatprep.subr.bf16.mxu0 %v5681
        %5747 = vmatpush2.bf16.msra.mxu0 %v5680
        %5748 = vmatprep.subr.bf16.mxu0 %v5679
        %5749 = vmatpush2.bf16.msra.mxu0 %v5678
        %5750 = vmatprep.subr.bf16.mxu0 %v5677
        %5751 = vmatpush2.bf16.msra.mxu0 %v5676
        %5752 = vmatprep.subr.bf16.mxu0 %v5675
        %5753 = vmatpush2.bf16.msra.mxu0 %v5674
        %5754 = vmatprep.mubr.bf16.mxu0 %v5557
        %5755 = vmatmul.mubr.bf16.gmra.mxu0 %v5540
        %v5756 = vpop.f32.mrf.mxu0
        %v5757 = vadd.f32 0.0, %v5756
        %v5758 = vpop.f32.mrf.mxu0
        %v5759 = vadd.f32 0.0, %v5758
        %v5760 = vpop.f32.mrf.mxu0
        %v5761 = vadd.f32 0.0, %v5760
        %v5762 = vpop.f32.mrf.mxu0
        %v5763 = vadd.f32 0.0, %v5762
        %5764 = vmatprep.mubr.bf16.mxu0 %v5556
        %5765 = vmatmul.mubr.bf16.gmra.mxu0 %v5539
        %v5766 = vpop.f32.mrf.mxu0
        %v5767 = vadd.f32 0.0, %v5766
        %v5768 = vpop.f32.mrf.mxu0
        %v5769 = vadd.f32 0.0, %v5768
        %v5770 = vpop.f32.mrf.mxu0
        %v5771 = vadd.f32 0.0, %v5770
        %v5772 = vpop.f32.mrf.mxu0
        %v5773 = vadd.f32 0.0, %v5772
        %5774 = vdwg.mxu0
        %v5775 = vadd.f32 %v5483, %v5757
        %v5776 = vadd.f32 %v5484, %v5759
        %v5777 = vadd.f32 %v5485, %v5761
        %v5778 = vadd.f32 %v5486, %v5763
        %v5779 = vadd.f32 %v5487, %v5767
        %v5780 = vadd.f32 %v5488, %v5769
        %v5781 = vadd.f32 %v5489, %v5771
        %v5782 = vadd.f32 %v5490, %v5773
        %v5783 = vld [vmem:[#allocation3 + $0x10] sm:$0xcc]
        %v5784 = vld [vmem:[#allocation3 + $0x28] sm:$0xff]
        %s5785 = scalar_lea.vmem [#allocation11], 2048
        %v5786 = vld [vmem:[%s5785] sm:$0xff]
        %v5787 = vld [vmem:[%s5785 + $0x8] sm:$0xff]
        %v5788 = vld [vmem:[%s5785 + $0x10] sm:$0xff]
        %v5789 = vld [vmem:[%s5785 + $0x18] sm:$0xff]
        %v5790 = vld [vmem:[%s5785 + $0x20] sm:$0xff]
        %v5791 = vld [vmem:[%s5785 + $0x28] sm:$0xff]
        %v5792 = vld [vmem:[%s5785 + $0x30] sm:$0xff]
        %v5793 = vld [vmem:[%s5785 + $0x38] sm:$0xff]
        %v5794 = vld [vmem:[%s5785 + $0x40] sm:$0xff]
        %v5795 = vld [vmem:[%s5785 + $0x48] sm:$0xff]
        %v5796 = vld [vmem:[%s5785 + $0x50] sm:$0xff]
        %v5797 = vld [vmem:[%s5785 + $0x58] sm:$0xff]
        %v5798 = vld [vmem:[%s5785 + $0x60] sm:$0xff]
        %v5799 = vld [vmem:[%s5785 + $0x68] sm:$0xff]
        %v5800 = vld [vmem:[%s5785 + $0x70] sm:$0xff]
        %v5801 = vld [vmem:[%s5785 + $0x78] sm:$0xff]
        %v5802 = vld [vmem:[%s5785 + $0x80] sm:$0xff]
        %v5803 = vld [vmem:[%s5785 + $0x88] sm:$0xff]
        %v5804 = vld [vmem:[%s5785 + $0x90] sm:$0xff]
        %v5805 = vld [vmem:[%s5785 + $0x98] sm:$0xff]
        %v5806 = vld [vmem:[%s5785 + $0xa0] sm:$0xff]
        %v5807 = vld [vmem:[%s5785 + $0xa8] sm:$0xff]
        %v5808 = vld [vmem:[%s5785 + $0xb0] sm:$0xff]
        %v5809 = vld [vmem:[%s5785 + $0xb8] sm:$0xff]
        %v5810 = vld [vmem:[%s5785 + $0xc0] sm:$0xff]
        %v5811 = vld [vmem:[%s5785 + $0xc8] sm:$0xff]
        %v5812 = vld [vmem:[%s5785 + $0xd0] sm:$0xff]
        %v5813 = vld [vmem:[%s5785 + $0xd8] sm:$0xff]
        %v5814 = vld [vmem:[%s5785 + $0xe0] sm:$0xff]
        %v5815 = vld [vmem:[%s5785 + $0xe8] sm:$0xff]
        %v5816 = vld [vmem:[%s5785 + $0xf0] sm:$0xff]
        %v5817 = vld [vmem:[%s5785 + $0xf8] sm:$0xff]
        %v5820 = vunpack.c.l.b16 %v5783
        %v5821 = vunpack.c.h.b16 %v5783
        %v5822 = vunpack.c.l.b16 %v5784
        %v5823 = vunpack.c.h.b16 %v5784
        %v5824 = vpack.c.b16 %v5250, %v5820
        %v5825 = vpack.c.b16 %v5251, %v5821
        %v5826 = vpack.c.b16 %v5822, %v5252
        %v5827 = vpack.c.b16 %v5823, %v5253
        %v5828 = vrot.slane %v5824, 2
        %v5829 = vrot.slane %v5826, 2
        %v5830 = vsel %vm1463, %v5828, %v5829
        %v5831 = vrot.slane %v5825, 2
        %v5832 = vrot.slane %v5827, 2
        %v5833 = vsel %vm1463, %v5831, %v5832
        %v5870 = vunpack.c.l.b16 %v5786
        %v5871 = vunpack.c.h.b16 %v5786
        %v5872 = vunpack.c.l.b16 %v5787
        %v5873 = vunpack.c.h.b16 %v5787
        %v5874 = vunpack.c.l.b16 %v5788
        %v5875 = vunpack.c.h.b16 %v5788
        %v5876 = vunpack.c.l.b16 %v5789
        %v5877 = vunpack.c.h.b16 %v5789
        %v5878 = vunpack.c.l.b16 %v5790
        %v5879 = vunpack.c.h.b16 %v5790
        %v5880 = vunpack.c.l.b16 %v5791
        %v5881 = vunpack.c.h.b16 %v5791
        %v5882 = vunpack.c.l.b16 %v5792
        %v5883 = vunpack.c.h.b16 %v5792
        %v5884 = vunpack.c.l.b16 %v5793
        %v5885 = vunpack.c.h.b16 %v5793
        %v5886 = vunpack.c.l.b16 %v5794
        %v5887 = vunpack.c.h.b16 %v5794
        %v5888 = vunpack.c.l.b16 %v5795
        %v5889 = vunpack.c.h.b16 %v5795
        %v5890 = vunpack.c.l.b16 %v5796
        %v5891 = vunpack.c.h.b16 %v5796
        %v5892 = vunpack.c.l.b16 %v5797
        %v5893 = vunpack.c.h.b16 %v5797
        %v5894 = vunpack.c.l.b16 %v5798
        %v5895 = vunpack.c.h.b16 %v5798
        %v5896 = vunpack.c.l.b16 %v5799
        %v5897 = vunpack.c.h.b16 %v5799
        %v5898 = vunpack.c.l.b16 %v5800
        %v5899 = vunpack.c.h.b16 %v5800
        %v5900 = vunpack.c.l.b16 %v5801
        %v5901 = vunpack.c.h.b16 %v5801
        %v5902 = vunpack.c.l.b16 %v5802
        %v5903 = vunpack.c.h.b16 %v5802
        %v5904 = vunpack.c.l.b16 %v5803
        %v5905 = vunpack.c.h.b16 %v5803
        %v5906 = vunpack.c.l.b16 %v5804
        %v5907 = vunpack.c.h.b16 %v5804
        %v5908 = vunpack.c.l.b16 %v5805
        %v5909 = vunpack.c.h.b16 %v5805
        %v5910 = vunpack.c.l.b16 %v5806
        %v5911 = vunpack.c.h.b16 %v5806
        %v5912 = vunpack.c.l.b16 %v5807
        %v5913 = vunpack.c.h.b16 %v5807
        %v5914 = vunpack.c.l.b16 %v5808
        %v5915 = vunpack.c.h.b16 %v5808
        %v5916 = vunpack.c.l.b16 %v5809
        %v5917 = vunpack.c.h.b16 %v5809
        %v5918 = vunpack.c.l.b16 %v5810
        %v5919 = vunpack.c.h.b16 %v5810
        %v5920 = vunpack.c.l.b16 %v5811
        %v5921 = vunpack.c.h.b16 %v5811
        %v5922 = vunpack.c.l.b16 %v5812
        %v5923 = vunpack.c.h.b16 %v5812
        %v5924 = vunpack.c.l.b16 %v5813
        %v5925 = vunpack.c.h.b16 %v5813
        %v5926 = vunpack.c.l.b16 %v5814
        %v5927 = vunpack.c.h.b16 %v5814
        %v5928 = vunpack.c.l.b16 %v5815
        %v5929 = vunpack.c.h.b16 %v5815
        %v5930 = vunpack.c.l.b16 %v5816
        %v5931 = vunpack.c.h.b16 %v5816
        %v5932 = vunpack.c.l.b16 %v5817
        %v5933 = vunpack.c.h.b16 %v5817
        %v5934 = vpack.c.b16 %v5872, %v5870
        %v5935 = vpack.c.b16 %v5873, %v5871
        %v5936 = vpack.c.b16 %v5876, %v5874
        %v5937 = vpack.c.b16 %v5877, %v5875
        %v5938 = vpack.c.b16 %v5880, %v5878
        %v5939 = vpack.c.b16 %v5881, %v5879
        %v5940 = vpack.c.b16 %v5884, %v5882
        %v5941 = vpack.c.b16 %v5885, %v5883
        %v5942 = vpack.c.b16 %v5888, %v5886
        %v5943 = vpack.c.b16 %v5889, %v5887
        %v5944 = vpack.c.b16 %v5892, %v5890
        %v5945 = vpack.c.b16 %v5893, %v5891
        %v5946 = vpack.c.b16 %v5896, %v5894
        %v5947 = vpack.c.b16 %v5897, %v5895
        %v5948 = vpack.c.b16 %v5900, %v5898
        %v5949 = vpack.c.b16 %v5901, %v5899
        %v5950 = vpack.c.b16 %v5904, %v5902
        %v5951 = vpack.c.b16 %v5905, %v5903
        %v5952 = vpack.c.b16 %v5908, %v5906
        %v5953 = vpack.c.b16 %v5909, %v5907
        %v5954 = vpack.c.b16 %v5912, %v5910
        %v5955 = vpack.c.b16 %v5913, %v5911
        %v5956 = vpack.c.b16 %v5916, %v5914
        %v5957 = vpack.c.b16 %v5917, %v5915
        %v5958 = vpack.c.b16 %v5920, %v5918
        %v5959 = vpack.c.b16 %v5921, %v5919
        %v5960 = vpack.c.b16 %v5924, %v5922
        %v5961 = vpack.c.b16 %v5925, %v5923
        %v5962 = vpack.c.b16 %v5928, %v5926
        %v5963 = vpack.c.b16 %v5929, %v5927
        %v5964 = vpack.c.b16 %v5932, %v5930
        %v5965 = vpack.c.b16 %v5933, %v5931
        %5998 = vmatprep.subr.bf16.mxu0 %v5949
        %5999 = vmatpush1.bf16.msra.mxu0 %v5948
        %6000 = vmatprep.subr.bf16.mxu0 %v5947
        %6001 = vmatpush1.bf16.msra.mxu0 %v5946
        %6002 = vmatprep.subr.bf16.mxu0 %v5945
        %6003 = vmatpush1.bf16.msra.mxu0 %v5944
        %6004 = vmatprep.subr.bf16.mxu0 %v5943
        %6005 = vmatpush1.bf16.msra.mxu0 %v5942
        %6006 = vmatprep.subr.bf16.mxu0 %v5941
        %6007 = vmatpush1.bf16.msra.mxu0 %v5940
        %6008 = vmatprep.subr.bf16.mxu0 %v5939
        %6009 = vmatpush1.bf16.msra.mxu0 %v5938
        %6010 = vmatprep.subr.bf16.mxu0 %v5937
        %6011 = vmatpush1.bf16.msra.mxu0 %v5936
        %6012 = vmatprep.subr.bf16.mxu0 %v5935
        %6013 = vmatpush1.bf16.msra.mxu0 %v5934
        %6014 = vmatprep.subr.bf16.mxu0 %v5965
        %6015 = vmatpush2.bf16.msra.mxu0 %v5964
        %6016 = vmatprep.subr.bf16.mxu0 %v5963
        %6017 = vmatpush2.bf16.msra.mxu0 %v5962
        %6018 = vmatprep.subr.bf16.mxu0 %v5961
        %6019 = vmatpush2.bf16.msra.mxu0 %v5960
        %6020 = vmatprep.subr.bf16.mxu0 %v5959
        %6021 = vmatpush2.bf16.msra.mxu0 %v5958
        %6022 = vmatprep.subr.bf16.mxu0 %v5957
        %6023 = vmatpush2.bf16.msra.mxu0 %v5956
        %6024 = vmatprep.subr.bf16.mxu0 %v5955
        %6025 = vmatpush2.bf16.msra.mxu0 %v5954
        %6026 = vmatprep.subr.bf16.mxu0 %v5953
        %6027 = vmatpush2.bf16.msra.mxu0 %v5952
        %6028 = vmatprep.subr.bf16.mxu0 %v5951
        %6029 = vmatpush2.bf16.msra.mxu0 %v5950
        %6030 = vmatprep.mubr.bf16.mxu0 %v5833
        %6031 = vmatmul.mubr.bf16.gmra.mxu0 %v5830
        %v6032 = vpop.f32.mrf.mxu0
        %v6033 = vadd.f32 0.0, %v6032
        %v6034 = vpop.f32.mrf.mxu0
        %v6035 = vadd.f32 0.0, %v6034
        %v6036 = vpop.f32.mrf.mxu0
        %v6037 = vadd.f32 0.0, %v6036
        %v6038 = vpop.f32.mrf.mxu0
        %v6039 = vadd.f32 0.0, %v6038
        %6040 = vmatprep.mubr.bf16.mxu0 %v5832
        %6041 = vmatmul.mubr.bf16.gmra.mxu0 %v5829
        %v6042 = vpop.f32.mrf.mxu0
        %v6043 = vadd.f32 0.0, %v6042
        %v6044 = vpop.f32.mrf.mxu0
        %v6045 = vadd.f32 0.0, %v6044
        %v6046 = vpop.f32.mrf.mxu0
        %v6047 = vadd.f32 0.0, %v6046
        %v6048 = vpop.f32.mrf.mxu0
        %v6049 = vadd.f32 0.0, %v6048
        %6050 = vdwg.mxu0
        %v6051 = vadd.f32 %v5775, %v6033
        %v6052 = vadd.f32 %v5776, %v6035
        %v6053 = vadd.f32 %v5777, %v6037
        %v6054 = vadd.f32 %v5778, %v6039
        %v6055 = vadd.f32 %v5779, %v6043
        %v6056 = vadd.f32 %v5780, %v6045
        %v6057 = vadd.f32 %v5781, %v6047
        %v6058 = vadd.f32 %v5782, %v6049
        %v6059 = vld [vmem:[#allocation12] sm:$0x3]
        %v6061 = vlaneseq
        %v6062 = vshrl.u32 %v6061, 7
        %v6063 = vsub.s32 0, %v6062
        %v6064 = vrot.slane %v6059, %v6063
        %v6065 = vlaneseq
        %v6066 = vshrl.u32 %v6065, 7
        %v6067 = vsub.s32 1, %v6066
        %v6068 = vrot.slane %v6059, %v6067
        %v6071 = vadd.f32 %v6051, %v6064
        %v6072 = vadd.f32 %v6052, %v6068
        %v6073 = vadd.f32 %v6053, %v6064
        %v6074 = vadd.f32 %v6054, %v6068
        %v6075 = vadd.f32 %v6055, %v6064
        %v6076 = vadd.f32 %v6056, %v6068
        %v6077 = vadd.f32 %v6057, %v6064
        %v6078 = vadd.f32 %v6058, %v6068
        %v6079 = vmax.f32 %v6071, 0.0
        %v6080 = vmax.f32 %v6072, 0.0
        %v6081 = vmax.f32 %v6073, 0.0
        %v6082 = vmax.f32 %v6074, 0.0
        %v6083 = vmax.f32 %v6075, 0.0
        %v6084 = vmax.f32 %v6076, 0.0
        %v6085 = vmax.f32 %v6077, 0.0
        %v6086 = vmax.f32 %v6078, 0.0
        %v6087 = vpack.c.bf16 %v6081, %v6079
        %v6088 = vpack.c.bf16 %v6082, %v6080
        %v6089 = vpack.c.bf16 %v6085, %v6083
        %v6090 = vpack.c.bf16 %v6086, %v6084
        %v6091 = vld [vmem:[#allocation14] sm:$0xff]
        %v6092 = vld [vmem:[#allocation14 + $0x8] sm:$0xff]
        %v6093 = vld [vmem:[#allocation14 + $0x10] sm:$0xff]
        %v6094 = vld [vmem:[#allocation14 + $0x18] sm:$0xff]
        %v6095 = vld [vmem:[#allocation14 + $0x20] sm:$0xff]
        %v6096 = vld [vmem:[#allocation14 + $0x28] sm:$0xff]
        %v6097 = vld [vmem:[#allocation14 + $0x30] sm:$0xff]
        %v6098 = vld [vmem:[#allocation14 + $0x38] sm:$0xff]
        %v6099 = vld [vmem:[#allocation14 + $0x40] sm:$0xff]
        %v6100 = vld [vmem:[#allocation14 + $0x48] sm:$0xff]
        %v6101 = vld [vmem:[#allocation14 + $0x50] sm:$0xff]
        %v6102 = vld [vmem:[#allocation14 + $0x58] sm:$0xff]
        %v6103 = vld [vmem:[#allocation14 + $0x60] sm:$0xff]
        %v6104 = vld [vmem:[#allocation14 + $0x68] sm:$0xff]
        %v6105 = vld [vmem:[#allocation14 + $0x70] sm:$0xff]
        %v6106 = vld [vmem:[#allocation14 + $0x78] sm:$0xff]
        %v6107 = vld [vmem:[#allocation14 + $0x80] sm:$0xff]
        %v6108 = vld [vmem:[#allocation14 + $0x88] sm:$0xff]
        %v6109 = vld [vmem:[#allocation14 + $0x90] sm:$0xff]
        %v6110 = vld [vmem:[#allocation14 + $0x98] sm:$0xff]
        %v6111 = vld [vmem:[#allocation14 + $0xa0] sm:$0xff]
        %v6112 = vld [vmem:[#allocation14 + $0xa8] sm:$0xff]
        %v6113 = vld [vmem:[#allocation14 + $0xb0] sm:$0xff]
        %v6114 = vld [vmem:[#allocation14 + $0xb8] sm:$0xff]
        %v6115 = vld [vmem:[#allocation14 + $0xc0] sm:$0xff]
        %v6116 = vld [vmem:[#allocation14 + $0xc8] sm:$0xff]
        %v6117 = vld [vmem:[#allocation14 + $0xd0] sm:$0xff]
        %v6118 = vld [vmem:[#allocation14 + $0xd8] sm:$0xff]
        %v6119 = vld [vmem:[#allocation14 + $0xe0] sm:$0xff]
        %v6120 = vld [vmem:[#allocation14 + $0xe8] sm:$0xff]
        %v6121 = vld [vmem:[#allocation14 + $0xf0] sm:$0xff]
        %v6122 = vld [vmem:[#allocation14 + $0xf8] sm:$0xff]
        %v6123 = vld [vmem:[#allocation15] sm:$0x3]
        %v6125 = vlaneseq
        %v6126 = vshrl.u32 %v6125, 7
        %v6127 = vsub.s32 0, %v6126
        %v6128 = vrot.slane %v6123, %v6127
        %v6129 = vlaneseq
        %v6130 = vshrl.u32 %v6129, 7
        %v6131 = vsub.s32 1, %v6130
        %v6132 = vrot.slane %v6123, %v6131
        %v6167 = vunpack.c.l.b16 %v6091
        %v6168 = vunpack.c.h.b16 %v6091
        %v6169 = vunpack.c.l.b16 %v6092
        %v6170 = vunpack.c.h.b16 %v6092
        %v6171 = vunpack.c.l.b16 %v6093
        %v6172 = vunpack.c.h.b16 %v6093
        %v6173 = vunpack.c.l.b16 %v6094
        %v6174 = vunpack.c.h.b16 %v6094
        %v6175 = vunpack.c.l.b16 %v6095
        %v6176 = vunpack.c.h.b16 %v6095
        %v6177 = vunpack.c.l.b16 %v6096
        %v6178 = vunpack.c.h.b16 %v6096
        %v6179 = vunpack.c.l.b16 %v6097
        %v6180 = vunpack.c.h.b16 %v6097
        %v6181 = vunpack.c.l.b16 %v6098
        %v6182 = vunpack.c.h.b16 %v6098
        %v6183 = vunpack.c.l.b16 %v6099
        %v6184 = vunpack.c.h.b16 %v6099
        %v6185 = vunpack.c.l.b16 %v6100
        %v6186 = vunpack.c.h.b16 %v6100
        %v6187 = vunpack.c.l.b16 %v6101
        %v6188 = vunpack.c.h.b16 %v6101
        %v6189 = vunpack.c.l.b16 %v6102
        %v6190 = vunpack.c.h.b16 %v6102
        %v6191 = vunpack.c.l.b16 %v6103
        %v6192 = vunpack.c.h.b16 %v6103
        %v6193 = vunpack.c.l.b16 %v6104
        %v6194 = vunpack.c.h.b16 %v6104
        %v6195 = vunpack.c.l.b16 %v6105
        %v6196 = vunpack.c.h.b16 %v6105
        %v6197 = vunpack.c.l.b16 %v6106
        %v6198 = vunpack.c.h.b16 %v6106
        %v6199 = vunpack.c.l.b16 %v6107
        %v6200 = vunpack.c.h.b16 %v6107
        %v6201 = vunpack.c.l.b16 %v6108
        %v6202 = vunpack.c.h.b16 %v6108
        %v6203 = vunpack.c.l.b16 %v6109
        %v6204 = vunpack.c.h.b16 %v6109
        %v6205 = vunpack.c.l.b16 %v6110
        %v6206 = vunpack.c.h.b16 %v6110
        %v6207 = vunpack.c.l.b16 %v6111
        %v6208 = vunpack.c.h.b16 %v6111
        %v6209 = vunpack.c.l.b16 %v6112
        %v6210 = vunpack.c.h.b16 %v6112
        %v6211 = vunpack.c.l.b16 %v6113
        %v6212 = vunpack.c.h.b16 %v6113
        %v6213 = vunpack.c.l.b16 %v6114
        %v6214 = vunpack.c.h.b16 %v6114
        %v6215 = vunpack.c.l.b16 %v6115
        %v6216 = vunpack.c.h.b16 %v6115
        %v6217 = vunpack.c.l.b16 %v6116
        %v6218 = vunpack.c.h.b16 %v6116
        %v6219 = vunpack.c.l.b16 %v6117
        %v6220 = vunpack.c.h.b16 %v6117
        %v6221 = vunpack.c.l.b16 %v6118
        %v6222 = vunpack.c.h.b16 %v6118
        %v6223 = vunpack.c.l.b16 %v6119
        %v6224 = vunpack.c.h.b16 %v6119
        %v6225 = vunpack.c.l.b16 %v6120
        %v6226 = vunpack.c.h.b16 %v6120
        %v6227 = vunpack.c.l.b16 %v6121
        %v6228 = vunpack.c.h.b16 %v6121
        %v6229 = vunpack.c.l.b16 %v6122
        %v6230 = vunpack.c.h.b16 %v6122
        %v6231 = vpack.c.b16 %v6169, %v6167
        %v6232 = vpack.c.b16 %v6170, %v6168
        %v6233 = vpack.c.b16 %v6173, %v6171
        %v6234 = vpack.c.b16 %v6174, %v6172
        %v6235 = vpack.c.b16 %v6177, %v6175
        %v6236 = vpack.c.b16 %v6178, %v6176
        %v6237 = vpack.c.b16 %v6181, %v6179
        %v6238 = vpack.c.b16 %v6182, %v6180
        %v6239 = vpack.c.b16 %v6185, %v6183
        %v6240 = vpack.c.b16 %v6186, %v6184
        %v6241 = vpack.c.b16 %v6189, %v6187
        %v6242 = vpack.c.b16 %v6190, %v6188
        %v6243 = vpack.c.b16 %v6193, %v6191
        %v6244 = vpack.c.b16 %v6194, %v6192
        %v6245 = vpack.c.b16 %v6197, %v6195
        %v6246 = vpack.c.b16 %v6198, %v6196
        %v6247 = vpack.c.b16 %v6201, %v6199
        %v6248 = vpack.c.b16 %v6202, %v6200
        %v6249 = vpack.c.b16 %v6205, %v6203
        %v6250 = vpack.c.b16 %v6206, %v6204
        %v6251 = vpack.c.b16 %v6209, %v6207
        %v6252 = vpack.c.b16 %v6210, %v6208
        %v6253 = vpack.c.b16 %v6213, %v6211
        %v6254 = vpack.c.b16 %v6214, %v6212
        %v6255 = vpack.c.b16 %v6217, %v6215
        %v6256 = vpack.c.b16 %v6218, %v6216
        %v6257 = vpack.c.b16 %v6221, %v6219
        %v6258 = vpack.c.b16 %v6222, %v6220
        %v6259 = vpack.c.b16 %v6225, %v6223
        %v6260 = vpack.c.b16 %v6226, %v6224
        %v6261 = vpack.c.b16 %v6229, %v6227
        %v6262 = vpack.c.b16 %v6230, %v6228
        %6295 = vmatprep.subr.bf16.mxu0 %v6246
        %6296 = vmatpush1.bf16.msra.mxu0 %v6245
        %6297 = vmatprep.subr.bf16.mxu0 %v6244
        %6298 = vmatpush1.bf16.msra.mxu0 %v6243
        %6299 = vmatprep.subr.bf16.mxu0 %v6242
        %6300 = vmatpush1.bf16.msra.mxu0 %v6241
        %6301 = vmatprep.subr.bf16.mxu0 %v6240
        %6302 = vmatpush1.bf16.msra.mxu0 %v6239
        %6303 = vmatprep.subr.bf16.mxu0 %v6238
        %6304 = vmatpush1.bf16.msra.mxu0 %v6237
        %6305 = vmatprep.subr.bf16.mxu0 %v6236
        %6306 = vmatpush1.bf16.msra.mxu0 %v6235
        %6307 = vmatprep.subr.bf16.mxu0 %v6234
        %6308 = vmatpush1.bf16.msra.mxu0 %v6233
        %6309 = vmatprep.subr.bf16.mxu0 %v6232
        %6310 = vmatpush1.bf16.msra.mxu0 %v6231
        %6311 = vmatprep.subr.bf16.mxu0 %v6262
        %6312 = vmatpush2.bf16.msra.mxu0 %v6261
        %6313 = vmatprep.subr.bf16.mxu0 %v6260
        %6314 = vmatpush2.bf16.msra.mxu0 %v6259
        %6315 = vmatprep.subr.bf16.mxu0 %v6258
        %6316 = vmatpush2.bf16.msra.mxu0 %v6257
        %6317 = vmatprep.subr.bf16.mxu0 %v6256
        %6318 = vmatpush2.bf16.msra.mxu0 %v6255
        %6319 = vmatprep.subr.bf16.mxu0 %v6254
        %6320 = vmatpush2.bf16.msra.mxu0 %v6253
        %6321 = vmatprep.subr.bf16.mxu0 %v6252
        %6322 = vmatpush2.bf16.msra.mxu0 %v6251
        %6323 = vmatprep.subr.bf16.mxu0 %v6250
        %6324 = vmatpush2.bf16.msra.mxu0 %v6249
        %6325 = vmatprep.subr.bf16.mxu0 %v6248
        %6326 = vmatpush2.bf16.msra.mxu0 %v6247
        %6327 = vmatprep.mubr.bf16.mxu0 %v6088
        %6328 = vmatmul.mubr.bf16.gmra.mxu0 %v6087
        %v6329 = vpop.f32.mrf.mxu0
        %v6330 = vadd.f32 %v6128, %v6329
        %v6331 = vpop.f32.mrf.mxu0
        %v6332 = vadd.f32 %v6132, %v6331
        %v6333 = vpop.f32.mrf.mxu0
        %v6334 = vadd.f32 %v6128, %v6333
        %v6335 = vpop.f32.mrf.mxu0
        %v6336 = vadd.f32 %v6132, %v6335
        %6337 = vmatprep.mubr.bf16.mxu0 %v6090
        %6338 = vmatmul.mubr.bf16.gmra.mxu0 %v6089
        %v6339 = vpop.f32.mrf.mxu0
        %v6340 = vadd.f32 %v6128, %v6339
        %v6341 = vpop.f32.mrf.mxu0
        %v6342 = vadd.f32 %v6132, %v6341
        %v6343 = vpop.f32.mrf.mxu0
        %v6344 = vadd.f32 %v6128, %v6343
        %v6345 = vpop.f32.mrf.mxu0
        %v6346 = vadd.f32 %v6132, %v6345
        %6347 = vdwg.mxu0
        %v6348 = vmax.f32 %v6330, 0.0
        %v6349 = vmax.f32 %v6332, 0.0
        %v6350 = vmax.f32 %v6334, 0.0
        %v6351 = vmax.f32 %v6336, 0.0
        %v6352 = vmax.f32 %v6340, 0.0
        %v6353 = vmax.f32 %v6342, 0.0
        %v6354 = vmax.f32 %v6344, 0.0
        %v6355 = vmax.f32 %v6346, 0.0
        %v6356 = vlaneseq
        %v6357 = vshrl.u32 %v6356, 7
        %v6358 = vadd.s32 %v6357, 8
        %v6359 = vadd.s32 %v6357, 16
        %v6360 = vadd.s32 %v6357, 24
        %vm6361 = vcmp.lt.s32.totalorder %v6357, 3
        %vm6362 = vcmp.lt.s32.totalorder %v6358, 3
        %vm6363 = vcmp.lt.s32.totalorder %v6359, 3
        %vm6364 = vcmp.lt.s32.totalorder %v6360, 3
        %vm6365 = vcmp.ge.s32.totalorder %v6357, 9
        %vm6366 = vcmp.ge.s32.totalorder %v6358, 9
        %vm6367 = vcmp.ge.s32.totalorder %v6359, 9
        %vm6368 = vcmp.ge.s32.totalorder %v6360, 9
        %vm6369 = vcmp.lt.s32.totalorder %v6357, 12
        %vm6370 = vcmp.lt.s32.totalorder %v6358, 12
        %vm6371 = vcmp.lt.s32.totalorder %v6359, 12
        %vm6372 = vcmp.lt.s32.totalorder %v6360, 12
        %vm6373 = vmand %vm6365, %vm6369
        %vm6374 = vmand %vm6366, %vm6370
        %vm6375 = vmand %vm6367, %vm6371
        %vm6376 = vmand %vm6368, %vm6372
        %vm6377 = vmor %vm6361, %vm6373
        %vm6378 = vmor %vm6362, %vm6374
        %vm6379 = vmor %vm6363, %vm6375
        %vm6380 = vmor %vm6364, %vm6376
        %vm6381 = vcmp.ge.s32.totalorder %v6357, 18
        %vm6382 = vcmp.ge.s32.totalorder %v6358, 18
        %vm6383 = vcmp.ge.s32.totalorder %v6359, 18
        %vm6384 = vcmp.ge.s32.totalorder %v6360, 18
        %vm6385 = vcmp.lt.s32.totalorder %v6357, 21
        %vm6386 = vcmp.lt.s32.totalorder %v6358, 21
        %vm6387 = vcmp.lt.s32.totalorder %v6359, 21
        %vm6388 = vcmp.lt.s32.totalorder %v6360, 21
        %vm6389 = vmand %vm6381, %vm6385
        %vm6390 = vmand %vm6382, %vm6386
        %vm6391 = vmand %vm6383, %vm6387
        %vm6392 = vmand %vm6384, %vm6388
        %vm6393 = vmor %vm6377, %vm6389
        %vm6394 = vmor %vm6378, %vm6390
        %vm6395 = vmor %vm6379, %vm6391
        %vm6396 = vmor %vm6380, %vm6392
        %v6397 = vsel %vm6393, 1.0, 0.0
        %v6398 = vsel %vm6394, 1.0, 0.0
        %v6399 = vsel %vm6395, 1.0, 0.0
        %v6400 = vsel %vm6396, 1.0, 0.0
        %v6401 = vmul.f32 %v6348, %v6397
        %v6402 = vmul.f32 %v6349, %v6397
        %v6403 = vmul.f32 %v6350, %v6398
        %v6404 = vmul.f32 %v6351, %v6398
        %v6405 = vmul.f32 %v6352, %v6399
        %v6406 = vmul.f32 %v6353, %v6399
        %v6407 = vmul.f32 %v6354, %v6400
        %v6408 = vmul.f32 %v6355, %v6400
        %v6409 = vadd.f32 %v6401, %v6403
        %v6410 = vadd.f32 %v6409, %v6405
        %vm6411 = vcmask 1042432
        %v6412 = vsel %vm6411, %v6407, 0.0
        %v6413 = vadd.f32 %v6410, %v6412
        %v6414 = vrot.slane %v6413, 4
        %v6415 = vadd.f32 %v6413, %v6414
        %v6416 = vrot.slane %v6415, 2
        %v6417 = vadd.f32 %v6415, %v6416
        %v6418 = vrot.slane %v6417, 1
        %v6419 = vadd.f32 %v6417, %v6418
        %v6420 = vadd.f32 %v6402, %v6404
        %v6421 = vadd.f32 %v6420, %v6406
        %v6422 = vsel %vm6411, %v6408, 0.0
        %v6423 = vadd.f32 %v6421, %v6422
        %v6424 = vrot.slane %v6423, 4
        %v6425 = vadd.f32 %v6423, %v6424
        %v6426 = vrot.slane %v6425, 2
        %v6427 = vadd.f32 %v6425, %v6426
        %v6428 = vrot.slane %v6427, 1
        %v6429 = vadd.f32 %v6427, %v6428
        %v6430 = vmul.f32 %v6419, 0.11111111
        %v6431 = vmul.f32 %v6429, 0.11111111
        %v6434 = vcombine.low %v6430, %v6431
        %v6436 = vunpack.c.l.s4 1966171168
        %v6437 = vunpack.c.0.s8 %v6436
        %v6438 = vlaneseq
        %v6439 = vshrl.u32 %v6438, 7
        %v6440 = vsub.s32 %v6437, %v6439
        %v6441 = vrot.slane %v6434, %v6440
        %v6443 = vunpack.c.l.s4 1966171168
        %v6444 = vunpack.c.0.s8 %v6443
        %v6445 = vlaneseq
        %v6446 = vshrl.u32 %v6445, 7
        %v6447 = vsub.s32 %v6444, %v6446
        %v6448 = vrot.slane %v6441, %v6447
        %v6450 = vlaneseq
        %vm6451 = vcmp.ge.s32.totalorder %v6450, 0
        %vm6452 = vcmp.lt.s32.totalorder %v6450, 256
        %vm6453 = vmand %vm6451, %vm6452
        %6454 = vst.msk [vmem:[%s439] sm:$0x3] %vm6453, %v6448
        %p6455 = scmp.lt.s32.totalorder %s25, 1
        %s6456 = scalar_select %p6455, %s25, 1
        %s6457 = smul.addr %s6456, 2
        %s6458 = scalar_lea.vmem %s9, %s6457
        // Predicated region
        $region89: #{cnn2d_encoder_forward.1} parent=55 // pred_check
          %p6459 = pneg %p237
        $region90: #{cnn2d_encoder_forward.1} parent=55 // pred_check_branch
          %6461 = sbr.rel (%p6459) target = $region92
        $region91: #{cnn2d_encoder_forward.1} parent=55 // pred_region
          _
        $region92: #{cnn2d_encoder_forward.1} parent=55 // pred_fallthru
          _
      $region56: #{cnn2d_encoder_forward.1} parent=5 // pred_fallthru
        _
      %p6462 = scmp.le.s32.totalorder 2, %s20
      // Predicated region
      $region93: #{cnn2d_encoder_forward.1} parent=5 // pred_check
        %p6463 = pneg %p6462
      $region94: #{cnn2d_encoder_forward.1} parent=5 // pred_check_branch
        %6465 = sbr.rel (%p6463) target = $region96
      $region95: #{cnn2d_encoder_forward.1} parent=5 // pred_region
        %s6466 = ssub.s32 %s20, 2
        // Predicated region
        $region97: #{cnn2d_encoder_forward.1} parent=95 // pred_check
          %p6467 = pneg %p243
        $region98: #{cnn2d_encoder_forward.1} parent=95 // pred_check_branch
          %6469 = sbr.rel (%p6467) target = $region100
        $region99: #{cnn2d_encoder_forward.1} parent=95 // pred_region
          %p6470 = scmp.lt.s32.totalorder %s26, 1
          %s6471 = scalar_select %p6470, %s26, 1
          %s6472 = smul.addr %s6471, 2
          %s6473 = scalar_lea.vmem %s9, %s6472
        $region100: #{cnn2d_encoder_forward.1} parent=95 // pred_fallthru
          _
      $region96: #{cnn2d_encoder_forward.1} parent=5 // pred_fallthru
        _
    $region6: #{cnn2d_encoder_forward.1} parent=1 // loop_footer
      %s24 = sadd.s32 1, %s20
    $region7: #{cnn2d_encoder_forward.1} parent=1 // loop_footer_branch
      %19 = sbr.rel target = $region3
    $region8: #{cnn2d_encoder_forward.1} parent=1 // loop_exit
      _
    %6474 = vsyncpa [#allocation5], 1
    %s6475 = scalar_lea.sflag [#allocation5], 1
    %6476 = vsyncpa %s6475, 1
    %6477 = vsyncpa [#allocation7], 1
    %6478 = vsyncpa [#allocation10], 1
    %6479 = vsyncpa [#allocation13], 1
    %6480 = vsyncpa [#allocation16], 1

</llo_original>
